<compile_context>
chip_gen: v5e
topology: v5e:2x2
jax: 0.10.0
libtpu: 0.0.40
codegen_flags: <defaults>
</compile_context>

<pallas_src>
import functools

import jax
import jax.numpy as jnp
from jax.experimental import pallas as pl
from jax.experimental.pallas import tpu as pltpu

HIDDEN = 32  # self.hidden_dim in the PyTorch module


def _round_up(n, m):
    return (n + m - 1) // m * m


# -----------------------------------------------------------------------------
# Fused whole-model kernel (one batch block per grid step).
#   x_ref  : (T*Bb, Din)  f32   time-major rows: row t*Bb + b  = x[b, t, :]
#   wx{l}  : (Din_l, 8H)  bf16  input->gate weights, both directions column-fused
#   wh{l}  : (2H, 8H)     bf16  recurrent weights, block-structured (fwd rows / rev rows)
#   b{l}   : (1, 8H)      f32   b_ih + b_hh, both directions column-fused
#   wout   : (1, 2H)      f32   Linear(64 -> 1) weight row ([fwd H | rev H])
#   bout   : (1, 1)       f32
#   o_ref  : (T*Bb, 1)    f32   head output (wrapper unflattens to (B, T, 1))
#   gx_sc  : (T*Bb, 8H)   f32   scratch: hoisted input->gate contributions (reused per layer)
#   h_sc   : (T*Bb, 2H)   f32   scratch: bidirectional hidden sequence (reused per layer)
# Gate column layout over 8H: [i_f i_r | f_f f_r | o_f o_r | g_f g_r]  (each H wide)
#   -> sigmoid over columns 0:6H, tanh over columns 6H:8H only.
# -----------------------------------------------------------------------------
def _make_kernel(T, Bb):
    H = HIDDEN
    SIGW = 6 * H   # sigmoid columns (i, f, o for both directions)

    def kernel(x_ref, wx0_ref, wh0_ref, b0_ref, wx1_ref, wh1_ref, b1_ref,
               wout_ref, bout_ref, o_ref, gx_sc, h_sc):
        # Lane mask: within each 2H gate pair, the first H columns belong to the fwd direction.
        fwd_cols = (jax.lax.broadcasted_iota(jnp.int32, (Bb, 8 * H), 1) % (2 * H)) < H

        def recurrence(wh_ref):
            wh = wh_ref[...]                          # (2H, 8H) bf16, hoisted out of the loop

            def step(s, carry):
                h, c = carry                          # (Bb, 2H) f32, lanes [fwd | rev]
                r = T - 1 - s
                row_f = pl.multiple_of(s * Bb, Bb)
                row_r = pl.multiple_of(r * Bb, Bb)
                # fwd gate columns read time s, rev gate columns read time T-1-s.
                # Independent of the h/c carry -> scheduler hoists it off the serial chain.
                g_x = jnp.where(fwd_cols,
                                gx_sc[pl.ds(row_f, Bb), :],
                                gx_sc[pl.ds(row_r, Bb), :])          # (Bb, 8H)
                gates = g_x + jnp.dot(h.astype(jnp.bfloat16), wh,
                                      preferred_element_type=jnp.float32)
                sig = jax.nn.sigmoid(gates[:, :SIGW])                # i, f, o (both dirs)
                g_t = jnp.tanh(gates[:, SIGW:])                      # g (both dirs)
                i_g = sig[:, 0:2 * H]
                f_g = sig[:, 2 * H:4 * H]
                o_g = sig[:, 4 * H:6 * H]
                c_new = f_g * c + i_g * g_t
                h_new = o_g * jnp.tanh(c_new)
                h_sc[pl.ds(row_f, Bb), 0:H] = h_new[:, :H]           # fwd hidden @ time s
                h_sc[pl.ds(row_r, Bb), H:2 * H] = h_new[:, H:]       # rev hidden @ time T-1-s
                return h_new, c_new

            z = jnp.zeros((Bb, 2 * H), jnp.float32)
            jax.lax.fori_loop(0, T, step, (z, z), unroll=min(T, 8))

        # ---- layer 0: hoisted input->gate matmul over all timesteps, both directions ----
        x = x_ref[...].astype(jnp.bfloat16)                          # (T*Bb, Din)
        gx_sc[...] = (jnp.dot(x, wx0_ref[...], preferred_element_type=jnp.float32)
                      + b0_ref[...])
        recurrence(wh0_ref)

        # ---- layer 1: single (T*Bb, 2H) @ (2H, 8H) matmul on layer-0 bidirectional output ----
        h0 = h_sc[...].astype(jnp.bfloat16)
        gx_sc[...] = (jnp.dot(h0, wx1_ref[...], preferred_element_type=jnp.float32)
                      + b1_ref[...])
        recurrence(wh1_ref)                                          # overwrites h_sc with layer-1 h

        # ---- head: ReLU -> Dropout (identity at inference) -> Linear(2H -> 1) ----
        # TODO(synk): nn.Dropout(0.25) training-mode mask is not implemented (inference identity).
        act = jnp.maximum(h_sc[...], 0.0)                            # (T*Bb, 2H)
        y = jnp.sum(act * wout_ref[...], axis=-1, keepdims=True) + bout_ref[...]
        o_ref[...] = y                                               # (T*Bb, 1)

    return kernel


@jax.jit
def map_lai_forward(x, params):
    """x: (B, T, in_channels) f32 -> (B, T, 1) f32."""
    B, T, Din = x.shape
    H = HIDDEN
    # Batch block: at least 8 sublane rows, capped at 128. (For long production T, lower the cap:
    # per-block VMEM ~= 1.3 KiB * T * block_b, important under v7x 64 MiB / v5e 16 MiB scoped.)
    block_b = min(128, max(8, _round_up(B, 8)))
    Bp = _round_up(B, block_b)
    G = Bp // block_b

    xp = jnp.pad(x, ((0, Bp - B), (0, 0), (0, 0)))
    # (G, T*block_b, Din): inside each batch block, row index = t*block_b + b_local (time-major).
    x_blk = xp.reshape(G, block_b, T, Din).transpose(0, 2, 1, 3).reshape(G, T * block_b, Din)

    def full_spec(arr):
        nd = arr.ndim
        return pl.BlockSpec(arr.shape, lambda g, _nd=nd: (0,) * _nd)

    kernel = _make_kernel(T, block_b)
    out = pl.pallas_call(
        kernel,
        out_shape=jax.ShapeDtypeStruct((G, T * block_b, 1), jnp.float32),
        grid=(G,),
        in_specs=[
            pl.BlockSpec((None, T * block_b, Din), lambda g: (g, 0, 0)),
            full_spec(params["wx0"]), full_spec(params["wh0"]), full_spec(params["b0"]),
            full_spec(params["wx1"]), full_spec(params["wh1"]), full_spec(params["b1"]),
            full_spec(params["w_out"]), full_spec(params["b_out"]),
        ],
        out_specs=pl.BlockSpec((None, T * block_b, 1), lambda g: (g, 0, 0)),
        scratch_shapes=[
            pltpu.VMEM((T * block_b, 8 * H), jnp.float32),   # gx: hoisted input-gate precompute
            pltpu.VMEM((T * block_b, 2 * H), jnp.float32),   # bidirectional hidden sequence
        ],
        compiler_params=pltpu.CompilerParams(dimension_semantics=("parallel",)),
    )(x_blk, params["wx0"], params["wh0"], params["b0"],
      params["wx1"], params["wh1"], params["b1"],
      params["w_out"], params["b_out"])

    y = out.reshape(G, T, block_b).transpose(0, 2, 1).reshape(Bp, T)[:B]
    return y[:, :, None]


# -----------------------------------------------------------------------------
# Parameters: PyTorch-layout init, then fused/packed for the kernel.
# -----------------------------------------------------------------------------
def init_raw_params(key, in_channels, hidden=HIDDEN):
    """PyTorch-shaped params, uniform(-1/sqrt(fan), 1/sqrt(fan)) like nn.LSTM / nn.Linear."""
    H = hidden
    G = 4 * H
    keys = iter(jax.random.split(key, 32))
    bound = 1.0 / (H ** 0.5)

    def u(shape, b):
        return jax.random.uniform(next(keys), shape, jnp.float32, minval=-b, maxval=b)

    raw = {}
    layer_in = [in_channels, 2 * H]
    for layer in range(2):
        din = layer_in[layer]
        for tag in ("fwd", "rev"):
            raw[f"l{layer}_{tag}"] = {
                "w_ih": u((G, din), bound),   # (4H, din), PyTorch gate order i, f, g, o
                "w_hh": u((G, H), bound),     # (4H, H)
                "b_ih": u((G,), bound),
                "b_hh": u((G,), bound),
            }
    b_lin = 1.0 / ((2 * H) ** 0.5)
    raw["w_out"] = u((1, 2 * H), b_lin)
    raw["b_out"] = u((1,), b_lin)
    return raw


_GATE_ORDER = (0, 1, 3, 2)   # pick PyTorch gate blocks in order i, f, o, g


def _fuse_cols(a_f, a_r, H):
    """a_*: (rows, 4H) in PyTorch gate order i,f,g,o -> (rows, 8H) [i_f i_r|f_f f_r|o_f o_r|g_f g_r]."""
    parts = []
    for k in _GATE_ORDER:
        parts.append(a_f[:, k * H:(k + 1) * H])
        parts.append(a_r[:, k * H:(k + 1) * H])
    return jnp.concatenate(parts, axis=1)


def fuse_params(raw, hidden=HIDDEN):
    """Pack PyTorch-layout weights into the fused layout used by the kernel."""
    H = hidden
    params = {}
    for layer in range(2):
        pf = raw[f"l{layer}_fwd"]
        pr = raw[f"l{layer}_rev"]
        wx = _fuse_cols(pf["w_ih"].T, pr["w_ih"].T, H)                        # (din, 8H)
        z = jnp.zeros((H, 4 * H), jnp.float32)
        wh = _fuse_cols(jnp.concatenate([pf["w_hh"].T, z], axis=0),          # (2H, 8H) block-structured
                        jnp.concatenate([z, pr["w_hh"].T], axis=0), H)
        b = _fuse_cols((pf["b_ih"] + pf["b_hh"])[None, :],
                       (pr["b_ih"] + pr["b_hh"])[None, :], H)                 # (1, 8H)
        params[f"wx{layer}"] = wx.astype(jnp.bfloat16)
        params[f"wh{layer}"] = wh.astype(jnp.bfloat16)
        params[f"b{layer}"] = b.astype(jnp.float32)
    params["w_out"] = raw["w_out"].astype(jnp.float32)                        # (1, 2H)
    params["b_out"] = raw["b_out"].reshape(1, 1).astype(jnp.float32)
    return params


# -----------------------------------------------------------------------------
# Pure-JAX f32 reference (mirrors the PyTorch module) for a correctness check.
# -----------------------------------------------------------------------------
def _ref_lstm_dir(x, w_ih, w_hh, b_ih, b_hh, reverse, hidden=HIDDEN):
    B, T, _ = x.shape
    H = hidden
    h = jnp.zeros((B, H), jnp.float32)
    c = jnp.zeros((B, H), jnp.float32)
    outs = [None] * T
    order = range(T - 1, -1, -1) if reverse else range(T)
    for t in order:
        g = x[:, t, :] @ w_ih.T + h @ w_hh.T + b_ih + b_hh
        i = jax.nn.sigmoid(g[:, :H])
        f = jax.nn.sigmoid(g[:, H:2 * H])
        gg = jnp.tanh(g[:, 2 * H:3 * H])
        o = jax.nn.sigmoid(g[:, 3 * H:])
        c = f * c + i * gg
        h = o * jnp.tanh(c)
        outs[t] = h
    return jnp.stack(outs, axis=1)      # (B, T, H)


def reference_forward(x, raw):
    h = x
    for layer in range(2):
        pf = raw[f"l{layer}_fwd"]
        pr = raw[f"l{layer}_rev"]
        o_f = _ref_lstm_dir(h, pf["w_ih"], pf["w_hh"], pf["b_ih"], pf["b_hh"], reverse=False)
        o_r = _ref_lstm_dir(h, pr["w_ih"], pr["w_hh"], pr["b_ih"], pr["b_hh"], reverse=True)
        h = jnp.concatenate([o_f, o_r], axis=-1)       # (B, T, 2H)
    h = jnp.maximum(h, 0.0)
    return h @ raw["w_out"].T + raw["b_out"]           # (B, T, 1)


if __name__ == "__main__":
    key = jax.random.PRNGKey(0)
    k_x, k_p = jax.random.split(key)

    batch, seq, in_channels = 2, 8, 4
    x = jax.random.normal(k_x, (batch, seq, in_channels), dtype=jnp.float32)
    raw = init_raw_params(k_p, in_channels)
    params = fuse_params(raw)

    out = jax.block_until_ready(map_lai_forward(x, params))

    assert out.shape == (batch, seq, 1), out.shape
    assert bool(jnp.all(jnp.isfinite(out)))

    # Compare against the pure-JAX f32 reference (kernel uses bf16 MXU operands -> loose tol).
    ref = reference_forward(x, raw)
    assert bool(jnp.allclose(out, ref, atol=5e-2, rtol=5e-2)), float(jnp.max(jnp.abs(out - ref)))

    print("KERNEL_OK")
</pallas_src>

<mosaic_0001>
module attributes {stable_mosaic.version = 11 : i64} {
  func.func @kernel(%arg0: i32, %arg1: memref<1x64x4xf32, #tpu.memory_space<vmem>>, %arg2: memref<4x256xbf16, #tpu.memory_space<vmem>>, %arg3: memref<64x256xbf16, #tpu.memory_space<vmem>>, %arg4: memref<1x256xf32, #tpu.memory_space<vmem>>, %arg5: memref<64x256xbf16, #tpu.memory_space<vmem>>, %arg6: memref<64x256xbf16, #tpu.memory_space<vmem>>, %arg7: memref<1x256xf32, #tpu.memory_space<vmem>>, %arg8: memref<1x64xf32, #tpu.memory_space<vmem>>, %arg9: memref<1x1xf32, #tpu.memory_space<vmem>>, %arg10: memref<1x64x1xf32, #tpu.memory_space<vmem>>, %arg11: memref<64x256xf32, #tpu.memory_space<vmem>>, %arg12: memref<64x64xf32, #tpu.memory_space<vmem>>) attributes {dimension_semantics = [#tpu.dimension_semantics<parallel>], iteration_bounds = array<i64: 1>, scalar_prefetch = 0 : i64, scratch_operands = 2 : i64, tpu.core_type = #tpu.core_type<tc>, window_params = [{transform_indices = @transform_0, window_bounds = array<i64: 1, 64, 4>}, {pipeline_mode = #tpu.pipeline_mode<synchronous>, transform_indices = @transform_1, window_bounds = array<i64: 4, 256>}, {pipeline_mode = #tpu.pipeline_mode<synchronous>, transform_indices = @transform_2, window_bounds = array<i64: 64, 256>}, {pipeline_mode = #tpu.pipeline_mode<synchronous>, transform_indices = @transform_3, window_bounds = array<i64: 1, 256>}, {pipeline_mode = #tpu.pipeline_mode<synchronous>, transform_indices = @transform_4, window_bounds = array<i64: 64, 256>}, {pipeline_mode = #tpu.pipeline_mode<synchronous>, transform_indices = @transform_5, window_bounds = array<i64: 64, 256>}, {pipeline_mode = #tpu.pipeline_mode<synchronous>, transform_indices = @transform_6, window_bounds = array<i64: 1, 256>}, {pipeline_mode = #tpu.pipeline_mode<synchronous>, transform_indices = @transform_7, window_bounds = array<i64: 1, 64>}, {pipeline_mode = #tpu.pipeline_mode<synchronous>, transform_indices = @transform_8, window_bounds = array<i64: 1, 1>}, {transform_indices = @transform_9, window_bounds = array<i64: 1, 64, 1>}]} {
    %0 = tpu.iota {dimensions = array<i32: 1>} : vector<8x256xi32>
    %c64_i32 = arith.constant 64 : i32
    %c0_i32 = arith.constant 0 : i32
    %1 = arith.cmpi eq, %c64_i32, %c0_i32 : i32
    %c1_i32 = arith.constant 1 : i32
    %2 = arith.select %1, %c1_i32, %c64_i32 : i32
    %3 = vector.broadcast %2 : i32 to vector<8x256xi32>
    %4 = arith.remsi %0, %3 : vector<8x256xi32>
    %c0_i32_0 = arith.constant 0 : i32
    %5 = vector.broadcast %c0_i32_0 : i32 to vector<8x256xi32>
    %6 = arith.cmpi ne, %4, %5 : vector<8x256xi32>
    %c0_i32_1 = arith.constant 0 : i32
    %7 = vector.broadcast %c0_i32_1 : i32 to vector<8x256xi32>
    %8 = arith.cmpi slt, %4, %7 : vector<8x256xi32>
    %c0_i32_2 = arith.constant 0 : i32
    %9 = arith.cmpi slt, %2, %c0_i32_2 : i32
    %10 = vector.broadcast %9 : i1 to vector<8x256xi1>
    %11 = vector.broadcast %10 : vector<8x256xi1> to vector<8x256xi1>
    %12 = arith.xori %8, %11 : vector<8x256xi1>
    %13 = arith.andi %12, %6 : vector<8x256xi1>
    %14 = vector.broadcast %2 : i32 to vector<8x256xi32>
    %15 = arith.addi %4, %14 : vector<8x256xi32>
    %16 = arith.select %13, %15, %4 : vector<8x256xi1>, vector<8x256xi32>
    %c32_i32 = arith.constant 32 : i32
    %17 = vector.broadcast %c32_i32 : i32 to vector<8x256xi32>
    %18 = arith.cmpi slt, %16, %17 : vector<8x256xi32>
    %c0 = arith.constant 0 : index
    %c0_3 = arith.constant 0 : index
    %c0_4 = arith.constant 0 : index
    %19 = vector.load %arg1[%c0, %c0_3, %c0_4] : memref<1x64x4xf32, #tpu.memory_space<vmem>>, vector<1x64x4xf32>
    %20 = vector.shape_cast %19 : vector<1x64x4xf32> to vector<64x4xf32>
    %21 = arith.truncf %20 : vector<64x4xf32> to vector<64x4xbf16>
    %c0_5 = arith.constant 0 : index
    %c0_6 = arith.constant 0 : index
    %22 = vector.load %arg2[%c0_5, %c0_6] : memref<4x256xbf16, #tpu.memory_space<vmem>>, vector<4x256xbf16>
    %cst = arith.constant dense<0.000000e+00> : vector<64x256xf32>
    %23 = tpu.matmul %21, %22, %cst {dimension_numbers = #tpu.dot_dimension_numbers<[1], [0], [0], [1], [0, 0, 1, 1], [], []>} : vector<64x4xbf16>, vector<4x256xbf16>, vector<64x256xf32> -> vector<64x256xf32>
    %c0_7 = arith.constant 0 : index
    %c0_8 = arith.constant 0 : index
    %24 = vector.load %arg4[%c0_7, %c0_8] : memref<1x256xf32, #tpu.memory_space<vmem>>, vector<1x256xf32>
    %25 = vector.broadcast %24 : vector<1x256xf32> to vector<64x256xf32>
    %26 = arith.addf %23, %25 : vector<64x256xf32>
    %c0_9 = arith.constant 0 : index
    %c0_10 = arith.constant 0 : index
    %27 = vector.load %arg11[%c0_9, %c0_10] : memref<64x256xf32, #tpu.memory_space<vmem>>, vector<64x256xf32>
    tpu.vector_store %arg11[%c0_9, %c0_10], %26 {strides = array<i32>} : memref<64x256xf32, #tpu.memory_space<vmem>>, vector<64x256xf32>,
    %c0_11 = arith.constant 0 : index
    %c0_12 = arith.constant 0 : index
    %28 = vector.load %arg3[%c0_11, %c0_12] : memref<64x256xbf16, #tpu.memory_space<vmem>>, vector<64x256xbf16>
    %cst_13 = arith.constant 0.000000e+00 : f32
    %29 = vector.broadcast %cst_13 : f32 to vector<8x64xf32>
    %c0_i32_14 = arith.constant 0 : i32
    %c7_i32 = arith.constant 7 : i32
    %30 = arith.subi %c7_i32, %c0_i32_14 : i32
    %c8_i32 = arith.constant 8 : i32
    %31 = arith.muli %c0_i32_14, %c8_i32 : i32
    %32 = tpu.assume_multiple %31, 8 : i32
    %c8_i32_15 = arith.constant 8 : i32
    %33 = arith.muli %30, %c8_i32_15 : i32
    %34 = tpu.assume_multiple %33, 8 : i32
    %35 = arith.index_cast %32 : i32 to index
    %c0_16 = arith.constant 0 : index
    %36 = vector.load %arg11[%35, %c0_16] : memref<64x256xf32, #tpu.memory_space<vmem>>, vector<8x256xf32>
    %37 = arith.index_cast %34 : i32 to index
    %c0_17 = arith.constant 0 : index
    %38 = vector.load %arg11[%37, %c0_17] : memref<64x256xf32, #tpu.memory_space<vmem>>, vector<8x256xf32>
    %39 = arith.select %18, %36, %38 : vector<8x256xi1>, vector<8x256xf32>
    %40 = arith.truncf %29 : vector<8x64xf32> to vector<8x64xbf16>
    %cst_18 = arith.constant dense<0.000000e+00> : vector<8x256xf32>
    %41 = tpu.matmul %40, %28, %cst_18 {dimension_numbers = #tpu.dot_dimension_numbers<[1], [0], [0], [1], [0, 0, 1, 1], [], []>} : vector<8x64xbf16>, vector<64x256xbf16>, vector<8x256xf32> -> vector<8x256xf32>
    %42 = arith.addf %39, %41 : vector<8x256xf32>
    %43 = vector.extract_strided_slice %42 {offsets = [0, 0], sizes = [8, 192], strides = [1, 1]} : vector<8x256xf32> to vector<8x192xf32>
    %44 = arith.negf %43 : vector<8x192xf32>
    %45 = math.exp %44 : vector<8x192xf32>
    %cst_19 = arith.constant 1.000000e+00 : f32
    %46 = vector.broadcast %cst_19 : f32 to vector<8x192xf32>
    %47 = arith.addf %46, %45 : vector<8x192xf32>
    %48 = arith.divf %46, %47 : vector<8x192xf32>
    %49 = vector.extract_strided_slice %42 {offsets = [0, 192], sizes = [8, 64], strides = [1, 1]} : vector<8x256xf32> to vector<8x64xf32>
    %50 = math.tanh %49 : vector<8x64xf32>
    %51 = vector.extract_strided_slice %48 {offsets = [0, 0], sizes = [8, 64], strides = [1, 1]} : vector<8x192xf32> to vector<8x64xf32>
    %52 = vector.extract_strided_slice %48 {offsets = [0, 64], sizes = [8, 64], strides = [1, 1]} : vector<8x192xf32> to vector<8x64xf32>
    %53 = vector.extract_strided_slice %48 {offsets = [0, 128], sizes = [8, 64], strides = [1, 1]} : vector<8x192xf32> to vector<8x64xf32>
    %54 = arith.mulf %52, %29 : vector<8x64xf32>
    %55 = arith.mulf %51, %50 : vector<8x64xf32>
    %56 = arith.addf %54, %55 : vector<8x64xf32>
    %57 = math.tanh %56 : vector<8x64xf32>
    %58 = arith.mulf %53, %57 : vector<8x64xf32>
    %59 = vector.extract_strided_slice %58 {offsets = [0, 0], sizes = [8, 32], strides = [1, 1]} : vector<8x64xf32> to vector<8x32xf32>
    %60 = arith.index_cast %32 : i32 to index
    %c0_20 = arith.constant 0 : index
    %61 = vector.load %arg12[%60, %c0_20] : memref<64x64xf32, #tpu.memory_space<vmem>>, vector<8x32xf32>
    tpu.vector_store %arg12[%60, %c0_20], %59 {strides = array<i32>} : memref<64x64xf32, #tpu.memory_space<vmem>>, vector<8x32xf32>,
    %62 = vector.extract_strided_slice %58 {offsets = [0, 32], sizes = [8, 32], strides = [1, 1]} : vector<8x64xf32> to vector<8x32xf32>
    %63 = arith.index_cast %34 : i32 to index
    %c32 = arith.constant 32 : index
    %64 = vector.load %arg12[%63, %c32] : memref<64x64xf32, #tpu.memory_space<vmem>>, vector<8x32xf32>
    tpu.vector_store %arg12[%63, %c32], %62 {strides = array<i32>} : memref<64x64xf32, #tpu.memory_space<vmem>>, vector<8x32xf32>,
    %c1_i32_21 = arith.constant 1 : i32
    %c7_i32_22 = arith.constant 7 : i32
    %65 = arith.subi %c7_i32_22, %c1_i32_21 : i32
    %c8_i32_23 = arith.constant 8 : i32
    %66 = arith.muli %c1_i32_21, %c8_i32_23 : i32
    %67 = tpu.assume_multiple %66, 8 : i32
    %c8_i32_24 = arith.constant 8 : i32
    %68 = arith.muli %65, %c8_i32_24 : i32
    %69 = tpu.assume_multiple %68, 8 : i32
    %70 = arith.index_cast %67 : i32 to index
    %c0_25 = arith.constant 0 : index
    %71 = vector.load %arg11[%70, %c0_25] : memref<64x256xf32, #tpu.memory_space<vmem>>, vector<8x256xf32>
    %72 = arith.index_cast %69 : i32 to index
    %c0_26 = arith.constant 0 : index
    %73 = vector.load %arg11[%72, %c0_26] : memref<64x256xf32, #tpu.memory_space<vmem>>, vector<8x256xf32>
    %74 = arith.select %18, %71, %73 : vector<8x256xi1>, vector<8x256xf32>
    %75 = arith.truncf %58 : vector<8x64xf32> to vector<8x64xbf16>
    %cst_27 = arith.constant dense<0.000000e+00> : vector<8x256xf32>
    %76 = tpu.matmul %75, %28, %cst_27 {dimension_numbers = #tpu.dot_dimension_numbers<[1], [0], [0], [1], [0, 0, 1, 1], [], []>} : vector<8x64xbf16>, vector<64x256xbf16>, vector<8x256xf32> -> vector<8x256xf32>
    %77 = arith.addf %74, %76 : vector<8x256xf32>
    %78 = vector.extract_strided_slice %77 {offsets = [0, 0], sizes = [8, 192], strides = [1, 1]} : vector<8x256xf32> to vector<8x192xf32>
    %79 = arith.negf %78 : vector<8x192xf32>
    %80 = math.exp %79 : vector<8x192xf32>
    %cst_28 = arith.constant 1.000000e+00 : f32
    %81 = vector.broadcast %cst_28 : f32 to vector<8x192xf32>
    %82 = arith.addf %81, %80 : vector<8x192xf32>
    %83 = arith.divf %81, %82 : vector<8x192xf32>
    %84 = vector.extract_strided_slice %77 {offsets = [0, 192], sizes = [8, 64], strides = [1, 1]} : vector<8x256xf32> to vector<8x64xf32>
    %85 = math.tanh %84 : vector<8x64xf32>
    %86 = vector.extract_strided_slice %83 {offsets = [0, 0], sizes = [8, 64], strides = [1, 1]} : vector<8x192xf32> to vector<8x64xf32>
    %87 = vector.extract_strided_slice %83 {offsets = [0, 64], sizes = [8, 64], strides = [1, 1]} : vector<8x192xf32> to vector<8x64xf32>
    %88 = vector.extract_strided_slice %83 {offsets = [0, 128], sizes = [8, 64], strides = [1, 1]} : vector<8x192xf32> to vector<8x64xf32>
    %89 = arith.mulf %87, %56 : vector<8x64xf32>
    %90 = arith.mulf %86, %85 : vector<8x64xf32>
    %91 = arith.addf %89, %90 : vector<8x64xf32>
    %92 = math.tanh %91 : vector<8x64xf32>
    %93 = arith.mulf %88, %92 : vector<8x64xf32>
    %94 = vector.extract_strided_slice %93 {offsets = [0, 0], sizes = [8, 32], strides = [1, 1]} : vector<8x64xf32> to vector<8x32xf32>
    %95 = arith.index_cast %67 : i32 to index
    %c0_29 = arith.constant 0 : index
    %96 = vector.load %arg12[%95, %c0_29] : memref<64x64xf32, #tpu.memory_space<vmem>>, vector<8x32xf32>
    tpu.vector_store %arg12[%95, %c0_29], %94 {strides = array<i32>} : memref<64x64xf32, #tpu.memory_space<vmem>>, vector<8x32xf32>,
    %97 = vector.extract_strided_slice %93 {offsets = [0, 32], sizes = [8, 32], strides = [1, 1]} : vector<8x64xf32> to vector<8x32xf32>
    %98 = arith.index_cast %69 : i32 to index
    %c32_30 = arith.constant 32 : index
    %99 = vector.load %arg12[%98, %c32_30] : memref<64x64xf32, #tpu.memory_space<vmem>>, vector<8x32xf32>
    tpu.vector_store %arg12[%98, %c32_30], %97 {strides = array<i32>} : memref<64x64xf32, #tpu.memory_space<vmem>>, vector<8x32xf32>,
    %c2_i32 = arith.constant 2 : i32
    %c7_i32_31 = arith.constant 7 : i32
    %100 = arith.subi %c7_i32_31, %c2_i32 : i32
    %c8_i32_32 = arith.constant 8 : i32
    %101 = arith.muli %c2_i32, %c8_i32_32 : i32
    %102 = tpu.assume_multiple %101, 8 : i32
    %c8_i32_33 = arith.constant 8 : i32
    %103 = arith.muli %100, %c8_i32_33 : i32
    %104 = tpu.assume_multiple %103, 8 : i32
    %105 = arith.index_cast %102 : i32 to index
    %c0_34 = arith.constant 0 : index
    %106 = vector.load %arg11[%105, %c0_34] : memref<64x256xf32, #tpu.memory_space<vmem>>, vector<8x256xf32>
    %107 = arith.index_cast %104 : i32 to index
    %c0_35 = arith.constant 0 : index
    %108 = vector.load %arg11[%107, %c0_35] : memref<64x256xf32, #tpu.memory_space<vmem>>, vector<8x256xf32>
    %109 = arith.select %18, %106, %108 : vector<8x256xi1>, vector<8x256xf32>
    %110 = arith.truncf %93 : vector<8x64xf32> to vector<8x64xbf16>
    %cst_36 = arith.constant dense<0.000000e+00> : vector<8x256xf32>
    %111 = tpu.matmul %110, %28, %cst_36 {dimension_numbers = #tpu.dot_dimension_numbers<[1], [0], [0], [1], [0, 0, 1, 1], [], []>} : vector<8x64xbf16>, vector<64x256xbf16>, vector<8x256xf32> -> vector<8x256xf32>
    %112 = arith.addf %109, %111 : vector<8x256xf32>
    %113 = vector.extract_strided_slice %112 {offsets = [0, 0], sizes = [8, 192], strides = [1, 1]} : vector<8x256xf32> to vector<8x192xf32>
    %114 = arith.negf %113 : vector<8x192xf32>
    %115 = math.exp %114 : vector<8x192xf32>
    %cst_37 = arith.constant 1.000000e+00 : f32
    %116 = vector.broadcast %cst_37 : f32 to vector<8x192xf32>
    %117 = arith.addf %116, %115 : vector<8x192xf32>
    %118 = arith.divf %116, %117 : vector<8x192xf32>
    %119 = vector.extract_strided_slice %112 {offsets = [0, 192], sizes = [8, 64], strides = [1, 1]} : vector<8x256xf32> to vector<8x64xf32>
    %120 = math.tanh %119 : vector<8x64xf32>
    %121 = vector.extract_strided_slice %118 {offsets = [0, 0], sizes = [8, 64], strides = [1, 1]} : vector<8x192xf32> to vector<8x64xf32>
    %122 = vector.extract_strided_slice %118 {offsets = [0, 64], sizes = [8, 64], strides = [1, 1]} : vector<8x192xf32> to vector<8x64xf32>
    %123 = vector.extract_strided_slice %118 {offsets = [0, 128], sizes = [8, 64], strides = [1, 1]} : vector<8x192xf32> to vector<8x64xf32>
    %124 = arith.mulf %122, %91 : vector<8x64xf32>
    %125 = arith.mulf %121, %120 : vector<8x64xf32>
    %126 = arith.addf %124, %125 : vector<8x64xf32>
    %127 = math.tanh %126 : vector<8x64xf32>
    %128 = arith.mulf %123, %127 : vector<8x64xf32>
    %129 = vector.extract_strided_slice %128 {offsets = [0, 0], sizes = [8, 32], strides = [1, 1]} : vector<8x64xf32> to vector<8x32xf32>
    %130 = arith.index_cast %102 : i32 to index
    %c0_38 = arith.constant 0 : index
    %131 = vector.load %arg12[%130, %c0_38] : memref<64x64xf32, #tpu.memory_space<vmem>>, vector<8x32xf32>
    tpu.vector_store %arg12[%130, %c0_38], %129 {strides = array<i32>} : memref<64x64xf32, #tpu.memory_space<vmem>>, vector<8x32xf32>,
    %132 = vector.extract_strided_slice %128 {offsets = [0, 32], sizes = [8, 32], strides = [1, 1]} : vector<8x64xf32> to vector<8x32xf32>
    %133 = arith.index_cast %104 : i32 to index
    %c32_39 = arith.constant 32 : index
    %134 = vector.load %arg12[%133, %c32_39] : memref<64x64xf32, #tpu.memory_space<vmem>>, vector<8x32xf32>
    tpu.vector_store %arg12[%133, %c32_39], %132 {strides = array<i32>} : memref<64x64xf32, #tpu.memory_space<vmem>>, vector<8x32xf32>,
    %c3_i32 = arith.constant 3 : i32
    %c7_i32_40 = arith.constant 7 : i32
    %135 = arith.subi %c7_i32_40, %c3_i32 : i32
    %c8_i32_41 = arith.constant 8 : i32
    %136 = arith.muli %c3_i32, %c8_i32_41 : i32
    %137 = tpu.assume_multiple %136, 8 : i32
    %c8_i32_42 = arith.constant 8 : i32
    %138 = arith.muli %135, %c8_i32_42 : i32
    %139 = tpu.assume_multiple %138, 8 : i32
    %140 = arith.index_cast %137 : i32 to index
    %c0_43 = arith.constant 0 : index
    %141 = vector.load %arg11[%140, %c0_43] : memref<64x256xf32, #tpu.memory_space<vmem>>, vector<8x256xf32>
    %142 = arith.index_cast %139 : i32 to index
    %c0_44 = arith.constant 0 : index
    %143 = vector.load %arg11[%142, %c0_44] : memref<64x256xf32, #tpu.memory_space<vmem>>, vector<8x256xf32>
    %144 = arith.select %18, %141, %143 : vector<8x256xi1>, vector<8x256xf32>
    %145 = arith.truncf %128 : vector<8x64xf32> to vector<8x64xbf16>
    %cst_45 = arith.constant dense<0.000000e+00> : vector<8x256xf32>
    %146 = tpu.matmul %145, %28, %cst_45 {dimension_numbers = #tpu.dot_dimension_numbers<[1], [0], [0], [1], [0, 0, 1, 1], [], []>} : vector<8x64xbf16>, vector<64x256xbf16>, vector<8x256xf32> -> vector<8x256xf32>
    %147 = arith.addf %144, %146 : vector<8x256xf32>
    %148 = vector.extract_strided_slice %147 {offsets = [0, 0], sizes = [8, 192], strides = [1, 1]} : vector<8x256xf32> to vector<8x192xf32>
    %149 = arith.negf %148 : vector<8x192xf32>
    %150 = math.exp %149 : vector<8x192xf32>
    %cst_46 = arith.constant 1.000000e+00 : f32
    %151 = vector.broadcast %cst_46 : f32 to vector<8x192xf32>
    %152 = arith.addf %151, %150 : vector<8x192xf32>
    %153 = arith.divf %151, %152 : vector<8x192xf32>
    %154 = vector.extract_strided_slice %147 {offsets = [0, 192], sizes = [8, 64], strides = [1, 1]} : vector<8x256xf32> to vector<8x64xf32>
    %155 = math.tanh %154 : vector<8x64xf32>
    %156 = vector.extract_strided_slice %153 {offsets = [0, 0], sizes = [8, 64], strides = [1, 1]} : vector<8x192xf32> to vector<8x64xf32>
    %157 = vector.extract_strided_slice %153 {offsets = [0, 64], sizes = [8, 64], strides = [1, 1]} : vector<8x192xf32> to vector<8x64xf32>
    %158 = vector.extract_strided_slice %153 {offsets = [0, 128], sizes = [8, 64], strides = [1, 1]} : vector<8x192xf32> to vector<8x64xf32>
    %159 = arith.mulf %157, %126 : vector<8x64xf32>
    %160 = arith.mulf %156, %155 : vector<8x64xf32>
    %161 = arith.addf %159, %160 : vector<8x64xf32>
    %162 = math.tanh %161 : vector<8x64xf32>
    %163 = arith.mulf %158, %162 : vector<8x64xf32>
    %164 = vector.extract_strided_slice %163 {offsets = [0, 0], sizes = [8, 32], strides = [1, 1]} : vector<8x64xf32> to vector<8x32xf32>
    %165 = arith.index_cast %137 : i32 to index
    %c0_47 = arith.constant 0 : index
    %166 = vector.load %arg12[%165, %c0_47] : memref<64x64xf32, #tpu.memory_space<vmem>>, vector<8x32xf32>
    tpu.vector_store %arg12[%165, %c0_47], %164 {strides = array<i32>} : memref<64x64xf32, #tpu.memory_space<vmem>>, vector<8x32xf32>,
    %167 = vector.extract_strided_slice %163 {offsets = [0, 32], sizes = [8, 32], strides = [1, 1]} : vector<8x64xf32> to vector<8x32xf32>
    %168 = arith.index_cast %139 : i32 to index
    %c32_48 = arith.constant 32 : index
    %169 = vector.load %arg12[%168, %c32_48] : memref<64x64xf32, #tpu.memory_space<vmem>>, vector<8x32xf32>
    tpu.vector_store %arg12[%168, %c32_48], %167 {strides = array<i32>} : memref<64x64xf32, #tpu.memory_space<vmem>>, vector<8x32xf32>,
    %c4_i32 = arith.constant 4 : i32
    %c7_i32_49 = arith.constant 7 : i32
    %170 = arith.subi %c7_i32_49, %c4_i32 : i32
    %c8_i32_50 = arith.constant 8 : i32
    %171 = arith.muli %c4_i32, %c8_i32_50 : i32
    %172 = tpu.assume_multiple %171, 8 : i32
    %c8_i32_51 = arith.constant 8 : i32
    %173 = arith.muli %170, %c8_i32_51 : i32
    %174 = tpu.assume_multiple %173, 8 : i32
    %175 = arith.index_cast %172 : i32 to index
    %c0_52 = arith.constant 0 : index
    %176 = vector.load %arg11[%175, %c0_52] : memref<64x256xf32, #tpu.memory_space<vmem>>, vector<8x256xf32>
    %177 = arith.index_cast %174 : i32 to index
    %c0_53 = arith.constant 0 : index
    %178 = vector.load %arg11[%177, %c0_53] : memref<64x256xf32, #tpu.memory_space<vmem>>, vector<8x256xf32>
    %179 = arith.select %18, %176, %178 : vector<8x256xi1>, vector<8x256xf32>
    %180 = arith.truncf %163 : vector<8x64xf32> to vector<8x64xbf16>
    %cst_54 = arith.constant dense<0.000000e+00> : vector<8x256xf32>
    %181 = tpu.matmul %180, %28, %cst_54 {dimension_numbers = #tpu.dot_dimension_numbers<[1], [0], [0], [1], [0, 0, 1, 1], [], []>} : vector<8x64xbf16>, vector<64x256xbf16>, vector<8x256xf32> -> vector<8x256xf32>
    %182 = arith.addf %179, %181 : vector<8x256xf32>
    %183 = vector.extract_strided_slice %182 {offsets = [0, 0], sizes = [8, 192], strides = [1, 1]} : vector<8x256xf32> to vector<8x192xf32>
    %184 = arith.negf %183 : vector<8x192xf32>
    %185 = math.exp %184 : vector<8x192xf32>
    %cst_55 = arith.constant 1.000000e+00 : f32
    %186 = vector.broadcast %cst_55 : f32 to vector<8x192xf32>
    %187 = arith.addf %186, %185 : vector<8x192xf32>
    %188 = arith.divf %186, %187 : vector<8x192xf32>
    %189 = vector.extract_strided_slice %182 {offsets = [0, 192], sizes = [8, 64], strides = [1, 1]} : vector<8x256xf32> to vector<8x64xf32>
    %190 = math.tanh %189 : vector<8x64xf32>
    %191 = vector.extract_strided_slice %188 {offsets = [0, 0], sizes = [8, 64], strides = [1, 1]} : vector<8x192xf32> to vector<8x64xf32>
    %192 = vector.extract_strided_slice %188 {offsets = [0, 64], sizes = [8, 64], strides = [1, 1]} : vector<8x192xf32> to vector<8x64xf32>
    %193 = vector.extract_strided_slice %188 {offsets = [0, 128], sizes = [8, 64], strides = [1, 1]} : vector<8x192xf32> to vector<8x64xf32>
    %194 = arith.mulf %192, %161 : vector<8x64xf32>
    %195 = arith.mulf %191, %190 : vector<8x64xf32>
    %196 = arith.addf %194, %195 : vector<8x64xf32>
    %197 = math.tanh %196 : vector<8x64xf32>
    %198 = arith.mulf %193, %197 : vector<8x64xf32>
    %199 = vector.extract_strided_slice %198 {offsets = [0, 0], sizes = [8, 32], strides = [1, 1]} : vector<8x64xf32> to vector<8x32xf32>
    %200 = arith.index_cast %172 : i32 to index
    %c0_56 = arith.constant 0 : index
    %201 = vector.load %arg12[%200, %c0_56] : memref<64x64xf32, #tpu.memory_space<vmem>>, vector<8x32xf32>
    tpu.vector_store %arg12[%200, %c0_56], %199 {strides = array<i32>} : memref<64x64xf32, #tpu.memory_space<vmem>>, vector<8x32xf32>,
    %202 = vector.extract_strided_slice %198 {offsets = [0, 32], sizes = [8, 32], strides = [1, 1]} : vector<8x64xf32> to vector<8x32xf32>
    %203 = arith.index_cast %174 : i32 to index
    %c32_57 = arith.constant 32 : index
    %204 = vector.load %arg12[%203, %c32_57] : memref<64x64xf32, #tpu.memory_space<vmem>>, vector<8x32xf32>
    tpu.vector_store %arg12[%203, %c32_57], %202 {strides = array<i32>} : memref<64x64xf32, #tpu.memory_space<vmem>>, vector<8x32xf32>,
    %c5_i32 = arith.constant 5 : i32
    %c7_i32_58 = arith.constant 7 : i32
    %205 = arith.subi %c7_i32_58, %c5_i32 : i32
    %c8_i32_59 = arith.constant 8 : i32
    %206 = arith.muli %c5_i32, %c8_i32_59 : i32
    %207 = tpu.assume_multiple %206, 8 : i32
    %c8_i32_60 = arith.constant 8 : i32
    %208 = arith.muli %205, %c8_i32_60 : i32
    %209 = tpu.assume_multiple %208, 8 : i32
    %210 = arith.index_cast %207 : i32 to index
    %c0_61 = arith.constant 0 : index
    %211 = vector.load %arg11[%210, %c0_61] : memref<64x256xf32, #tpu.memory_space<vmem>>, vector<8x256xf32>
    %212 = arith.index_cast %209 : i32 to index
    %c0_62 = arith.constant 0 : index
    %213 = vector.load %arg11[%212, %c0_62] : memref<64x256xf32, #tpu.memory_space<vmem>>, vector<8x256xf32>
    %214 = arith.select %18, %211, %213 : vector<8x256xi1>, vector<8x256xf32>
    %215 = arith.truncf %198 : vector<8x64xf32> to vector<8x64xbf16>
    %cst_63 = arith.constant dense<0.000000e+00> : vector<8x256xf32>
    %216 = tpu.matmul %215, %28, %cst_63 {dimension_numbers = #tpu.dot_dimension_numbers<[1], [0], [0], [1], [0, 0, 1, 1], [], []>} : vector<8x64xbf16>, vector<64x256xbf16>, vector<8x256xf32> -> vector<8x256xf32>
    %217 = arith.addf %214, %216 : vector<8x256xf32>
    %218 = vector.extract_strided_slice %217 {offsets = [0, 0], sizes = [8, 192], strides = [1, 1]} : vector<8x256xf32> to vector<8x192xf32>
    %219 = arith.negf %218 : vector<8x192xf32>
    %220 = math.exp %219 : vector<8x192xf32>
    %cst_64 = arith.constant 1.000000e+00 : f32
    %221 = vector.broadcast %cst_64 : f32 to vector<8x192xf32>
    %222 = arith.addf %221, %220 : vector<8x192xf32>
    %223 = arith.divf %221, %222 : vector<8x192xf32>
    %224 = vector.extract_strided_slice %217 {offsets = [0, 192], sizes = [8, 64], strides = [1, 1]} : vector<8x256xf32> to vector<8x64xf32>
    %225 = math.tanh %224 : vector<8x64xf32>
    %226 = vector.extract_strided_slice %223 {offsets = [0, 0], sizes = [8, 64], strides = [1, 1]} : vector<8x192xf32> to vector<8x64xf32>
    %227 = vector.extract_strided_slice %223 {offsets = [0, 64], sizes = [8, 64], strides = [1, 1]} : vector<8x192xf32> to vector<8x64xf32>
    %228 = vector.extract_strided_slice %223 {offsets = [0, 128], sizes = [8, 64], strides = [1, 1]} : vector<8x192xf32> to vector<8x64xf32>
    %229 = arith.mulf %227, %196 : vector<8x64xf32>
    %230 = arith.mulf %226, %225 : vector<8x64xf32>
    %231 = arith.addf %229, %230 : vector<8x64xf32>
    %232 = math.tanh %231 : vector<8x64xf32>
    %233 = arith.mulf %228, %232 : vector<8x64xf32>
    %234 = vector.extract_strided_slice %233 {offsets = [0, 0], sizes = [8, 32], strides = [1, 1]} : vector<8x64xf32> to vector<8x32xf32>
    %235 = arith.index_cast %207 : i32 to index
    %c0_65 = arith.constant 0 : index
    %236 = vector.load %arg12[%235, %c0_65] : memref<64x64xf32, #tpu.memory_space<vmem>>, vector<8x32xf32>
    tpu.vector_store %arg12[%235, %c0_65], %234 {strides = array<i32>} : memref<64x64xf32, #tpu.memory_space<vmem>>, vector<8x32xf32>,
    %237 = vector.extract_strided_slice %233 {offsets = [0, 32], sizes = [8, 32], strides = [1, 1]} : vector<8x64xf32> to vector<8x32xf32>
    %238 = arith.index_cast %209 : i32 to index
    %c32_66 = arith.constant 32 : index
    %239 = vector.load %arg12[%238, %c32_66] : memref<64x64xf32, #tpu.memory_space<vmem>>, vector<8x32xf32>
    tpu.vector_store %arg12[%238, %c32_66], %237 {strides = array<i32>} : memref<64x64xf32, #tpu.memory_space<vmem>>, vector<8x32xf32>,
    %c6_i32 = arith.constant 6 : i32
    %c7_i32_67 = arith.constant 7 : i32
    %240 = arith.subi %c7_i32_67, %c6_i32 : i32
    %c8_i32_68 = arith.constant 8 : i32
    %241 = arith.muli %c6_i32, %c8_i32_68 : i32
    %242 = tpu.assume_multiple %241, 8 : i32
    %c8_i32_69 = arith.constant 8 : i32
    %243 = arith.muli %240, %c8_i32_69 : i32
    %244 = tpu.assume_multiple %243, 8 : i32
    %245 = arith.index_cast %242 : i32 to index
    %c0_70 = arith.constant 0 : index
    %246 = vector.load %arg11[%245, %c0_70] : memref<64x256xf32, #tpu.memory_space<vmem>>, vector<8x256xf32>
    %247 = arith.index_cast %244 : i32 to index
    %c0_71 = arith.constant 0 : index
    %248 = vector.load %arg11[%247, %c0_71] : memref<64x256xf32, #tpu.memory_space<vmem>>, vector<8x256xf32>
    %249 = arith.select %18, %246, %248 : vector<8x256xi1>, vector<8x256xf32>
    %250 = arith.truncf %233 : vector<8x64xf32> to vector<8x64xbf16>
    %cst_72 = arith.constant dense<0.000000e+00> : vector<8x256xf32>
    %251 = tpu.matmul %250, %28, %cst_72 {dimension_numbers = #tpu.dot_dimension_numbers<[1], [0], [0], [1], [0, 0, 1, 1], [], []>} : vector<8x64xbf16>, vector<64x256xbf16>, vector<8x256xf32> -> vector<8x256xf32>
    %252 = arith.addf %249, %251 : vector<8x256xf32>
    %253 = vector.extract_strided_slice %252 {offsets = [0, 0], sizes = [8, 192], strides = [1, 1]} : vector<8x256xf32> to vector<8x192xf32>
    %254 = arith.negf %253 : vector<8x192xf32>
    %255 = math.exp %254 : vector<8x192xf32>
    %cst_73 = arith.constant 1.000000e+00 : f32
    %256 = vector.broadcast %cst_73 : f32 to vector<8x192xf32>
    %257 = arith.addf %256, %255 : vector<8x192xf32>
    %258 = arith.divf %256, %257 : vector<8x192xf32>
    %259 = vector.extract_strided_slice %252 {offsets = [0, 192], sizes = [8, 64], strides = [1, 1]} : vector<8x256xf32> to vector<8x64xf32>
    %260 = math.tanh %259 : vector<8x64xf32>
    %261 = vector.extract_strided_slice %258 {offsets = [0, 0], sizes = [8, 64], strides = [1, 1]} : vector<8x192xf32> to vector<8x64xf32>
    %262 = vector.extract_strided_slice %258 {offsets = [0, 64], sizes = [8, 64], strides = [1, 1]} : vector<8x192xf32> to vector<8x64xf32>
    %263 = vector.extract_strided_slice %258 {offsets = [0, 128], sizes = [8, 64], strides = [1, 1]} : vector<8x192xf32> to vector<8x64xf32>
    %264 = arith.mulf %262, %231 : vector<8x64xf32>
    %265 = arith.mulf %261, %260 : vector<8x64xf32>
    %266 = arith.addf %264, %265 : vector<8x64xf32>
    %267 = math.tanh %266 : vector<8x64xf32>
    %268 = arith.mulf %263, %267 : vector<8x64xf32>
    %269 = vector.extract_strided_slice %268 {offsets = [0, 0], sizes = [8, 32], strides = [1, 1]} : vector<8x64xf32> to vector<8x32xf32>
    %270 = arith.index_cast %242 : i32 to index
    %c0_74 = arith.constant 0 : index
    %271 = vector.load %arg12[%270, %c0_74] : memref<64x64xf32, #tpu.memory_space<vmem>>, vector<8x32xf32>
    tpu.vector_store %arg12[%270, %c0_74], %269 {strides = array<i32>} : memref<64x64xf32, #tpu.memory_space<vmem>>, vector<8x32xf32>,
    %272 = vector.extract_strided_slice %268 {offsets = [0, 32], sizes = [8, 32], strides = [1, 1]} : vector<8x64xf32> to vector<8x32xf32>
    %273 = arith.index_cast %244 : i32 to index
    %c32_75 = arith.constant 32 : index
    %274 = vector.load %arg12[%273, %c32_75] : memref<64x64xf32, #tpu.memory_space<vmem>>, vector<8x32xf32>
    tpu.vector_store %arg12[%273, %c32_75], %272 {strides = array<i32>} : memref<64x64xf32, #tpu.memory_space<vmem>>, vector<8x32xf32>,
    %c7_i32_76 = arith.constant 7 : i32
    %c7_i32_77 = arith.constant 7 : i32
    %275 = arith.subi %c7_i32_77, %c7_i32_76 : i32
    %c8_i32_78 = arith.constant 8 : i32
    %276 = arith.muli %c7_i32_76, %c8_i32_78 : i32
    %277 = tpu.assume_multiple %276, 8 : i32
    %c8_i32_79 = arith.constant 8 : i32
    %278 = arith.muli %275, %c8_i32_79 : i32
    %279 = tpu.assume_multiple %278, 8 : i32
    %280 = arith.index_cast %277 : i32 to index
    %c0_80 = arith.constant 0 : index
    %281 = vector.load %arg11[%280, %c0_80] : memref<64x256xf32, #tpu.memory_space<vmem>>, vector<8x256xf32>
    %282 = arith.index_cast %279 : i32 to index
    %c0_81 = arith.constant 0 : index
    %283 = vector.load %arg11[%282, %c0_81] : memref<64x256xf32, #tpu.memory_space<vmem>>, vector<8x256xf32>
    %284 = arith.select %18, %281, %283 : vector<8x256xi1>, vector<8x256xf32>
    %285 = arith.truncf %268 : vector<8x64xf32> to vector<8x64xbf16>
    %cst_82 = arith.constant dense<0.000000e+00> : vector<8x256xf32>
    %286 = tpu.matmul %285, %28, %cst_82 {dimension_numbers = #tpu.dot_dimension_numbers<[1], [0], [0], [1], [0, 0, 1, 1], [], []>} : vector<8x64xbf16>, vector<64x256xbf16>, vector<8x256xf32> -> vector<8x256xf32>
    %287 = arith.addf %284, %286 : vector<8x256xf32>
    %288 = vector.extract_strided_slice %287 {offsets = [0, 0], sizes = [8, 192], strides = [1, 1]} : vector<8x256xf32> to vector<8x192xf32>
    %289 = arith.negf %288 : vector<8x192xf32>
    %290 = math.exp %289 : vector<8x192xf32>
    %cst_83 = arith.constant 1.000000e+00 : f32
    %291 = vector.broadcast %cst_83 : f32 to vector<8x192xf32>
    %292 = arith.addf %291, %290 : vector<8x192xf32>
    %293 = arith.divf %291, %292 : vector<8x192xf32>
    %294 = vector.extract_strided_slice %287 {offsets = [0, 192], sizes = [8, 64], strides = [1, 1]} : vector<8x256xf32> to vector<8x64xf32>
    %295 = math.tanh %294 : vector<8x64xf32>
    %296 = vector.extract_strided_slice %293 {offsets = [0, 0], sizes = [8, 64], strides = [1, 1]} : vector<8x192xf32> to vector<8x64xf32>
    %297 = vector.extract_strided_slice %293 {offsets = [0, 64], sizes = [8, 64], strides = [1, 1]} : vector<8x192xf32> to vector<8x64xf32>
    %298 = vector.extract_strided_slice %293 {offsets = [0, 128], sizes = [8, 64], strides = [1, 1]} : vector<8x192xf32> to vector<8x64xf32>
    %299 = arith.mulf %297, %266 : vector<8x64xf32>
    %300 = arith.mulf %296, %295 : vector<8x64xf32>
    %301 = arith.addf %299, %300 : vector<8x64xf32>
    %302 = math.tanh %301 : vector<8x64xf32>
    %303 = arith.mulf %298, %302 : vector<8x64xf32>
    %304 = vector.extract_strided_slice %303 {offsets = [0, 0], sizes = [8, 32], strides = [1, 1]} : vector<8x64xf32> to vector<8x32xf32>
    %305 = arith.index_cast %277 : i32 to index
    %c0_84 = arith.constant 0 : index
    %306 = vector.load %arg12[%305, %c0_84] : memref<64x64xf32, #tpu.memory_space<vmem>>, vector<8x32xf32>
    tpu.vector_store %arg12[%305, %c0_84], %304 {strides = array<i32>} : memref<64x64xf32, #tpu.memory_space<vmem>>, vector<8x32xf32>,
    %307 = vector.extract_strided_slice %303 {offsets = [0, 32], sizes = [8, 32], strides = [1, 1]} : vector<8x64xf32> to vector<8x32xf32>
    %308 = arith.index_cast %279 : i32 to index
    %c32_85 = arith.constant 32 : index
    %309 = vector.load %arg12[%308, %c32_85] : memref<64x64xf32, #tpu.memory_space<vmem>>, vector<8x32xf32>
    tpu.vector_store %arg12[%308, %c32_85], %307 {strides = array<i32>} : memref<64x64xf32, #tpu.memory_space<vmem>>, vector<8x32xf32>,
    %c8_i32_86 = arith.constant 8 : i32
    %c0_87 = arith.constant 0 : index
    %c0_88 = arith.constant 0 : index
    %310 = vector.load %arg12[%c0_87, %c0_88] : memref<64x64xf32, #tpu.memory_space<vmem>>, vector<64x64xf32>
    %311 = arith.truncf %310 : vector<64x64xf32> to vector<64x64xbf16>
    %c0_89 = arith.constant 0 : index
    %c0_90 = arith.constant 0 : index
    %312 = vector.load %arg5[%c0_89, %c0_90] : memref<64x256xbf16, #tpu.memory_space<vmem>>, vector<64x256xbf16>
    %cst_91 = arith.constant dense<0.000000e+00> : vector<64x256xf32>
    %313 = tpu.matmul %311, %312, %cst_91 {dimension_numbers = #tpu.dot_dimension_numbers<[1], [0], [0], [1], [0, 0, 1, 1], [], []>} : vector<64x64xbf16>, vector<64x256xbf16>, vector<64x256xf32> -> vector<64x256xf32>
    %c0_92 = arith.constant 0 : index
    %c0_93 = arith.constant 0 : index
    %314 = vector.load %arg7[%c0_92, %c0_93] : memref<1x256xf32, #tpu.memory_space<vmem>>, vector<1x256xf32>
    %315 = vector.broadcast %314 : vector<1x256xf32> to vector<64x256xf32>
    %316 = arith.addf %313, %315 : vector<64x256xf32>
    %c0_94 = arith.constant 0 : index
    %c0_95 = arith.constant 0 : index
    %317 = vector.load %arg11[%c0_94, %c0_95] : memref<64x256xf32, #tpu.memory_space<vmem>>, vector<64x256xf32>
    tpu.vector_store %arg11[%c0_94, %c0_95], %316 {strides = array<i32>} : memref<64x256xf32, #tpu.memory_space<vmem>>, vector<64x256xf32>,
    %c0_96 = arith.constant 0 : index
    %c0_97 = arith.constant 0 : index
    %318 = vector.load %arg6[%c0_96, %c0_97] : memref<64x256xbf16, #tpu.memory_space<vmem>>, vector<64x256xbf16>
    %cst_98 = arith.constant 0.000000e+00 : f32
    %319 = vector.broadcast %cst_98 : f32 to vector<8x64xf32>
    %c0_i32_99 = arith.constant 0 : i32
    %c7_i32_100 = arith.constant 7 : i32
    %320 = arith.subi %c7_i32_100, %c0_i32_99 : i32
    %c8_i32_101 = arith.constant 8 : i32
    %321 = arith.muli %c0_i32_99, %c8_i32_101 : i32
    %322 = tpu.assume_multiple %321, 8 : i32
    %c8_i32_102 = arith.constant 8 : i32
    %323 = arith.muli %320, %c8_i32_102 : i32
    %324 = tpu.assume_multiple %323, 8 : i32
    %325 = arith.index_cast %322 : i32 to index
    %c0_103 = arith.constant 0 : index
    %326 = vector.load %arg11[%325, %c0_103] : memref<64x256xf32, #tpu.memory_space<vmem>>, vector<8x256xf32>
    %327 = arith.index_cast %324 : i32 to index
    %c0_104 = arith.constant 0 : index
    %328 = vector.load %arg11[%327, %c0_104] : memref<64x256xf32, #tpu.memory_space<vmem>>, vector<8x256xf32>
    %329 = arith.select %18, %326, %328 : vector<8x256xi1>, vector<8x256xf32>
    %330 = arith.truncf %319 : vector<8x64xf32> to vector<8x64xbf16>
    %cst_105 = arith.constant dense<0.000000e+00> : vector<8x256xf32>
    %331 = tpu.matmul %330, %318, %cst_105 {dimension_numbers = #tpu.dot_dimension_numbers<[1], [0], [0], [1], [0, 0, 1, 1], [], []>} : vector<8x64xbf16>, vector<64x256xbf16>, vector<8x256xf32> -> vector<8x256xf32>
    %332 = arith.addf %329, %331 : vector<8x256xf32>
    %333 = vector.extract_strided_slice %332 {offsets = [0, 0], sizes = [8, 192], strides = [1, 1]} : vector<8x256xf32> to vector<8x192xf32>
    %334 = arith.negf %333 : vector<8x192xf32>
    %335 = math.exp %334 : vector<8x192xf32>
    %cst_106 = arith.constant 1.000000e+00 : f32
    %336 = vector.broadcast %cst_106 : f32 to vector<8x192xf32>
    %337 = arith.addf %336, %335 : vector<8x192xf32>
    %338 = arith.divf %336, %337 : vector<8x192xf32>
    %339 = vector.extract_strided_slice %332 {offsets = [0, 192], sizes = [8, 64], strides = [1, 1]} : vector<8x256xf32> to vector<8x64xf32>
    %340 = math.tanh %339 : vector<8x64xf32>
    %341 = vector.extract_strided_slice %338 {offsets = [0, 0], sizes = [8, 64], strides = [1, 1]} : vector<8x192xf32> to vector<8x64xf32>
    %342 = vector.extract_strided_slice %338 {offsets = [0, 64], sizes = [8, 64], strides = [1, 1]} : vector<8x192xf32> to vector<8x64xf32>
    %343 = vector.extract_strided_slice %338 {offsets = [0, 128], sizes = [8, 64], strides = [1, 1]} : vector<8x192xf32> to vector<8x64xf32>
    %344 = arith.mulf %342, %319 : vector<8x64xf32>
    %345 = arith.mulf %341, %340 : vector<8x64xf32>
    %346 = arith.addf %344, %345 : vector<8x64xf32>
    %347 = math.tanh %346 : vector<8x64xf32>
    %348 = arith.mulf %343, %347 : vector<8x64xf32>
    %349 = vector.extract_strided_slice %348 {offsets = [0, 0], sizes = [8, 32], strides = [1, 1]} : vector<8x64xf32> to vector<8x32xf32>
    %350 = arith.index_cast %322 : i32 to index
    %c0_107 = arith.constant 0 : index
    %351 = vector.load %arg12[%350, %c0_107] : memref<64x64xf32, #tpu.memory_space<vmem>>, vector<8x32xf32>
    tpu.vector_store %arg12[%350, %c0_107], %349 {strides = array<i32>} : memref<64x64xf32, #tpu.memory_space<vmem>>, vector<8x32xf32>,
    %352 = vector.extract_strided_slice %348 {offsets = [0, 32], sizes = [8, 32], strides = [1, 1]} : vector<8x64xf32> to vector<8x32xf32>
    %353 = arith.index_cast %324 : i32 to index
    %c32_108 = arith.constant 32 : index
    %354 = vector.load %arg12[%353, %c32_108] : memref<64x64xf32, #tpu.memory_space<vmem>>, vector<8x32xf32>
    tpu.vector_store %arg12[%353, %c32_108], %352 {strides = array<i32>} : memref<64x64xf32, #tpu.memory_space<vmem>>, vector<8x32xf32>,
    %c1_i32_109 = arith.constant 1 : i32
    %c7_i32_110 = arith.constant 7 : i32
    %355 = arith.subi %c7_i32_110, %c1_i32_109 : i32
    %c8_i32_111 = arith.constant 8 : i32
    %356 = arith.muli %c1_i32_109, %c8_i32_111 : i32
    %357 = tpu.assume_multiple %356, 8 : i32
    %c8_i32_112 = arith.constant 8 : i32
    %358 = arith.muli %355, %c8_i32_112 : i32
    %359 = tpu.assume_multiple %358, 8 : i32
    %360 = arith.index_cast %357 : i32 to index
    %c0_113 = arith.constant 0 : index
    %361 = vector.load %arg11[%360, %c0_113] : memref<64x256xf32, #tpu.memory_space<vmem>>, vector<8x256xf32>
    %362 = arith.index_cast %359 : i32 to index
    %c0_114 = arith.constant 0 : index
    %363 = vector.load %arg11[%362, %c0_114] : memref<64x256xf32, #tpu.memory_space<vmem>>, vector<8x256xf32>
    %364 = arith.select %18, %361, %363 : vector<8x256xi1>, vector<8x256xf32>
    %365 = arith.truncf %348 : vector<8x64xf32> to vector<8x64xbf16>
    %cst_115 = arith.constant dense<0.000000e+00> : vector<8x256xf32>
    %366 = tpu.matmul %365, %318, %cst_115 {dimension_numbers = #tpu.dot_dimension_numbers<[1], [0], [0], [1], [0, 0, 1, 1], [], []>} : vector<8x64xbf16>, vector<64x256xbf16>, vector<8x256xf32> -> vector<8x256xf32>
    %367 = arith.addf %364, %366 : vector<8x256xf32>
    %368 = vector.extract_strided_slice %367 {offsets = [0, 0], sizes = [8, 192], strides = [1, 1]} : vector<8x256xf32> to vector<8x192xf32>
    %369 = arith.negf %368 : vector<8x192xf32>
    %370 = math.exp %369 : vector<8x192xf32>
    %cst_116 = arith.constant 1.000000e+00 : f32
    %371 = vector.broadcast %cst_116 : f32 to vector<8x192xf32>
    %372 = arith.addf %371, %370 : vector<8x192xf32>
    %373 = arith.divf %371, %372 : vector<8x192xf32>
    %374 = vector.extract_strided_slice %367 {offsets = [0, 192], sizes = [8, 64], strides = [1, 1]} : vector<8x256xf32> to vector<8x64xf32>
    %375 = math.tanh %374 : vector<8x64xf32>
    %376 = vector.extract_strided_slice %373 {offsets = [0, 0], sizes = [8, 64], strides = [1, 1]} : vector<8x192xf32> to vector<8x64xf32>
    %377 = vector.extract_strided_slice %373 {offsets = [0, 64], sizes = [8, 64], strides = [1, 1]} : vector<8x192xf32> to vector<8x64xf32>
    %378 = vector.extract_strided_slice %373 {offsets = [0, 128], sizes = [8, 64], strides = [1, 1]} : vector<8x192xf32> to vector<8x64xf32>
    %379 = arith.mulf %377, %346 : vector<8x64xf32>
    %380 = arith.mulf %376, %375 : vector<8x64xf32>
    %381 = arith.addf %379, %380 : vector<8x64xf32>
    %382 = math.tanh %381 : vector<8x64xf32>
    %383 = arith.mulf %378, %382 : vector<8x64xf32>
    %384 = vector.extract_strided_slice %383 {offsets = [0, 0], sizes = [8, 32], strides = [1, 1]} : vector<8x64xf32> to vector<8x32xf32>
    %385 = arith.index_cast %357 : i32 to index
    %c0_117 = arith.constant 0 : index
    %386 = vector.load %arg12[%385, %c0_117] : memref<64x64xf32, #tpu.memory_space<vmem>>, vector<8x32xf32>
    tpu.vector_store %arg12[%385, %c0_117], %384 {strides = array<i32>} : memref<64x64xf32, #tpu.memory_space<vmem>>, vector<8x32xf32>,
    %387 = vector.extract_strided_slice %383 {offsets = [0, 32], sizes = [8, 32], strides = [1, 1]} : vector<8x64xf32> to vector<8x32xf32>
    %388 = arith.index_cast %359 : i32 to index
    %c32_118 = arith.constant 32 : index
    %389 = vector.load %arg12[%388, %c32_118] : memref<64x64xf32, #tpu.memory_space<vmem>>, vector<8x32xf32>
    tpu.vector_store %arg12[%388, %c32_118], %387 {strides = array<i32>} : memref<64x64xf32, #tpu.memory_space<vmem>>, vector<8x32xf32>,
    %c2_i32_119 = arith.constant 2 : i32
    %c7_i32_120 = arith.constant 7 : i32
    %390 = arith.subi %c7_i32_120, %c2_i32_119 : i32
    %c8_i32_121 = arith.constant 8 : i32
    %391 = arith.muli %c2_i32_119, %c8_i32_121 : i32
    %392 = tpu.assume_multiple %391, 8 : i32
    %c8_i32_122 = arith.constant 8 : i32
    %393 = arith.muli %390, %c8_i32_122 : i32
    %394 = tpu.assume_multiple %393, 8 : i32
    %395 = arith.index_cast %392 : i32 to index
    %c0_123 = arith.constant 0 : index
    %396 = vector.load %arg11[%395, %c0_123] : memref<64x256xf32, #tpu.memory_space<vmem>>, vector<8x256xf32>
    %397 = arith.index_cast %394 : i32 to index
    %c0_124 = arith.constant 0 : index
    %398 = vector.load %arg11[%397, %c0_124] : memref<64x256xf32, #tpu.memory_space<vmem>>, vector<8x256xf32>
    %399 = arith.select %18, %396, %398 : vector<8x256xi1>, vector<8x256xf32>
    %400 = arith.truncf %383 : vector<8x64xf32> to vector<8x64xbf16>
    %cst_125 = arith.constant dense<0.000000e+00> : vector<8x256xf32>
    %401 = tpu.matmul %400, %318, %cst_125 {dimension_numbers = #tpu.dot_dimension_numbers<[1], [0], [0], [1], [0, 0, 1, 1], [], []>} : vector<8x64xbf16>, vector<64x256xbf16>, vector<8x256xf32> -> vector<8x256xf32>
    %402 = arith.addf %399, %401 : vector<8x256xf32>
    %403 = vector.extract_strided_slice %402 {offsets = [0, 0], sizes = [8, 192], strides = [1, 1]} : vector<8x256xf32> to vector<8x192xf32>
    %404 = arith.negf %403 : vector<8x192xf32>
    %405 = math.exp %404 : vector<8x192xf32>
    %cst_126 = arith.constant 1.000000e+00 : f32
    %406 = vector.broadcast %cst_126 : f32 to vector<8x192xf32>
    %407 = arith.addf %406, %405 : vector<8x192xf32>
    %408 = arith.divf %406, %407 : vector<8x192xf32>
    %409 = vector.extract_strided_slice %402 {offsets = [0, 192], sizes = [8, 64], strides = [1, 1]} : vector<8x256xf32> to vector<8x64xf32>
    %410 = math.tanh %409 : vector<8x64xf32>
    %411 = vector.extract_strided_slice %408 {offsets = [0, 0], sizes = [8, 64], strides = [1, 1]} : vector<8x192xf32> to vector<8x64xf32>
    %412 = vector.extract_strided_slice %408 {offsets = [0, 64], sizes = [8, 64], strides = [1, 1]} : vector<8x192xf32> to vector<8x64xf32>
    %413 = vector.extract_strided_slice %408 {offsets = [0, 128], sizes = [8, 64], strides = [1, 1]} : vector<8x192xf32> to vector<8x64xf32>
    %414 = arith.mulf %412, %381 : vector<8x64xf32>
    %415 = arith.mulf %411, %410 : vector<8x64xf32>
    %416 = arith.addf %414, %415 : vector<8x64xf32>
    %417 = math.tanh %416 : vector<8x64xf32>
    %418 = arith.mulf %413, %417 : vector<8x64xf32>
    %419 = vector.extract_strided_slice %418 {offsets = [0, 0], sizes = [8, 32], strides = [1, 1]} : vector<8x64xf32> to vector<8x32xf32>
    %420 = arith.index_cast %392 : i32 to index
    %c0_127 = arith.constant 0 : index
    %421 = vector.load %arg12[%420, %c0_127] : memref<64x64xf32, #tpu.memory_space<vmem>>, vector<8x32xf32>
    tpu.vector_store %arg12[%420, %c0_127], %419 {strides = array<i32>} : memref<64x64xf32, #tpu.memory_space<vmem>>, vector<8x32xf32>,
    %422 = vector.extract_strided_slice %418 {offsets = [0, 32], sizes = [8, 32], strides = [1, 1]} : vector<8x64xf32> to vector<8x32xf32>
    %423 = arith.index_cast %394 : i32 to index
    %c32_128 = arith.constant 32 : index
    %424 = vector.load %arg12[%423, %c32_128] : memref<64x64xf32, #tpu.memory_space<vmem>>, vector<8x32xf32>
    tpu.vector_store %arg12[%423, %c32_128], %422 {strides = array<i32>} : memref<64x64xf32, #tpu.memory_space<vmem>>, vector<8x32xf32>,
    %c3_i32_129 = arith.constant 3 : i32
    %c7_i32_130 = arith.constant 7 : i32
    %425 = arith.subi %c7_i32_130, %c3_i32_129 : i32
    %c8_i32_131 = arith.constant 8 : i32
    %426 = arith.muli %c3_i32_129, %c8_i32_131 : i32
    %427 = tpu.assume_multiple %426, 8 : i32
    %c8_i32_132 = arith.constant 8 : i32
    %428 = arith.muli %425, %c8_i32_132 : i32
    %429 = tpu.assume_multiple %428, 8 : i32
    %430 = arith.index_cast %427 : i32 to index
    %c0_133 = arith.constant 0 : index
    %431 = vector.load %arg11[%430, %c0_133] : memref<64x256xf32, #tpu.memory_space<vmem>>, vector<8x256xf32>
    %432 = arith.index_cast %429 : i32 to index
    %c0_134 = arith.constant 0 : index
    %433 = vector.load %arg11[%432, %c0_134] : memref<64x256xf32, #tpu.memory_space<vmem>>, vector<8x256xf32>
    %434 = arith.select %18, %431, %433 : vector<8x256xi1>, vector<8x256xf32>
    %435 = arith.truncf %418 : vector<8x64xf32> to vector<8x64xbf16>
    %cst_135 = arith.constant dense<0.000000e+00> : vector<8x256xf32>
    %436 = tpu.matmul %435, %318, %cst_135 {dimension_numbers = #tpu.dot_dimension_numbers<[1], [0], [0], [1], [0, 0, 1, 1], [], []>} : vector<8x64xbf16>, vector<64x256xbf16>, vector<8x256xf32> -> vector<8x256xf32>
    %437 = arith.addf %434, %436 : vector<8x256xf32>
    %438 = vector.extract_strided_slice %437 {offsets = [0, 0], sizes = [8, 192], strides = [1, 1]} : vector<8x256xf32> to vector<8x192xf32>
    %439 = arith.negf %438 : vector<8x192xf32>
    %440 = math.exp %439 : vector<8x192xf32>
    %cst_136 = arith.constant 1.000000e+00 : f32
    %441 = vector.broadcast %cst_136 : f32 to vector<8x192xf32>
    %442 = arith.addf %441, %440 : vector<8x192xf32>
    %443 = arith.divf %441, %442 : vector<8x192xf32>
    %444 = vector.extract_strided_slice %437 {offsets = [0, 192], sizes = [8, 64], strides = [1, 1]} : vector<8x256xf32> to vector<8x64xf32>
    %445 = math.tanh %444 : vector<8x64xf32>
    %446 = vector.extract_strided_slice %443 {offsets = [0, 0], sizes = [8, 64], strides = [1, 1]} : vector<8x192xf32> to vector<8x64xf32>
    %447 = vector.extract_strided_slice %443 {offsets = [0, 64], sizes = [8, 64], strides = [1, 1]} : vector<8x192xf32> to vector<8x64xf32>
    %448 = vector.extract_strided_slice %443 {offsets = [0, 128], sizes = [8, 64], strides = [1, 1]} : vector<8x192xf32> to vector<8x64xf32>
    %449 = arith.mulf %447, %416 : vector<8x64xf32>
    %450 = arith.mulf %446, %445 : vector<8x64xf32>
    %451 = arith.addf %449, %450 : vector<8x64xf32>
    %452 = math.tanh %451 : vector<8x64xf32>
    %453 = arith.mulf %448, %452 : vector<8x64xf32>
    %454 = vector.extract_strided_slice %453 {offsets = [0, 0], sizes = [8, 32], strides = [1, 1]} : vector<8x64xf32> to vector<8x32xf32>
    %455 = arith.index_cast %427 : i32 to index
    %c0_137 = arith.constant 0 : index
    %456 = vector.load %arg12[%455, %c0_137] : memref<64x64xf32, #tpu.memory_space<vmem>>, vector<8x32xf32>
    tpu.vector_store %arg12[%455, %c0_137], %454 {strides = array<i32>} : memref<64x64xf32, #tpu.memory_space<vmem>>, vector<8x32xf32>,
    %457 = vector.extract_strided_slice %453 {offsets = [0, 32], sizes = [8, 32], strides = [1, 1]} : vector<8x64xf32> to vector<8x32xf32>
    %458 = arith.index_cast %429 : i32 to index
    %c32_138 = arith.constant 32 : index
    %459 = vector.load %arg12[%458, %c32_138] : memref<64x64xf32, #tpu.memory_space<vmem>>, vector<8x32xf32>
    tpu.vector_store %arg12[%458, %c32_138], %457 {strides = array<i32>} : memref<64x64xf32, #tpu.memory_space<vmem>>, vector<8x32xf32>,
    %c4_i32_139 = arith.constant 4 : i32
    %c7_i32_140 = arith.constant 7 : i32
    %460 = arith.subi %c7_i32_140, %c4_i32_139 : i32
    %c8_i32_141 = arith.constant 8 : i32
    %461 = arith.muli %c4_i32_139, %c8_i32_141 : i32
    %462 = tpu.assume_multiple %461, 8 : i32
    %c8_i32_142 = arith.constant 8 : i32
    %463 = arith.muli %460, %c8_i32_142 : i32
    %464 = tpu.assume_multiple %463, 8 : i32
    %465 = arith.index_cast %462 : i32 to index
    %c0_143 = arith.constant 0 : index
    %466 = vector.load %arg11[%465, %c0_143] : memref<64x256xf32, #tpu.memory_space<vmem>>, vector<8x256xf32>
    %467 = arith.index_cast %464 : i32 to index
    %c0_144 = arith.constant 0 : index
    %468 = vector.load %arg11[%467, %c0_144] : memref<64x256xf32, #tpu.memory_space<vmem>>, vector<8x256xf32>
    %469 = arith.select %18, %466, %468 : vector<8x256xi1>, vector<8x256xf32>
    %470 = arith.truncf %453 : vector<8x64xf32> to vector<8x64xbf16>
    %cst_145 = arith.constant dense<0.000000e+00> : vector<8x256xf32>
    %471 = tpu.matmul %470, %318, %cst_145 {dimension_numbers = #tpu.dot_dimension_numbers<[1], [0], [0], [1], [0, 0, 1, 1], [], []>} : vector<8x64xbf16>, vector<64x256xbf16>, vector<8x256xf32> -> vector<8x256xf32>
    %472 = arith.addf %469, %471 : vector<8x256xf32>
    %473 = vector.extract_strided_slice %472 {offsets = [0, 0], sizes = [8, 192], strides = [1, 1]} : vector<8x256xf32> to vector<8x192xf32>
    %474 = arith.negf %473 : vector<8x192xf32>
    %475 = math.exp %474 : vector<8x192xf32>
    %cst_146 = arith.constant 1.000000e+00 : f32
    %476 = vector.broadcast %cst_146 : f32 to vector<8x192xf32>
    %477 = arith.addf %476, %475 : vector<8x192xf32>
    %478 = arith.divf %476, %477 : vector<8x192xf32>
    %479 = vector.extract_strided_slice %472 {offsets = [0, 192], sizes = [8, 64], strides = [1, 1]} : vector<8x256xf32> to vector<8x64xf32>
    %480 = math.tanh %479 : vector<8x64xf32>
    %481 = vector.extract_strided_slice %478 {offsets = [0, 0], sizes = [8, 64], strides = [1, 1]} : vector<8x192xf32> to vector<8x64xf32>
    %482 = vector.extract_strided_slice %478 {offsets = [0, 64], sizes = [8, 64], strides = [1, 1]} : vector<8x192xf32> to vector<8x64xf32>
    %483 = vector.extract_strided_slice %478 {offsets = [0, 128], sizes = [8, 64], strides = [1, 1]} : vector<8x192xf32> to vector<8x64xf32>
    %484 = arith.mulf %482, %451 : vector<8x64xf32>
    %485 = arith.mulf %481, %480 : vector<8x64xf32>
    %486 = arith.addf %484, %485 : vector<8x64xf32>
    %487 = math.tanh %486 : vector<8x64xf32>
    %488 = arith.mulf %483, %487 : vector<8x64xf32>
    %489 = vector.extract_strided_slice %488 {offsets = [0, 0], sizes = [8, 32], strides = [1, 1]} : vector<8x64xf32> to vector<8x32xf32>
    %490 = arith.index_cast %462 : i32 to index
    %c0_147 = arith.constant 0 : index
    %491 = vector.load %arg12[%490, %c0_147] : memref<64x64xf32, #tpu.memory_space<vmem>>, vector<8x32xf32>
    tpu.vector_store %arg12[%490, %c0_147], %489 {strides = array<i32>} : memref<64x64xf32, #tpu.memory_space<vmem>>, vector<8x32xf32>,
    %492 = vector.extract_strided_slice %488 {offsets = [0, 32], sizes = [8, 32], strides = [1, 1]} : vector<8x64xf32> to vector<8x32xf32>
    %493 = arith.index_cast %464 : i32 to index
    %c32_148 = arith.constant 32 : index
    %494 = vector.load %arg12[%493, %c32_148] : memref<64x64xf32, #tpu.memory_space<vmem>>, vector<8x32xf32>
    tpu.vector_store %arg12[%493, %c32_148], %492 {strides = array<i32>} : memref<64x64xf32, #tpu.memory_space<vmem>>, vector<8x32xf32>,
    %c5_i32_149 = arith.constant 5 : i32
    %c7_i32_150 = arith.constant 7 : i32
    %495 = arith.subi %c7_i32_150, %c5_i32_149 : i32
    %c8_i32_151 = arith.constant 8 : i32
    %496 = arith.muli %c5_i32_149, %c8_i32_151 : i32
    %497 = tpu.assume_multiple %496, 8 : i32
    %c8_i32_152 = arith.constant 8 : i32
    %498 = arith.muli %495, %c8_i32_152 : i32
    %499 = tpu.assume_multiple %498, 8 : i32
    %500 = arith.index_cast %497 : i32 to index
    %c0_153 = arith.constant 0 : index
    %501 = vector.load %arg11[%500, %c0_153] : memref<64x256xf32, #tpu.memory_space<vmem>>, vector<8x256xf32>
    %502 = arith.index_cast %499 : i32 to index
    %c0_154 = arith.constant 0 : index
    %503 = vector.load %arg11[%502, %c0_154] : memref<64x256xf32, #tpu.memory_space<vmem>>, vector<8x256xf32>
    %504 = arith.select %18, %501, %503 : vector<8x256xi1>, vector<8x256xf32>
    %505 = arith.truncf %488 : vector<8x64xf32> to vector<8x64xbf16>
    %cst_155 = arith.constant dense<0.000000e+00> : vector<8x256xf32>
    %506 = tpu.matmul %505, %318, %cst_155 {dimension_numbers = #tpu.dot_dimension_numbers<[1], [0], [0], [1], [0, 0, 1, 1], [], []>} : vector<8x64xbf16>, vector<64x256xbf16>, vector<8x256xf32> -> vector<8x256xf32>
    %507 = arith.addf %504, %506 : vector<8x256xf32>
    %508 = vector.extract_strided_slice %507 {offsets = [0, 0], sizes = [8, 192], strides = [1, 1]} : vector<8x256xf32> to vector<8x192xf32>
    %509 = arith.negf %508 : vector<8x192xf32>
    %510 = math.exp %509 : vector<8x192xf32>
    %cst_156 = arith.constant 1.000000e+00 : f32
    %511 = vector.broadcast %cst_156 : f32 to vector<8x192xf32>
    %512 = arith.addf %511, %510 : vector<8x192xf32>
    %513 = arith.divf %511, %512 : vector<8x192xf32>
    %514 = vector.extract_strided_slice %507 {offsets = [0, 192], sizes = [8, 64], strides = [1, 1]} : vector<8x256xf32> to vector<8x64xf32>
    %515 = math.tanh %514 : vector<8x64xf32>
    %516 = vector.extract_strided_slice %513 {offsets = [0, 0], sizes = [8, 64], strides = [1, 1]} : vector<8x192xf32> to vector<8x64xf32>
    %517 = vector.extract_strided_slice %513 {offsets = [0, 64], sizes = [8, 64], strides = [1, 1]} : vector<8x192xf32> to vector<8x64xf32>
    %518 = vector.extract_strided_slice %513 {offsets = [0, 128], sizes = [8, 64], strides = [1, 1]} : vector<8x192xf32> to vector<8x64xf32>
    %519 = arith.mulf %517, %486 : vector<8x64xf32>
    %520 = arith.mulf %516, %515 : vector<8x64xf32>
    %521 = arith.addf %519, %520 : vector<8x64xf32>
    %522 = math.tanh %521 : vector<8x64xf32>
    %523 = arith.mulf %518, %522 : vector<8x64xf32>
    %524 = vector.extract_strided_slice %523 {offsets = [0, 0], sizes = [8, 32], strides = [1, 1]} : vector<8x64xf32> to vector<8x32xf32>
    %525 = arith.index_cast %497 : i32 to index
    %c0_157 = arith.constant 0 : index
    %526 = vector.load %arg12[%525, %c0_157] : memref<64x64xf32, #tpu.memory_space<vmem>>, vector<8x32xf32>
    tpu.vector_store %arg12[%525, %c0_157], %524 {strides = array<i32>} : memref<64x64xf32, #tpu.memory_space<vmem>>, vector<8x32xf32>,
    %527 = vector.extract_strided_slice %523 {offsets = [0, 32], sizes = [8, 32], strides = [1, 1]} : vector<8x64xf32> to vector<8x32xf32>
    %528 = arith.index_cast %499 : i32 to index
    %c32_158 = arith.constant 32 : index
    %529 = vector.load %arg12[%528, %c32_158] : memref<64x64xf32, #tpu.memory_space<vmem>>, vector<8x32xf32>
    tpu.vector_store %arg12[%528, %c32_158], %527 {strides = array<i32>} : memref<64x64xf32, #tpu.memory_space<vmem>>, vector<8x32xf32>,
    %c6_i32_159 = arith.constant 6 : i32
    %c7_i32_160 = arith.constant 7 : i32
    %530 = arith.subi %c7_i32_160, %c6_i32_159 : i32
    %c8_i32_161 = arith.constant 8 : i32
    %531 = arith.muli %c6_i32_159, %c8_i32_161 : i32
    %532 = tpu.assume_multiple %531, 8 : i32
    %c8_i32_162 = arith.constant 8 : i32
    %533 = arith.muli %530, %c8_i32_162 : i32
    %534 = tpu.assume_multiple %533, 8 : i32
    %535 = arith.index_cast %532 : i32 to index
    %c0_163 = arith.constant 0 : index
    %536 = vector.load %arg11[%535, %c0_163] : memref<64x256xf32, #tpu.memory_space<vmem>>, vector<8x256xf32>
    %537 = arith.index_cast %534 : i32 to index
    %c0_164 = arith.constant 0 : index
    %538 = vector.load %arg11[%537, %c0_164] : memref<64x256xf32, #tpu.memory_space<vmem>>, vector<8x256xf32>
    %539 = arith.select %18, %536, %538 : vector<8x256xi1>, vector<8x256xf32>
    %540 = arith.truncf %523 : vector<8x64xf32> to vector<8x64xbf16>
    %cst_165 = arith.constant dense<0.000000e+00> : vector<8x256xf32>
    %541 = tpu.matmul %540, %318, %cst_165 {dimension_numbers = #tpu.dot_dimension_numbers<[1], [0], [0], [1], [0, 0, 1, 1], [], []>} : vector<8x64xbf16>, vector<64x256xbf16>, vector<8x256xf32> -> vector<8x256xf32>
    %542 = arith.addf %539, %541 : vector<8x256xf32>
    %543 = vector.extract_strided_slice %542 {offsets = [0, 0], sizes = [8, 192], strides = [1, 1]} : vector<8x256xf32> to vector<8x192xf32>
    %544 = arith.negf %543 : vector<8x192xf32>
    %545 = math.exp %544 : vector<8x192xf32>
    %cst_166 = arith.constant 1.000000e+00 : f32
    %546 = vector.broadcast %cst_166 : f32 to vector<8x192xf32>
    %547 = arith.addf %546, %545 : vector<8x192xf32>
    %548 = arith.divf %546, %547 : vector<8x192xf32>
    %549 = vector.extract_strided_slice %542 {offsets = [0, 192], sizes = [8, 64], strides = [1, 1]} : vector<8x256xf32> to vector<8x64xf32>
    %550 = math.tanh %549 : vector<8x64xf32>
    %551 = vector.extract_strided_slice %548 {offsets = [0, 0], sizes = [8, 64], strides = [1, 1]} : vector<8x192xf32> to vector<8x64xf32>
    %552 = vector.extract_strided_slice %548 {offsets = [0, 64], sizes = [8, 64], strides = [1, 1]} : vector<8x192xf32> to vector<8x64xf32>
    %553 = vector.extract_strided_slice %548 {offsets = [0, 128], sizes = [8, 64], strides = [1, 1]} : vector<8x192xf32> to vector<8x64xf32>
    %554 = arith.mulf %552, %521 : vector<8x64xf32>
    %555 = arith.mulf %551, %550 : vector<8x64xf32>
    %556 = arith.addf %554, %555 : vector<8x64xf32>
    %557 = math.tanh %556 : vector<8x64xf32>
    %558 = arith.mulf %553, %557 : vector<8x64xf32>
    %559 = vector.extract_strided_slice %558 {offsets = [0, 0], sizes = [8, 32], strides = [1, 1]} : vector<8x64xf32> to vector<8x32xf32>
    %560 = arith.index_cast %532 : i32 to index
    %c0_167 = arith.constant 0 : index
    %561 = vector.load %arg12[%560, %c0_167] : memref<64x64xf32, #tpu.memory_space<vmem>>, vector<8x32xf32>
    tpu.vector_store %arg12[%560, %c0_167], %559 {strides = array<i32>} : memref<64x64xf32, #tpu.memory_space<vmem>>, vector<8x32xf32>,
    %562 = vector.extract_strided_slice %558 {offsets = [0, 32], sizes = [8, 32], strides = [1, 1]} : vector<8x64xf32> to vector<8x32xf32>
    %563 = arith.index_cast %534 : i32 to index
    %c32_168 = arith.constant 32 : index
    %564 = vector.load %arg12[%563, %c32_168] : memref<64x64xf32, #tpu.memory_space<vmem>>, vector<8x32xf32>
    tpu.vector_store %arg12[%563, %c32_168], %562 {strides = array<i32>} : memref<64x64xf32, #tpu.memory_space<vmem>>, vector<8x32xf32>,
    %c7_i32_169 = arith.constant 7 : i32
    %c7_i32_170 = arith.constant 7 : i32
    %565 = arith.subi %c7_i32_170, %c7_i32_169 : i32
    %c8_i32_171 = arith.constant 8 : i32
    %566 = arith.muli %c7_i32_169, %c8_i32_171 : i32
    %567 = tpu.assume_multiple %566, 8 : i32
    %c8_i32_172 = arith.constant 8 : i32
    %568 = arith.muli %565, %c8_i32_172 : i32
    %569 = tpu.assume_multiple %568, 8 : i32
    %570 = arith.index_cast %567 : i32 to index
    %c0_173 = arith.constant 0 : index
    %571 = vector.load %arg11[%570, %c0_173] : memref<64x256xf32, #tpu.memory_space<vmem>>, vector<8x256xf32>
    %572 = arith.index_cast %569 : i32 to index
    %c0_174 = arith.constant 0 : index
    %573 = vector.load %arg11[%572, %c0_174] : memref<64x256xf32, #tpu.memory_space<vmem>>, vector<8x256xf32>
    %574 = arith.select %18, %571, %573 : vector<8x256xi1>, vector<8x256xf32>
    %575 = arith.truncf %558 : vector<8x64xf32> to vector<8x64xbf16>
    %cst_175 = arith.constant dense<0.000000e+00> : vector<8x256xf32>
    %576 = tpu.matmul %575, %318, %cst_175 {dimension_numbers = #tpu.dot_dimension_numbers<[1], [0], [0], [1], [0, 0, 1, 1], [], []>} : vector<8x64xbf16>, vector<64x256xbf16>, vector<8x256xf32> -> vector<8x256xf32>
    %577 = arith.addf %574, %576 : vector<8x256xf32>
    %578 = vector.extract_strided_slice %577 {offsets = [0, 0], sizes = [8, 192], strides = [1, 1]} : vector<8x256xf32> to vector<8x192xf32>
    %579 = arith.negf %578 : vector<8x192xf32>
    %580 = math.exp %579 : vector<8x192xf32>
    %cst_176 = arith.constant 1.000000e+00 : f32
    %581 = vector.broadcast %cst_176 : f32 to vector<8x192xf32>
    %582 = arith.addf %581, %580 : vector<8x192xf32>
    %583 = arith.divf %581, %582 : vector<8x192xf32>
    %584 = vector.extract_strided_slice %577 {offsets = [0, 192], sizes = [8, 64], strides = [1, 1]} : vector<8x256xf32> to vector<8x64xf32>
    %585 = math.tanh %584 : vector<8x64xf32>
    %586 = vector.extract_strided_slice %583 {offsets = [0, 0], sizes = [8, 64], strides = [1, 1]} : vector<8x192xf32> to vector<8x64xf32>
    %587 = vector.extract_strided_slice %583 {offsets = [0, 64], sizes = [8, 64], strides = [1, 1]} : vector<8x192xf32> to vector<8x64xf32>
    %588 = vector.extract_strided_slice %583 {offsets = [0, 128], sizes = [8, 64], strides = [1, 1]} : vector<8x192xf32> to vector<8x64xf32>
    %589 = arith.mulf %587, %556 : vector<8x64xf32>
    %590 = arith.mulf %586, %585 : vector<8x64xf32>
    %591 = arith.addf %589, %590 : vector<8x64xf32>
    %592 = math.tanh %591 : vector<8x64xf32>
    %593 = arith.mulf %588, %592 : vector<8x64xf32>
    %594 = vector.extract_strided_slice %593 {offsets = [0, 0], sizes = [8, 32], strides = [1, 1]} : vector<8x64xf32> to vector<8x32xf32>
    %595 = arith.index_cast %567 : i32 to index
    %c0_177 = arith.constant 0 : index
    %596 = vector.load %arg12[%595, %c0_177] : memref<64x64xf32, #tpu.memory_space<vmem>>, vector<8x32xf32>
    tpu.vector_store %arg12[%595, %c0_177], %594 {strides = array<i32>} : memref<64x64xf32, #tpu.memory_space<vmem>>, vector<8x32xf32>,
    %597 = vector.extract_strided_slice %593 {offsets = [0, 32], sizes = [8, 32], strides = [1, 1]} : vector<8x64xf32> to vector<8x32xf32>
    %598 = arith.index_cast %569 : i32 to index
    %c32_178 = arith.constant 32 : index
    %599 = vector.load %arg12[%598, %c32_178] : memref<64x64xf32, #tpu.memory_space<vmem>>, vector<8x32xf32>
    tpu.vector_store %arg12[%598, %c32_178], %597 {strides = array<i32>} : memref<64x64xf32, #tpu.memory_space<vmem>>, vector<8x32xf32>,
    %c8_i32_179 = arith.constant 8 : i32
    %c0_180 = arith.constant 0 : index
    %c0_181 = arith.constant 0 : index
    %600 = vector.load %arg12[%c0_180, %c0_181] : memref<64x64xf32, #tpu.memory_space<vmem>>, vector<64x64xf32>
    %cst_182 = arith.constant 0.000000e+00 : f32
    %601 = vector.broadcast %cst_182 : f32 to vector<64x64xf32>
    %602 = arith.maximumf %600, %601 : vector<64x64xf32>
    %c0_183 = arith.constant 0 : index
    %c0_184 = arith.constant 0 : index
    %603 = vector.load %arg8[%c0_183, %c0_184] : memref<1x64xf32, #tpu.memory_space<vmem>>, vector<1x64xf32>
    %604 = vector.broadcast %603 : vector<1x64xf32> to vector<64x64xf32>
    %605 = arith.mulf %602, %604 : vector<64x64xf32>
    %cst_185 = arith.constant dense<0.000000e+00> : vector<64xf32>
    %606 = vector.multi_reduction <add>, %605, %cst_185 [1] : vector<64x64xf32> to vector<64xf32>
    %607 = vector.shape_cast %606 : vector<64xf32> to vector<64x1xf32>
    %c0_186 = arith.constant 0 : index
    %c0_187 = arith.constant 0 : index
    %608 = vector.load %arg9[%c0_186, %c0_187] : memref<1x1xf32, #tpu.memory_space<vmem>>, vector<1x1xf32>
    %609 = vector.broadcast %608 : vector<1x1xf32> to vector<64x1xf32>
    %610 = arith.addf %607, %609 : vector<64x1xf32>
    %c0_188 = arith.constant 0 : index
    %c0_189 = arith.constant 0 : index
    %c0_190 = arith.constant 0 : index
    %611 = vector.load %arg10[%c0_188, %c0_189, %c0_190] : memref<1x64x1xf32, #tpu.memory_space<vmem>>, vector<1x64x1xf32>
    %612 = vector.shape_cast %611 : vector<1x64x1xf32> to vector<64x1xf32>
    %613 = vector.shape_cast %610 : vector<64x1xf32> to vector<1x64x1xf32>
    tpu.vector_store %arg10[%c0_188, %c0_189, %c0_190], %613 {strides = array<i32>} : memref<1x64x1xf32, #tpu.memory_space<vmem>>, vector<1x64x1xf32>,
    return
  }
  func.func @transform_0(%arg0: i32) -> (i32, i32, i32) {
    %c0_i32 = arith.constant 0 : i32
    %c0_i32_0 = arith.constant 0 : i32
    %c0_i32_1 = arith.constant 0 : i32
    return %arg0, %c0_i32, %c0_i32_0 : i32, i32, i32
  }
  func.func @transform_1(%arg0: i32) -> (i32, i32) {
    %c0_i32 = arith.constant 0 : i32
    %c0_i32_0 = arith.constant 0 : i32
    %c0_i32_1 = arith.constant 0 : i32
    return %c0_i32, %c0_i32_0 : i32, i32
  }
  func.func @transform_2(%arg0: i32) -> (i32, i32) {
    %c0_i32 = arith.constant 0 : i32
    %c0_i32_0 = arith.constant 0 : i32
    %c0_i32_1 = arith.constant 0 : i32
    return %c0_i32, %c0_i32_0 : i32, i32
  }
  func.func @transform_3(%arg0: i32) -> (i32, i32) {
    %c0_i32 = arith.constant 0 : i32
    %c0_i32_0 = arith.constant 0 : i32
    %c0_i32_1 = arith.constant 0 : i32
    return %c0_i32, %c0_i32_0 : i32, i32
  }
  func.func @transform_4(%arg0: i32) -> (i32, i32) {
    %c0_i32 = arith.constant 0 : i32
    %c0_i32_0 = arith.constant 0 : i32
    %c0_i32_1 = arith.constant 0 : i32
    return %c0_i32, %c0_i32_0 : i32, i32
  }
  func.func @transform_5(%arg0: i32) -> (i32, i32) {
    %c0_i32 = arith.constant 0 : i32
    %c0_i32_0 = arith.constant 0 : i32
    %c0_i32_1 = arith.constant 0 : i32
    return %c0_i32, %c0_i32_0 : i32, i32
  }
  func.func @transform_6(%arg0: i32) -> (i32, i32) {
    %c0_i32 = arith.constant 0 : i32
    %c0_i32_0 = arith.constant 0 : i32
    %c0_i32_1 = arith.constant 0 : i32
    return %c0_i32, %c0_i32_0 : i32, i32
  }
  func.func @transform_7(%arg0: i32) -> (i32, i32) {
    %c0_i32 = arith.constant 0 : i32
    %c0_i32_0 = arith.constant 0 : i32
    %c0_i32_1 = arith.constant 0 : i32
    return %c0_i32, %c0_i32_0 : i32, i32
  }
  func.func @transform_8(%arg0: i32) -> (i32, i32) {
    %c0_i32 = arith.constant 0 : i32
    %c0_i32_0 = arith.constant 0 : i32
    %c0_i32_1 = arith.constant 0 : i32
    return %c0_i32, %c0_i32_0 : i32, i32
  }
  func.func @transform_9(%arg0: i32) -> (i32, i32, i32) {
    %c0_i32 = arith.constant 0 : i32
    %c0_i32_0 = arith.constant 0 : i32
    %c0_i32_1 = arith.constant 0 : i32
    return %arg0, %c0_i32, %c0_i32_0 : i32, i32, i32
  }
}

</mosaic_0001>

<llo_original>
// kernel: map_lai_forward.1
$region0: #{map_lai_forward.1}
  #allocation0 [shape = 'u32[]', space=smem, size = 0x4, offset = 0x4, fixed_abs, tag = 'smem constant byte address 0x4 - core index']
  #allocation1 [shape = 'u32[72,128]{1,0:T(1,128)}', space=vmem, size = 0x9000, scoped, tag = 'internal scratch']
  #allocation2 [shape = 'f32[64,256]{1,0:T(8,128)}', space=vmem, size = 0x10000, scoped, tag = 'scratch operand']
  #allocation3 [shape = 'f32[64,64]{1,0:T(8,128)}', space=vmem, size = 0x8000, scoped, tag = 'scratch operand']
  #allocation4 [shape = 'f32[1,1]{1,0:T(1,128)S(1)}', space=vmem, size = 0x200, scoped, tag = 'scoped memory for map_lai_forward.1']
  %s0 = inlined_call_operand.vmem [shape: f32[1,64,4], index: 0, kind: input, shape index: {}]
  %s1 = inlined_call_operand.vmem [shape: bf16[4,256], index: 1, kind: input, shape index: {}]
  %s2 = inlined_call_operand.vmem [shape: bf16[64,256], index: 2, kind: input, shape index: {}]
  %s3 = inlined_call_operand.vmem [shape: f32[1,256], index: 3, kind: input, shape index: {}]
  %s4 = inlined_call_operand.vmem [shape: bf16[64,256], index: 4, kind: input, shape index: {}]
  %s5 = inlined_call_operand.hbm [shape: bf16[64,256], index: 5, kind: input, shape index: {}]
  %s6 = inlined_call_operand.vmem [shape: f32[1,256], index: 6, kind: input, shape index: {}]
  %s7 = inlined_call_operand.vmem [shape: f32[1,64], index: 7, kind: input, shape index: {}]
  %s8 = inlined_call_operand.<no memory space> [shape: f32[1,1], index: 8, kind: input, shape index: {}]
  %s9 = inlined_call_operand.vmem [shape: f32[1,64,1], index: 9, kind: output, shape index: {}]
  %s10 = sld [smem:[#allocation0]]
  $region50: #{map_lai_forward.1} parent=0
    _
  %s12 = ssub.s32 1, %s10
  %s13 = scalar_select 0, %s12, %s10
  %v14 = vstv %s8
  %15 = vst [vmem:[#allocation4] sm:$0x1] %v14
  $region1: #{map_lai_forward.1} parent=0
    #allocation5 [shape = 'u8[32768]{0}', space=vmem, size = 0x8000, scoped, tag = 'input window, operand 5, single buffered']
    #allocation6 [shape = 's32[1]{0}', space=sflag, size = 0x4, scoped, tag = 'scoped memory for map_lai_forward.1']
    %16 = vsyncpa [#allocation6], 0
    // Predicated region
    $region2: #{map_lai_forward.1} parent=1 // pred_check
      _
    $region3: #{map_lai_forward.1} parent=1 // pred_check_branch
      %18 = sbr.rel (0) target = $region5
    $region4: #{map_lai_forward.1} parent=1 // pred_region
      _
    $region5: #{map_lai_forward.1} parent=1 // pred_fallthru
      _
    // Predicated region
    $region6: #{map_lai_forward.1} parent=1 // pred_check
      _
    $region7: #{map_lai_forward.1} parent=1 // pred_check_branch
      %20 = sbr.rel (0) target = $region9
    $region8: #{map_lai_forward.1} parent=1 // pred_region
      _
    $region9: #{map_lai_forward.1} parent=1 // pred_fallthru
      _
    // Predicated region
    $region10: #{map_lai_forward.1} parent=1 // pred_check
      _
    $region11: #{map_lai_forward.1} parent=1 // pred_check_branch
      %22 = sbr.rel (0) target = $region13
    $region12: #{map_lai_forward.1} parent=1 // pred_region
      _
    $region13: #{map_lai_forward.1} parent=1 // pred_fallthru
      _
    // Predicated region
    $region14: #{map_lai_forward.1} parent=1 // pred_check
      _
    $region15: #{map_lai_forward.1} parent=1 // pred_check_branch
      %24 = sbr.rel (0) target = $region17
    $region16: #{map_lai_forward.1} parent=1 // pred_region
      _
    $region17: #{map_lai_forward.1} parent=1 // pred_fallthru
      _
    // Predicated region
    $region18: #{map_lai_forward.1} parent=1 // pred_check
      _
    $region19: #{map_lai_forward.1} parent=1 // pred_check_branch
      %26 = sbr.rel (0) target = $region21
    $region20: #{map_lai_forward.1} parent=1 // pred_region
      _
    $region21: #{map_lai_forward.1} parent=1 // pred_fallthru
      _
    // Predicated region
    $region22: #{map_lai_forward.1} parent=1 // pred_check
      _
    $region23: #{map_lai_forward.1} parent=1 // pred_check_branch
      %28 = sbr.rel (0) target = $region25
    $region24: #{map_lai_forward.1} parent=1 // pred_region
      %30 = vsyncadd [#allocation6], 0
      %s31 = sshll.u32 %s5, 4
      %s32 = int_to_ptr.hbm [resolvable:$true] %s31
      %s33 = sshll.u32 [#allocation5], 4
      %s34 = int_to_ptr.vmem [resolvable:$true] %s33
      %39 = dma.hbm_to_vmem [thread:$0]  %s32, 1024, %s34, [#allocation6], 128, 128, 8
    $region25: #{map_lai_forward.1} parent=1 // pred_fallthru
      _
    // Predicated region
    $region26: #{map_lai_forward.1} parent=1 // pred_check
      _
    $region27: #{map_lai_forward.1} parent=1 // pred_check_branch
      %41 = sbr.rel (0) target = $region29
    $region28: #{map_lai_forward.1} parent=1 // pred_region
      _
    $region29: #{map_lai_forward.1} parent=1 // pred_fallthru
      _
    // Predicated region
    $region30: #{map_lai_forward.1} parent=1 // pred_check
      _
    $region31: #{map_lai_forward.1} parent=1 // pred_check_branch
      %43 = sbr.rel (0) target = $region33
    $region32: #{map_lai_forward.1} parent=1 // pred_region
      _
    $region33: #{map_lai_forward.1} parent=1 // pred_fallthru
      _
    // Predicated region
    $region34: #{map_lai_forward.1} parent=1 // pred_check
      _
    $region35: #{map_lai_forward.1} parent=1 // pred_check_branch
      %45 = sbr.rel (0) target = $region37
    $region36: #{map_lai_forward.1} parent=1 // pred_region
      _
    $region37: #{map_lai_forward.1} parent=1 // pred_fallthru
      _
    // Predicated region
    $region38: #{map_lai_forward.1} parent=1 // pred_check
      _
    $region39: #{map_lai_forward.1} parent=1 // pred_check_branch
      %47 = sbr.rel (0) target = $region41
    $region40: #{map_lai_forward.1} parent=1 // pred_region
      %49 = dma.done [#allocation6], 1024
    $region41: #{map_lai_forward.1} parent=1 // pred_fallthru
      _
    %v51 = vlaneseq
    %v52 = vand.u32 %v51, 127
    %v53 = vadd.s32 %v52, 128
    %vm54 = vcmp.lt.s32.totalorder %v52, 0
    %v55 = vsub.s32 0, %v52
    %v56 = vsel %vm54, %v55, %v52
    %v57 = vshrl.u32 %v56, 6
    %v58 = vand.u32 %v56, 63
    %v59 = vsub.s32 0, %v58
    %v60 = vsel %vm54, %v59, %v58
    %vm61 = vcmp.lt.s32.totalorder %v53, 0
    %v62 = vsub.s32 0, %v53
    %v63 = vsel %vm61, %v62, %v53
    %v64 = vshrl.u32 %v63, 6
    %v65 = vand.u32 %v63, 63
    %v66 = vsub.s32 0, %v65
    %v67 = vsel %vm61, %v66, %v65
    %vm68 = vcmp.ne.s32.totalorder %v60, 0
    %vm69 = vcmp.ne.s32.totalorder %v67, 0
    %vm70 = vcmp.lt.s32.totalorder %v60, 0
    %vm71 = vcmp.lt.s32.totalorder %v67, 0
    %vm72 = vmand %vm70, %vm68
    %vm73 = vmand %vm71, %vm69
    %v74 = vadd.s32 %v60, 64
    %v75 = vadd.s32 %v67, 64
    %v76 = vsel %vm72, %v74, %v60
    %v77 = vsel %vm73, %v75, %v67
    %vm78 = vcmp.lt.s32.totalorder %v76, 32
    %vm79 = vcmp.lt.s32.totalorder %v77, 32
    %v80 = vld [vmem:[%s0] sm:$0xff]
    %v81 = vld [vmem:[%s0 + $0x8] sm:$0xff]
    %v82 = vld [vmem:[%s0 + $0x10] sm:$0xff]
    %v83 = vld [vmem:[%s0 + $0x18] sm:$0xff]
    %v84 = vld [vmem:[%s0 + $0x20] sm:$0xff]
    %v85 = vld [vmem:[%s0 + $0x28] sm:$0xff]
    %v86 = vld [vmem:[%s0 + $0x30] sm:$0xff]
    %v87 = vld [vmem:[%s0 + $0x38] sm:$0xff]
    %v88 = vpack.c.bf16 %v81, %v80
    %v89 = vpack.c.bf16 %v83, %v82
    %v90 = vpack.c.bf16 %v85, %v84
    %v91 = vpack.c.bf16 %v87, %v86
    %v92 = vld [vmem:[%s1] sm:$0xf]
    %v93 = vld [vmem:[%s3] sm:$0x3]
    %v95 = vperm.slane %v93, 0
    %v96 = vperm.slane %v93, 1
    %100 = vst [vmem:[#allocation1] ss:$4 sm:$0xff] %v92
    %v101 = vld.sshfl [vmem:[#allocation1] sm:$0xff pattern:$0x73625140]
    %v102 = vld.sshfl [vmem:[#allocation1 + $0x8] sm:$0xff pattern:$0x73625140]
    %vm103 = vcmask 31744
    %v105 = vsel %vm103, %v88, 0
    %v108 = vsel %vm103, %v89, 0
    %v111 = vsel %vm103, %v90, 0
    %v114 = vsel %vm103, %v91, 0
    %vm116 = vcmask 1041408
    %v117 = vsel %vm116, %v101, 0
    %v119 = vsel %vm116, %v102, 0
    %121 = vmatpush.bf16.msra.mxu0 0
    %122 = vmatpush.bf16.msra.mxu0 0
    %123 = vmatpush.bf16.msra.mxu0 0
    %124 = vmatpush.bf16.msra.mxu0 0
    %125 = vmatpush.bf16.msra.mxu0 0
    %126 = vmatpush.bf16.msra.mxu0 0
    %127 = vmatpush.bf16.msra.mxu0 0
    %128 = vmatpush.bf16.msra.mxu0 %v117
    %129 = vmatmul.bf16.gmra.mxu0 %v105
    %v130 = vpop.f32.mrf.mxu0
    %v131 = vadd.f32 %v95, %v130
    %v132 = vpop.f32.mrf.mxu0
    %v133 = vadd.f32 %v95, %v132
    %134 = vmatmul.bf16.gmra.mxu0 %v108
    %v135 = vpop.f32.mrf.mxu0
    %v136 = vadd.f32 %v95, %v135
    %v137 = vpop.f32.mrf.mxu0
    %v138 = vadd.f32 %v95, %v137
    %139 = vmatmul.bf16.gmra.mxu0 %v111
    %v140 = vpop.f32.mrf.mxu0
    %v141 = vadd.f32 %v95, %v140
    %v142 = vpop.f32.mrf.mxu0
    %v143 = vadd.f32 %v95, %v142
    %144 = vmatmul.bf16.gmra.mxu0 %v114
    %v145 = vpop.f32.mrf.mxu0
    %v146 = vadd.f32 %v95, %v145
    %v147 = vpop.f32.mrf.mxu0
    %v148 = vadd.f32 %v95, %v147
    %149 = vdwg.mxu0
    %150 = vmatpush.bf16.msra.mxu0 0
    %151 = vmatpush.bf16.msra.mxu0 0
    %152 = vmatpush.bf16.msra.mxu0 0
    %153 = vmatpush.bf16.msra.mxu0 0
    %154 = vmatpush.bf16.msra.mxu0 0
    %155 = vmatpush.bf16.msra.mxu0 0
    %156 = vmatpush.bf16.msra.mxu0 0
    %157 = vmatpush.bf16.msra.mxu0 %v119
    %158 = vmatmul.bf16.gmra.mxu0 %v105
    %v159 = vpop.f32.mrf.mxu0
    %v160 = vadd.f32 %v96, %v159
    %v161 = vpop.f32.mrf.mxu0
    %v162 = vadd.f32 %v96, %v161
    %163 = vmatmul.bf16.gmra.mxu0 %v108
    %v164 = vpop.f32.mrf.mxu0
    %v165 = vadd.f32 %v96, %v164
    %v166 = vpop.f32.mrf.mxu0
    %v167 = vadd.f32 %v96, %v166
    %168 = vmatmul.bf16.gmra.mxu0 %v111
    %v169 = vpop.f32.mrf.mxu0
    %v170 = vadd.f32 %v96, %v169
    %v171 = vpop.f32.mrf.mxu0
    %v172 = vadd.f32 %v96, %v171
    %173 = vmatmul.bf16.gmra.mxu0 %v114
    %v174 = vpop.f32.mrf.mxu0
    %v175 = vadd.f32 %v96, %v174
    %v176 = vpop.f32.mrf.mxu0
    %v177 = vadd.f32 %v96, %v176
    %178 = vdwg.mxu0
    %179 = vst [vmem:[#allocation2] sm:$0xff] %v131
    %180 = vst [vmem:[#allocation2 + $0x8] sm:$0xff] %v160
    %181 = vst [vmem:[#allocation2 + $0x10] sm:$0xff] %v133
    %182 = vst [vmem:[#allocation2 + $0x18] sm:$0xff] %v162
    %183 = vst [vmem:[#allocation2 + $0x20] sm:$0xff] %v136
    %184 = vst [vmem:[#allocation2 + $0x28] sm:$0xff] %v165
    %185 = vst [vmem:[#allocation2 + $0x30] sm:$0xff] %v138
    %186 = vst [vmem:[#allocation2 + $0x38] sm:$0xff] %v167
    %187 = vst [vmem:[#allocation2 + $0x40] sm:$0xff] %v141
    %188 = vst [vmem:[#allocation2 + $0x48] sm:$0xff] %v170
    %189 = vst [vmem:[#allocation2 + $0x50] sm:$0xff] %v143
    %190 = vst [vmem:[#allocation2 + $0x58] sm:$0xff] %v172
    %191 = vst [vmem:[#allocation2 + $0x60] sm:$0xff] %v146
    %192 = vst [vmem:[#allocation2 + $0x68] sm:$0xff] %v175
    %193 = vst [vmem:[#allocation2 + $0x70] sm:$0xff] %v148
    %194 = vst [vmem:[#allocation2 + $0x78] sm:$0xff] %v177
    %v195 = vld [vmem:[%s2] sm:$0xff]
    %v196 = vld [vmem:[%s2 + $0x8] sm:$0xff]
    %v197 = vld [vmem:[%s2 + $0x10] sm:$0xff]
    %v198 = vld [vmem:[%s2 + $0x18] sm:$0xff]
    %v199 = vld [vmem:[%s2 + $0x20] sm:$0xff]
    %v200 = vld [vmem:[%s2 + $0x28] sm:$0xff]
    %v201 = vld [vmem:[%s2 + $0x30] sm:$0xff]
    %v202 = vld [vmem:[%s2 + $0x38] sm:$0xff]
    %s203 = smul.u32 0, 2
    %s204 = smul.addr %s203, 8
    %s205 = scalar_lea.vmem [#allocation2], %s204
    %v206 = vld [vmem:[%s205] sm:$0xff]
    %v207 = vld [vmem:[%s205 + $0x8] sm:$0xff]
    %s208 = smul.u32 7, 2
    %s209 = smul.addr %s208, 8
    %s210 = scalar_lea.vmem [#allocation2], %s209
    %v211 = vld [vmem:[%s210] sm:$0xff]
    %v212 = vld [vmem:[%s210 + $0x8] sm:$0xff]
    %v213 = vsel %vm78, %v206, %v211
    %v214 = vsel %vm79, %v207, %v212
    %v223 = vunpack.c.l.b16 %v195
    %v224 = vunpack.c.h.b16 %v195
    %v225 = vunpack.c.l.b16 %v196
    %v226 = vunpack.c.h.b16 %v196
    %v227 = vunpack.c.l.b16 %v197
    %v228 = vunpack.c.h.b16 %v197
    %v229 = vunpack.c.l.b16 %v198
    %v230 = vunpack.c.h.b16 %v198
    %v231 = vunpack.c.l.b16 %v199
    %v232 = vunpack.c.h.b16 %v199
    %v233 = vunpack.c.l.b16 %v200
    %v234 = vunpack.c.h.b16 %v200
    %v235 = vunpack.c.l.b16 %v201
    %v236 = vunpack.c.h.b16 %v201
    %v237 = vunpack.c.l.b16 %v202
    %v238 = vunpack.c.h.b16 %v202
    %v239 = vpack.c.b16 %v225, %v223
    %v240 = vpack.c.b16 %v226, %v224
    %v241 = vpack.c.b16 %v229, %v227
    %v242 = vpack.c.b16 %v230, %v228
    %v243 = vpack.c.b16 %v233, %v231
    %v244 = vpack.c.b16 %v234, %v232
    %v245 = vpack.c.b16 %v237, %v235
    %v246 = vpack.c.b16 %v238, %v236
    %vm255 = vcmask 523264
    %v257 = vsel %vm255, 0, 0
    %259 = vmatpush.bf16.msra.mxu0 0
    %260 = vmatpush.bf16.msra.mxu0 0
    %261 = vmatpush.bf16.msra.mxu0 0
    %262 = vmatpush.bf16.msra.mxu0 0
    %263 = vmatpush.bf16.msra.mxu0 %v245
    %264 = vmatpush.bf16.msra.mxu0 %v243
    %265 = vmatpush.bf16.msra.mxu0 %v241
    %266 = vmatpush.bf16.msra.mxu0 %v239
    %267 = vmatmul.bf16.gmra.mxu0 %v257
    %v268 = vpop.f32.mrf.mxu0
    %v269 = vadd.f32 0.0, %v268
    %v270 = vpop.f32.mrf.mxu0
    %271 = vdwg.mxu0
    %272 = vmatpush.bf16.msra.mxu0 0
    %273 = vmatpush.bf16.msra.mxu0 0
    %274 = vmatpush.bf16.msra.mxu0 0
    %275 = vmatpush.bf16.msra.mxu0 0
    %276 = vmatpush.bf16.msra.mxu0 %v246
    %277 = vmatpush.bf16.msra.mxu0 %v244
    %278 = vmatpush.bf16.msra.mxu0 %v242
    %279 = vmatpush.bf16.msra.mxu0 %v240
    %280 = vmatmul.bf16.gmra.mxu0 %v257
    %v281 = vpop.f32.mrf.mxu0
    %v282 = vadd.f32 0.0, %v281
    %v283 = vpop.f32.mrf.mxu0
    %284 = vdwg.mxu0
    %v285 = vadd.f32 %v213, %v269
    %v286 = vadd.f32 %v214, %v282
    %v287 = vxor.u32 %v285, 2147483648
    %v288 = vxor.u32 %v286, 2147483648
    %v289 = vmul.f32 %v287, 1.442695
    %v290 = vpow.pop %v289
    %v291 = vmul.f32 %v288, 1.442695
    %v292 = vpow.pop %v291
    %v293 = vadd.f32 %v290, 1.0
    %v294 = vadd.f32 %v292, 1.0
    %v295 = vrcp.pop %v293
    %v296 = vmul.f32 %v293, %v295
    %v297 = vsub.f32 1.0, %v296
    %v298 = vmul.f32 %v295, %v297
    %v299 = vadd.f32 %v295, %v298
    %vm300 = vweird.f32 %v293
    %vm301 = vweird.f32 %v295
    %vm302 = vmor %vm300, %vm301
    %v303 = vsel %vm302, %v295, %v299
    %v304 = vand.u32 2147483647, %v293
    %vm305 = vcmp.eq.f32.partialorder %v304, 8.507059e+37
    %v306 = vand.u32 %v293, 2147483648
    %v307 = vor.u32 1.1754944e-38, %v306
    %v308 = vsel %vm305, %v307, %v303
    %v309 = vmul.f32 1.0, %v308
    %v310 = vrcp.pop %v294
    %v311 = vmul.f32 %v294, %v310
    %v312 = vsub.f32 1.0, %v311
    %v313 = vmul.f32 %v310, %v312
    %v314 = vadd.f32 %v310, %v313
    %vm315 = vweird.f32 %v294
    %vm316 = vweird.f32 %v310
    %vm317 = vmor %vm315, %vm316
    %v318 = vsel %vm317, %v310, %v314
    %v319 = vand.u32 2147483647, %v294
    %vm320 = vcmp.eq.f32.partialorder %v319, 8.507059e+37
    %v321 = vand.u32 %v294, 2147483648
    %v322 = vor.u32 1.1754944e-38, %v321
    %v323 = vsel %vm320, %v322, %v318
    %v324 = vmul.f32 1.0, %v323
    %v325 = vtanh.pop %v286
    %v326 = vmul.f32 %v309, 0.0
    %328 = vrot.lane.b32.xlu0 %v325, 64
    %v329 = vpop.permute.xlu0 %328
    %v331 = vmul.f32 %v309, %v329
    %333 = vrot.lane.b32.xlu0 %v331, 64
    %v334 = vpop.permute.xlu0 %333
    %v336 = vadd.f32 %v326, %v334
    %v337 = vtanh.pop %v336
    %339 = vrot.lane.b32.xlu0 %v337, 64
    %v340 = vpop.permute.xlu0 %339
    %v342 = vmul.f32 %v324, %v340
    %vm343 = vcmask 261120
    %344 = vst.msk [vmem:[#allocation3] sm:$0xff] %vm343, %v342
    %s345 = scalar_lea.vmem [#allocation3], 56
    %vm346 = vcmask 523520
    %347 = vst.msk [vmem:[%s345] sm:$0xff] %vm346, %v342
    %s348 = smul.u32 1, 2
    %s349 = smul.addr %s348, 8
    %s350 = scalar_lea.vmem [#allocation2], %s349
    %v351 = vld [vmem:[%s350] sm:$0xff]
    %v352 = vld [vmem:[%s350 + $0x8] sm:$0xff]
    %s353 = smul.u32 6, 2
    %s354 = smul.addr %s353, 8
    %s355 = scalar_lea.vmem [#allocation2], %s354
    %v356 = vld [vmem:[%s355] sm:$0xff]
    %v357 = vld [vmem:[%s355 + $0x8] sm:$0xff]
    %v358 = vsel %vm78, %v351, %v356
    %v359 = vsel %vm79, %v352, %v357
    %v360 = vpack.c.bf16 %v342, %v342
    %v362 = vsel %vm255, %v360, 0
    %364 = vmatpush.bf16.msra.mxu0 0
    %365 = vmatpush.bf16.msra.mxu0 0
    %366 = vmatpush.bf16.msra.mxu0 0
    %367 = vmatpush.bf16.msra.mxu0 0
    %368 = vmatpush.bf16.msra.mxu0 %v245
    %369 = vmatpush.bf16.msra.mxu0 %v243
    %370 = vmatpush.bf16.msra.mxu0 %v241
    %371 = vmatpush.bf16.msra.mxu0 %v239
    %372 = vmatmul.bf16.gmra.mxu0 %v362
    %v373 = vpop.f32.mrf.mxu0
    %v374 = vadd.f32 0.0, %v373
    %v375 = vpop.f32.mrf.mxu0
    %376 = vdwg.mxu0
    %377 = vmatpush.bf16.msra.mxu0 0
    %378 = vmatpush.bf16.msra.mxu0 0
    %379 = vmatpush.bf16.msra.mxu0 0
    %380 = vmatpush.bf16.msra.mxu0 0
    %381 = vmatpush.bf16.msra.mxu0 %v246
    %382 = vmatpush.bf16.msra.mxu0 %v244
    %383 = vmatpush.bf16.msra.mxu0 %v242
    %384 = vmatpush.bf16.msra.mxu0 %v240
    %385 = vmatmul.bf16.gmra.mxu0 %v362
    %v386 = vpop.f32.mrf.mxu0
    %v387 = vadd.f32 0.0, %v386
    %v388 = vpop.f32.mrf.mxu0
    %389 = vdwg.mxu0
    %v390 = vadd.f32 %v358, %v374
    %v391 = vadd.f32 %v359, %v387
    %v392 = vxor.u32 %v390, 2147483648
    %v393 = vxor.u32 %v391, 2147483648
    %v394 = vmul.f32 %v392, 1.442695
    %v395 = vpow.pop %v394
    %v396 = vmul.f32 %v393, 1.442695
    %v397 = vpow.pop %v396
    %v398 = vadd.f32 %v395, 1.0
    %v399 = vadd.f32 %v397, 1.0
    %v400 = vrcp.pop %v398
    %v401 = vmul.f32 %v398, %v400
    %v402 = vsub.f32 1.0, %v401
    %v403 = vmul.f32 %v400, %v402
    %v404 = vadd.f32 %v400, %v403
    %vm405 = vweird.f32 %v398
    %vm406 = vweird.f32 %v400
    %vm407 = vmor %vm405, %vm406
    %v408 = vsel %vm407, %v400, %v404
    %v409 = vand.u32 2147483647, %v398
    %vm410 = vcmp.eq.f32.partialorder %v409, 8.507059e+37
    %v411 = vand.u32 %v398, 2147483648
    %v412 = vor.u32 1.1754944e-38, %v411
    %v413 = vsel %vm410, %v412, %v408
    %v414 = vmul.f32 1.0, %v413
    %v415 = vrcp.pop %v399
    %v416 = vmul.f32 %v399, %v415
    %v417 = vsub.f32 1.0, %v416
    %v418 = vmul.f32 %v415, %v417
    %v419 = vadd.f32 %v415, %v418
    %vm420 = vweird.f32 %v399
    %vm421 = vweird.f32 %v415
    %vm422 = vmor %vm420, %vm421
    %v423 = vsel %vm422, %v415, %v419
    %v424 = vand.u32 2147483647, %v399
    %vm425 = vcmp.eq.f32.partialorder %v424, 8.507059e+37
    %v426 = vand.u32 %v399, 2147483648
    %v427 = vor.u32 1.1754944e-38, %v426
    %v428 = vsel %vm425, %v427, %v423
    %v429 = vmul.f32 1.0, %v428
    %v430 = vtanh.pop %v391
    %v431 = vmul.f32 %v414, %v336
    %433 = vrot.lane.b32.xlu0 %v430, 64
    %v434 = vpop.permute.xlu0 %433
    %v436 = vmul.f32 %v414, %v434
    %438 = vrot.lane.b32.xlu0 %v436, 64
    %v439 = vpop.permute.xlu0 %438
    %v441 = vadd.f32 %v431, %v439
    %v442 = vtanh.pop %v441
    %444 = vrot.lane.b32.xlu0 %v442, 64
    %v445 = vpop.permute.xlu0 %444
    %v447 = vmul.f32 %v429, %v445
    %s448 = scalar_lea.vmem [#allocation3], 8
    %449 = vst.msk [vmem:[%s448] sm:$0xff] %vm343, %v447
    %s450 = scalar_lea.vmem [#allocation3], 48
    %451 = vst.msk [vmem:[%s450] sm:$0xff] %vm346, %v447
    %s452 = smul.u32 2, 2
    %s453 = smul.addr %s452, 8
    %s454 = scalar_lea.vmem [#allocation2], %s453
    %v455 = vld [vmem:[%s454] sm:$0xff]
    %v456 = vld [vmem:[%s454 + $0x8] sm:$0xff]
    %s457 = smul.u32 5, 2
    %s458 = smul.addr %s457, 8
    %s459 = scalar_lea.vmem [#allocation2], %s458
    %v460 = vld [vmem:[%s459] sm:$0xff]
    %v461 = vld [vmem:[%s459 + $0x8] sm:$0xff]
    %v462 = vsel %vm78, %v455, %v460
    %v463 = vsel %vm79, %v456, %v461
    %v464 = vpack.c.bf16 %v447, %v447
    %v466 = vsel %vm255, %v464, 0
    %468 = vmatpush.bf16.msra.mxu0 0
    %469 = vmatpush.bf16.msra.mxu0 0
    %470 = vmatpush.bf16.msra.mxu0 0
    %471 = vmatpush.bf16.msra.mxu0 0
    %472 = vmatpush.bf16.msra.mxu0 %v245
    %473 = vmatpush.bf16.msra.mxu0 %v243
    %474 = vmatpush.bf16.msra.mxu0 %v241
    %475 = vmatpush.bf16.msra.mxu0 %v239
    %476 = vmatmul.bf16.gmra.mxu0 %v466
    %v477 = vpop.f32.mrf.mxu0
    %v478 = vadd.f32 0.0, %v477
    %v479 = vpop.f32.mrf.mxu0
    %480 = vdwg.mxu0
    %481 = vmatpush.bf16.msra.mxu0 0
    %482 = vmatpush.bf16.msra.mxu0 0
    %483 = vmatpush.bf16.msra.mxu0 0
    %484 = vmatpush.bf16.msra.mxu0 0
    %485 = vmatpush.bf16.msra.mxu0 %v246
    %486 = vmatpush.bf16.msra.mxu0 %v244
    %487 = vmatpush.bf16.msra.mxu0 %v242
    %488 = vmatpush.bf16.msra.mxu0 %v240
    %489 = vmatmul.bf16.gmra.mxu0 %v466
    %v490 = vpop.f32.mrf.mxu0
    %v491 = vadd.f32 0.0, %v490
    %v492 = vpop.f32.mrf.mxu0
    %493 = vdwg.mxu0
    %v494 = vadd.f32 %v462, %v478
    %v495 = vadd.f32 %v463, %v491
    %v496 = vxor.u32 %v494, 2147483648
    %v497 = vxor.u32 %v495, 2147483648
    %v498 = vmul.f32 %v496, 1.442695
    %v499 = vpow.pop %v498
    %v500 = vmul.f32 %v497, 1.442695
    %v501 = vpow.pop %v500
    %v502 = vadd.f32 %v499, 1.0
    %v503 = vadd.f32 %v501, 1.0
    %v504 = vrcp.pop %v502
    %v505 = vmul.f32 %v502, %v504
    %v506 = vsub.f32 1.0, %v505
    %v507 = vmul.f32 %v504, %v506
    %v508 = vadd.f32 %v504, %v507
    %vm509 = vweird.f32 %v502
    %vm510 = vweird.f32 %v504
    %vm511 = vmor %vm509, %vm510
    %v512 = vsel %vm511, %v504, %v508
    %v513 = vand.u32 2147483647, %v502
    %vm514 = vcmp.eq.f32.partialorder %v513, 8.507059e+37
    %v515 = vand.u32 %v502, 2147483648
    %v516 = vor.u32 1.1754944e-38, %v515
    %v517 = vsel %vm514, %v516, %v512
    %v518 = vmul.f32 1.0, %v517
    %v519 = vrcp.pop %v503
    %v520 = vmul.f32 %v503, %v519
    %v521 = vsub.f32 1.0, %v520
    %v522 = vmul.f32 %v519, %v521
    %v523 = vadd.f32 %v519, %v522
    %vm524 = vweird.f32 %v503
    %vm525 = vweird.f32 %v519
    %vm526 = vmor %vm524, %vm525
    %v527 = vsel %vm526, %v519, %v523
    %v528 = vand.u32 2147483647, %v503
    %vm529 = vcmp.eq.f32.partialorder %v528, 8.507059e+37
    %v530 = vand.u32 %v503, 2147483648
    %v531 = vor.u32 1.1754944e-38, %v530
    %v532 = vsel %vm529, %v531, %v527
    %v533 = vmul.f32 1.0, %v532
    %v534 = vtanh.pop %v495
    %v535 = vmul.f32 %v518, %v441
    %537 = vrot.lane.b32.xlu0 %v534, 64
    %v538 = vpop.permute.xlu0 %537
    %v540 = vmul.f32 %v518, %v538
    %542 = vrot.lane.b32.xlu0 %v540, 64
    %v543 = vpop.permute.xlu0 %542
    %v545 = vadd.f32 %v535, %v543
    %v546 = vtanh.pop %v545
    %548 = vrot.lane.b32.xlu0 %v546, 64
    %v549 = vpop.permute.xlu0 %548
    %v551 = vmul.f32 %v533, %v549
    %s552 = scalar_lea.vmem [#allocation3], 16
    %553 = vst.msk [vmem:[%s552] sm:$0xff] %vm343, %v551
    %s554 = scalar_lea.vmem [#allocation3], 40
    %555 = vst.msk [vmem:[%s554] sm:$0xff] %vm346, %v551
    %s556 = smul.u32 3, 2
    %s557 = smul.addr %s556, 8
    %s558 = scalar_lea.vmem [#allocation2], %s557
    %v559 = vld [vmem:[%s558] sm:$0xff]
    %v560 = vld [vmem:[%s558 + $0x8] sm:$0xff]
    %s561 = smul.u32 4, 2
    %s562 = smul.addr %s561, 8
    %s563 = scalar_lea.vmem [#allocation2], %s562
    %v564 = vld [vmem:[%s563] sm:$0xff]
    %v565 = vld [vmem:[%s563 + $0x8] sm:$0xff]
    %v566 = vsel %vm78, %v559, %v564
    %v567 = vsel %vm79, %v560, %v565
    %v568 = vpack.c.bf16 %v551, %v551
    %v570 = vsel %vm255, %v568, 0
    %572 = vmatpush.bf16.msra.mxu0 0
    %573 = vmatpush.bf16.msra.mxu0 0
    %574 = vmatpush.bf16.msra.mxu0 0
    %575 = vmatpush.bf16.msra.mxu0 0
    %576 = vmatpush.bf16.msra.mxu0 %v245
    %577 = vmatpush.bf16.msra.mxu0 %v243
    %578 = vmatpush.bf16.msra.mxu0 %v241
    %579 = vmatpush.bf16.msra.mxu0 %v239
    %580 = vmatmul.bf16.gmra.mxu0 %v570
    %v581 = vpop.f32.mrf.mxu0
    %v582 = vadd.f32 0.0, %v581
    %v583 = vpop.f32.mrf.mxu0
    %584 = vdwg.mxu0
    %585 = vmatpush.bf16.msra.mxu0 0
    %586 = vmatpush.bf16.msra.mxu0 0
    %587 = vmatpush.bf16.msra.mxu0 0
    %588 = vmatpush.bf16.msra.mxu0 0
    %589 = vmatpush.bf16.msra.mxu0 %v246
    %590 = vmatpush.bf16.msra.mxu0 %v244
    %591 = vmatpush.bf16.msra.mxu0 %v242
    %592 = vmatpush.bf16.msra.mxu0 %v240
    %593 = vmatmul.bf16.gmra.mxu0 %v570
    %v594 = vpop.f32.mrf.mxu0
    %v595 = vadd.f32 0.0, %v594
    %v596 = vpop.f32.mrf.mxu0
    %597 = vdwg.mxu0
    %v598 = vadd.f32 %v566, %v582
    %v599 = vadd.f32 %v567, %v595
    %v600 = vxor.u32 %v598, 2147483648
    %v601 = vxor.u32 %v599, 2147483648
    %v602 = vmul.f32 %v600, 1.442695
    %v603 = vpow.pop %v602
    %v604 = vmul.f32 %v601, 1.442695
    %v605 = vpow.pop %v604
    %v606 = vadd.f32 %v603, 1.0
    %v607 = vadd.f32 %v605, 1.0
    %v608 = vrcp.pop %v606
    %v609 = vmul.f32 %v606, %v608
    %v610 = vsub.f32 1.0, %v609
    %v611 = vmul.f32 %v608, %v610
    %v612 = vadd.f32 %v608, %v611
    %vm613 = vweird.f32 %v606
    %vm614 = vweird.f32 %v608
    %vm615 = vmor %vm613, %vm614
    %v616 = vsel %vm615, %v608, %v612
    %v617 = vand.u32 2147483647, %v606
    %vm618 = vcmp.eq.f32.partialorder %v617, 8.507059e+37
    %v619 = vand.u32 %v606, 2147483648
    %v620 = vor.u32 1.1754944e-38, %v619
    %v621 = vsel %vm618, %v620, %v616
    %v622 = vmul.f32 1.0, %v621
    %v623 = vrcp.pop %v607
    %v624 = vmul.f32 %v607, %v623
    %v625 = vsub.f32 1.0, %v624
    %v626 = vmul.f32 %v623, %v625
    %v627 = vadd.f32 %v623, %v626
    %vm628 = vweird.f32 %v607
    %vm629 = vweird.f32 %v623
    %vm630 = vmor %vm628, %vm629
    %v631 = vsel %vm630, %v623, %v627
    %v632 = vand.u32 2147483647, %v607
    %vm633 = vcmp.eq.f32.partialorder %v632, 8.507059e+37
    %v634 = vand.u32 %v607, 2147483648
    %v635 = vor.u32 1.1754944e-38, %v634
    %v636 = vsel %vm633, %v635, %v631
    %v637 = vmul.f32 1.0, %v636
    %v638 = vtanh.pop %v599
    %v639 = vmul.f32 %v622, %v545
    %641 = vrot.lane.b32.xlu0 %v638, 64
    %v642 = vpop.permute.xlu0 %641
    %v644 = vmul.f32 %v622, %v642
    %646 = vrot.lane.b32.xlu0 %v644, 64
    %v647 = vpop.permute.xlu0 %646
    %v649 = vadd.f32 %v639, %v647
    %v650 = vtanh.pop %v649
    %652 = vrot.lane.b32.xlu0 %v650, 64
    %v653 = vpop.permute.xlu0 %652
    %v655 = vmul.f32 %v637, %v653
    %s656 = scalar_lea.vmem [#allocation3], 24
    %657 = vst.msk [vmem:[%s656] sm:$0xff] %vm343, %v655
    %s658 = scalar_lea.vmem [#allocation3], 32
    %659 = vst.msk [vmem:[%s658] sm:$0xff] %vm346, %v655
    %v660 = vld [vmem:[%s563] sm:$0xff]
    %v661 = vld [vmem:[%s563 + $0x8] sm:$0xff]
    %v662 = vld [vmem:[%s558] sm:$0xff]
    %v663 = vld [vmem:[%s558 + $0x8] sm:$0xff]
    %v664 = vsel %vm78, %v660, %v662
    %v665 = vsel %vm79, %v661, %v663
    %v666 = vpack.c.bf16 %v655, %v655
    %v668 = vsel %vm255, %v666, 0
    %670 = vmatpush.bf16.msra.mxu0 0
    %671 = vmatpush.bf16.msra.mxu0 0
    %672 = vmatpush.bf16.msra.mxu0 0
    %673 = vmatpush.bf16.msra.mxu0 0
    %674 = vmatpush.bf16.msra.mxu0 %v245
    %675 = vmatpush.bf16.msra.mxu0 %v243
    %676 = vmatpush.bf16.msra.mxu0 %v241
    %677 = vmatpush.bf16.msra.mxu0 %v239
    %678 = vmatmul.bf16.gmra.mxu0 %v668
    %v679 = vpop.f32.mrf.mxu0
    %v680 = vadd.f32 0.0, %v679
    %v681 = vpop.f32.mrf.mxu0
    %682 = vdwg.mxu0
    %683 = vmatpush.bf16.msra.mxu0 0
    %684 = vmatpush.bf16.msra.mxu0 0
    %685 = vmatpush.bf16.msra.mxu0 0
    %686 = vmatpush.bf16.msra.mxu0 0
    %687 = vmatpush.bf16.msra.mxu0 %v246
    %688 = vmatpush.bf16.msra.mxu0 %v244
    %689 = vmatpush.bf16.msra.mxu0 %v242
    %690 = vmatpush.bf16.msra.mxu0 %v240
    %691 = vmatmul.bf16.gmra.mxu0 %v668
    %v692 = vpop.f32.mrf.mxu0
    %v693 = vadd.f32 0.0, %v692
    %v694 = vpop.f32.mrf.mxu0
    %695 = vdwg.mxu0
    %v696 = vadd.f32 %v664, %v680
    %v697 = vadd.f32 %v665, %v693
    %v698 = vxor.u32 %v696, 2147483648
    %v699 = vxor.u32 %v697, 2147483648
    %v700 = vmul.f32 %v698, 1.442695
    %v701 = vpow.pop %v700
    %v702 = vmul.f32 %v699, 1.442695
    %v703 = vpow.pop %v702
    %v704 = vadd.f32 %v701, 1.0
    %v705 = vadd.f32 %v703, 1.0
    %v706 = vrcp.pop %v704
    %v707 = vmul.f32 %v704, %v706
    %v708 = vsub.f32 1.0, %v707
    %v709 = vmul.f32 %v706, %v708
    %v710 = vadd.f32 %v706, %v709
    %vm711 = vweird.f32 %v704
    %vm712 = vweird.f32 %v706
    %vm713 = vmor %vm711, %vm712
    %v714 = vsel %vm713, %v706, %v710
    %v715 = vand.u32 2147483647, %v704
    %vm716 = vcmp.eq.f32.partialorder %v715, 8.507059e+37
    %v717 = vand.u32 %v704, 2147483648
    %v718 = vor.u32 1.1754944e-38, %v717
    %v719 = vsel %vm716, %v718, %v714
    %v720 = vmul.f32 1.0, %v719
    %v721 = vrcp.pop %v705
    %v722 = vmul.f32 %v705, %v721
    %v723 = vsub.f32 1.0, %v722
    %v724 = vmul.f32 %v721, %v723
    %v725 = vadd.f32 %v721, %v724
    %vm726 = vweird.f32 %v705
    %vm727 = vweird.f32 %v721
    %vm728 = vmor %vm726, %vm727
    %v729 = vsel %vm728, %v721, %v725
    %v730 = vand.u32 2147483647, %v705
    %vm731 = vcmp.eq.f32.partialorder %v730, 8.507059e+37
    %v732 = vand.u32 %v705, 2147483648
    %v733 = vor.u32 1.1754944e-38, %v732
    %v734 = vsel %vm731, %v733, %v729
    %v735 = vmul.f32 1.0, %v734
    %v736 = vtanh.pop %v697
    %v737 = vmul.f32 %v720, %v649
    %739 = vrot.lane.b32.xlu0 %v736, 64
    %v740 = vpop.permute.xlu0 %739
    %v742 = vmul.f32 %v720, %v740
    %744 = vrot.lane.b32.xlu0 %v742, 64
    %v745 = vpop.permute.xlu0 %744
    %v747 = vadd.f32 %v737, %v745
    %v748 = vtanh.pop %v747
    %750 = vrot.lane.b32.xlu0 %v748, 64
    %v751 = vpop.permute.xlu0 %750
    %v753 = vmul.f32 %v735, %v751
    %754 = vst.msk [vmem:[%s658] sm:$0xff] %vm343, %v753
    %755 = vst.msk [vmem:[%s656] sm:$0xff] %vm346, %v753
    %v756 = vld [vmem:[%s459] sm:$0xff]
    %v757 = vld [vmem:[%s459 + $0x8] sm:$0xff]
    %v758 = vld [vmem:[%s454] sm:$0xff]
    %v759 = vld [vmem:[%s454 + $0x8] sm:$0xff]
    %v760 = vsel %vm78, %v756, %v758
    %v761 = vsel %vm79, %v757, %v759
    %v762 = vpack.c.bf16 %v753, %v753
    %v764 = vsel %vm255, %v762, 0
    %766 = vmatpush.bf16.msra.mxu0 0
    %767 = vmatpush.bf16.msra.mxu0 0
    %768 = vmatpush.bf16.msra.mxu0 0
    %769 = vmatpush.bf16.msra.mxu0 0
    %770 = vmatpush.bf16.msra.mxu0 %v245
    %771 = vmatpush.bf16.msra.mxu0 %v243
    %772 = vmatpush.bf16.msra.mxu0 %v241
    %773 = vmatpush.bf16.msra.mxu0 %v239
    %774 = vmatmul.bf16.gmra.mxu0 %v764
    %v775 = vpop.f32.mrf.mxu0
    %v776 = vadd.f32 0.0, %v775
    %v777 = vpop.f32.mrf.mxu0
    %778 = vdwg.mxu0
    %779 = vmatpush.bf16.msra.mxu0 0
    %780 = vmatpush.bf16.msra.mxu0 0
    %781 = vmatpush.bf16.msra.mxu0 0
    %782 = vmatpush.bf16.msra.mxu0 0
    %783 = vmatpush.bf16.msra.mxu0 %v246
    %784 = vmatpush.bf16.msra.mxu0 %v244
    %785 = vmatpush.bf16.msra.mxu0 %v242
    %786 = vmatpush.bf16.msra.mxu0 %v240
    %787 = vmatmul.bf16.gmra.mxu0 %v764
    %v788 = vpop.f32.mrf.mxu0
    %v789 = vadd.f32 0.0, %v788
    %v790 = vpop.f32.mrf.mxu0
    %791 = vdwg.mxu0
    %v792 = vadd.f32 %v760, %v776
    %v793 = vadd.f32 %v761, %v789
    %v794 = vxor.u32 %v792, 2147483648
    %v795 = vxor.u32 %v793, 2147483648
    %v796 = vmul.f32 %v794, 1.442695
    %v797 = vpow.pop %v796
    %v798 = vmul.f32 %v795, 1.442695
    %v799 = vpow.pop %v798
    %v800 = vadd.f32 %v797, 1.0
    %v801 = vadd.f32 %v799, 1.0
    %v802 = vrcp.pop %v800
    %v803 = vmul.f32 %v800, %v802
    %v804 = vsub.f32 1.0, %v803
    %v805 = vmul.f32 %v802, %v804
    %v806 = vadd.f32 %v802, %v805
    %vm807 = vweird.f32 %v800
    %vm808 = vweird.f32 %v802
    %vm809 = vmor %vm807, %vm808
    %v810 = vsel %vm809, %v802, %v806
    %v811 = vand.u32 2147483647, %v800
    %vm812 = vcmp.eq.f32.partialorder %v811, 8.507059e+37
    %v813 = vand.u32 %v800, 2147483648
    %v814 = vor.u32 1.1754944e-38, %v813
    %v815 = vsel %vm812, %v814, %v810
    %v816 = vmul.f32 1.0, %v815
    %v817 = vrcp.pop %v801
    %v818 = vmul.f32 %v801, %v817
    %v819 = vsub.f32 1.0, %v818
    %v820 = vmul.f32 %v817, %v819
    %v821 = vadd.f32 %v817, %v820
    %vm822 = vweird.f32 %v801
    %vm823 = vweird.f32 %v817
    %vm824 = vmor %vm822, %vm823
    %v825 = vsel %vm824, %v817, %v821
    %v826 = vand.u32 2147483647, %v801
    %vm827 = vcmp.eq.f32.partialorder %v826, 8.507059e+37
    %v828 = vand.u32 %v801, 2147483648
    %v829 = vor.u32 1.1754944e-38, %v828
    %v830 = vsel %vm827, %v829, %v825
    %v831 = vmul.f32 1.0, %v830
    %v832 = vtanh.pop %v793
    %v833 = vmul.f32 %v816, %v747
    %835 = vrot.lane.b32.xlu0 %v832, 64
    %v836 = vpop.permute.xlu0 %835
    %v838 = vmul.f32 %v816, %v836
    %840 = vrot.lane.b32.xlu0 %v838, 64
    %v841 = vpop.permute.xlu0 %840
    %v843 = vadd.f32 %v833, %v841
    %v844 = vtanh.pop %v843
    %846 = vrot.lane.b32.xlu0 %v844, 64
    %v847 = vpop.permute.xlu0 %846
    %v849 = vmul.f32 %v831, %v847
    %850 = vst.msk [vmem:[%s554] sm:$0xff] %vm343, %v849
    %851 = vst.msk [vmem:[%s552] sm:$0xff] %vm346, %v849
    %v852 = vld [vmem:[%s355] sm:$0xff]
    %v853 = vld [vmem:[%s355 + $0x8] sm:$0xff]
    %v854 = vld [vmem:[%s350] sm:$0xff]
    %v855 = vld [vmem:[%s350 + $0x8] sm:$0xff]
    %v856 = vsel %vm78, %v852, %v854
    %v857 = vsel %vm79, %v853, %v855
    %v858 = vpack.c.bf16 %v849, %v849
    %v860 = vsel %vm255, %v858, 0
    %862 = vmatpush.bf16.msra.mxu0 0
    %863 = vmatpush.bf16.msra.mxu0 0
    %864 = vmatpush.bf16.msra.mxu0 0
    %865 = vmatpush.bf16.msra.mxu0 0
    %866 = vmatpush.bf16.msra.mxu0 %v245
    %867 = vmatpush.bf16.msra.mxu0 %v243
    %868 = vmatpush.bf16.msra.mxu0 %v241
    %869 = vmatpush.bf16.msra.mxu0 %v239
    %870 = vmatmul.bf16.gmra.mxu0 %v860
    %v871 = vpop.f32.mrf.mxu0
    %v872 = vadd.f32 0.0, %v871
    %v873 = vpop.f32.mrf.mxu0
    %874 = vdwg.mxu0
    %875 = vmatpush.bf16.msra.mxu0 0
    %876 = vmatpush.bf16.msra.mxu0 0
    %877 = vmatpush.bf16.msra.mxu0 0
    %878 = vmatpush.bf16.msra.mxu0 0
    %879 = vmatpush.bf16.msra.mxu0 %v246
    %880 = vmatpush.bf16.msra.mxu0 %v244
    %881 = vmatpush.bf16.msra.mxu0 %v242
    %882 = vmatpush.bf16.msra.mxu0 %v240
    %883 = vmatmul.bf16.gmra.mxu0 %v860
    %v884 = vpop.f32.mrf.mxu0
    %v885 = vadd.f32 0.0, %v884
    %v886 = vpop.f32.mrf.mxu0
    %887 = vdwg.mxu0
    %v888 = vadd.f32 %v856, %v872
    %v889 = vadd.f32 %v857, %v885
    %v890 = vxor.u32 %v888, 2147483648
    %v891 = vxor.u32 %v889, 2147483648
    %v892 = vmul.f32 %v890, 1.442695
    %v893 = vpow.pop %v892
    %v894 = vmul.f32 %v891, 1.442695
    %v895 = vpow.pop %v894
    %v896 = vadd.f32 %v893, 1.0
    %v897 = vadd.f32 %v895, 1.0
    %v898 = vrcp.pop %v896
    %v899 = vmul.f32 %v896, %v898
    %v900 = vsub.f32 1.0, %v899
    %v901 = vmul.f32 %v898, %v900
    %v902 = vadd.f32 %v898, %v901
    %vm903 = vweird.f32 %v896
    %vm904 = vweird.f32 %v898
    %vm905 = vmor %vm903, %vm904
    %v906 = vsel %vm905, %v898, %v902
    %v907 = vand.u32 2147483647, %v896
    %vm908 = vcmp.eq.f32.partialorder %v907, 8.507059e+37
    %v909 = vand.u32 %v896, 2147483648
    %v910 = vor.u32 1.1754944e-38, %v909
    %v911 = vsel %vm908, %v910, %v906
    %v912 = vmul.f32 1.0, %v911
    %v913 = vrcp.pop %v897
    %v914 = vmul.f32 %v897, %v913
    %v915 = vsub.f32 1.0, %v914
    %v916 = vmul.f32 %v913, %v915
    %v917 = vadd.f32 %v913, %v916
    %vm918 = vweird.f32 %v897
    %vm919 = vweird.f32 %v913
    %vm920 = vmor %vm918, %vm919
    %v921 = vsel %vm920, %v913, %v917
    %v922 = vand.u32 2147483647, %v897
    %vm923 = vcmp.eq.f32.partialorder %v922, 8.507059e+37
    %v924 = vand.u32 %v897, 2147483648
    %v925 = vor.u32 1.1754944e-38, %v924
    %v926 = vsel %vm923, %v925, %v921
    %v927 = vmul.f32 1.0, %v926
    %v928 = vtanh.pop %v889
    %v929 = vmul.f32 %v912, %v843
    %931 = vrot.lane.b32.xlu0 %v928, 64
    %v932 = vpop.permute.xlu0 %931
    %v934 = vmul.f32 %v912, %v932
    %936 = vrot.lane.b32.xlu0 %v934, 64
    %v937 = vpop.permute.xlu0 %936
    %v939 = vadd.f32 %v929, %v937
    %v940 = vtanh.pop %v939
    %942 = vrot.lane.b32.xlu0 %v940, 64
    %v943 = vpop.permute.xlu0 %942
    %v945 = vmul.f32 %v927, %v943
    %946 = vst.msk [vmem:[%s450] sm:$0xff] %vm343, %v945
    %947 = vst.msk [vmem:[%s448] sm:$0xff] %vm346, %v945
    %v948 = vld [vmem:[%s210] sm:$0xff]
    %v949 = vld [vmem:[%s210 + $0x8] sm:$0xff]
    %v950 = vld [vmem:[%s205] sm:$0xff]
    %v951 = vld [vmem:[%s205 + $0x8] sm:$0xff]
    %v952 = vsel %vm78, %v948, %v950
    %v953 = vsel %vm79, %v949, %v951
    %v954 = vpack.c.bf16 %v945, %v945
    %v956 = vsel %vm255, %v954, 0
    %958 = vmatpush.bf16.msra.mxu0 0
    %959 = vmatpush.bf16.msra.mxu0 0
    %960 = vmatpush.bf16.msra.mxu0 0
    %961 = vmatpush.bf16.msra.mxu0 0
    %962 = vmatpush.bf16.msra.mxu0 %v245
    %963 = vmatpush.bf16.msra.mxu0 %v243
    %964 = vmatpush.bf16.msra.mxu0 %v241
    %965 = vmatpush.bf16.msra.mxu0 %v239
    %966 = vmatmul.bf16.gmra.mxu0 %v956
    %v967 = vpop.f32.mrf.mxu0
    %v968 = vadd.f32 0.0, %v967
    %v969 = vpop.f32.mrf.mxu0
    %970 = vdwg.mxu0
    %971 = vmatpush.bf16.msra.mxu0 0
    %972 = vmatpush.bf16.msra.mxu0 0
    %973 = vmatpush.bf16.msra.mxu0 0
    %974 = vmatpush.bf16.msra.mxu0 0
    %975 = vmatpush.bf16.msra.mxu0 %v246
    %976 = vmatpush.bf16.msra.mxu0 %v244
    %977 = vmatpush.bf16.msra.mxu0 %v242
    %978 = vmatpush.bf16.msra.mxu0 %v240
    %979 = vmatmul.bf16.gmra.mxu0 %v956
    %v980 = vpop.f32.mrf.mxu0
    %v981 = vadd.f32 0.0, %v980
    %v982 = vpop.f32.mrf.mxu0
    %983 = vdwg.mxu0
    %v984 = vadd.f32 %v952, %v968
    %v985 = vadd.f32 %v953, %v981
    %v986 = vxor.u32 %v984, 2147483648
    %v987 = vxor.u32 %v985, 2147483648
    %v988 = vmul.f32 %v986, 1.442695
    %v989 = vpow.pop %v988
    %v990 = vmul.f32 %v987, 1.442695
    %v991 = vpow.pop %v990
    %v992 = vadd.f32 %v989, 1.0
    %v993 = vadd.f32 %v991, 1.0
    %v994 = vrcp.pop %v992
    %v995 = vmul.f32 %v992, %v994
    %v996 = vsub.f32 1.0, %v995
    %v997 = vmul.f32 %v994, %v996
    %v998 = vadd.f32 %v994, %v997
    %vm999 = vweird.f32 %v992
    %vm1000 = vweird.f32 %v994
    %vm1001 = vmor %vm999, %vm1000
    %v1002 = vsel %vm1001, %v994, %v998
    %v1003 = vand.u32 2147483647, %v992
    %vm1004 = vcmp.eq.f32.partialorder %v1003, 8.507059e+37
    %v1005 = vand.u32 %v992, 2147483648
    %v1006 = vor.u32 1.1754944e-38, %v1005
    %v1007 = vsel %vm1004, %v1006, %v1002
    %v1008 = vmul.f32 1.0, %v1007
    %v1009 = vrcp.pop %v993
    %v1010 = vmul.f32 %v993, %v1009
    %v1011 = vsub.f32 1.0, %v1010
    %v1012 = vmul.f32 %v1009, %v1011
    %v1013 = vadd.f32 %v1009, %v1012
    %vm1014 = vweird.f32 %v993
    %vm1015 = vweird.f32 %v1009
    %vm1016 = vmor %vm1014, %vm1015
    %v1017 = vsel %vm1016, %v1009, %v1013
    %v1018 = vand.u32 2147483647, %v993
    %vm1019 = vcmp.eq.f32.partialorder %v1018, 8.507059e+37
    %v1020 = vand.u32 %v993, 2147483648
    %v1021 = vor.u32 1.1754944e-38, %v1020
    %v1022 = vsel %vm1019, %v1021, %v1017
    %v1023 = vmul.f32 1.0, %v1022
    %v1024 = vtanh.pop %v985
    %v1025 = vmul.f32 %v1008, %v939
    %1027 = vrot.lane.b32.xlu0 %v1024, 64
    %v1028 = vpop.permute.xlu0 %1027
    %v1030 = vmul.f32 %v1008, %v1028
    %1032 = vrot.lane.b32.xlu0 %v1030, 64
    %v1033 = vpop.permute.xlu0 %1032
    %v1035 = vadd.f32 %v1025, %v1033
    %v1036 = vtanh.pop %v1035
    %1038 = vrot.lane.b32.xlu0 %v1036, 64
    %v1039 = vpop.permute.xlu0 %1038
    %v1041 = vmul.f32 %v1023, %v1039
    %1042 = vst.msk [vmem:[%s345] sm:$0xff] %vm343, %v1041
    %1043 = vst.msk [vmem:[#allocation3] sm:$0xff] %vm346, %v1041
    %v1044 = vld [vmem:[#allocation3] sm:$0xff]
    %v1045 = vld [vmem:[#allocation3 + $0x8] sm:$0xff]
    %v1046 = vld [vmem:[#allocation3 + $0x10] sm:$0xff]
    %v1047 = vld [vmem:[#allocation3 + $0x18] sm:$0xff]
    %v1048 = vld [vmem:[#allocation3 + $0x20] sm:$0xff]
    %v1049 = vld [vmem:[#allocation3 + $0x28] sm:$0xff]
    %v1050 = vld [vmem:[#allocation3 + $0x30] sm:$0xff]
    %v1051 = vld [vmem:[#allocation3 + $0x38] sm:$0xff]
    %v1052 = vpack.c.bf16 %v1045, %v1044
    %v1053 = vpack.c.bf16 %v1047, %v1046
    %v1054 = vpack.c.bf16 %v1049, %v1048
    %v1055 = vpack.c.bf16 %v1051, %v1050
    %v1056 = vld [vmem:[%s4] sm:$0xff]
    %v1057 = vld [vmem:[%s4 + $0x8] sm:$0xff]
    %v1058 = vld [vmem:[%s4 + $0x10] sm:$0xff]
    %v1059 = vld [vmem:[%s4 + $0x18] sm:$0xff]
    %v1060 = vld [vmem:[%s4 + $0x20] sm:$0xff]
    %v1061 = vld [vmem:[%s4 + $0x28] sm:$0xff]
    %v1062 = vld [vmem:[%s4 + $0x30] sm:$0xff]
    %v1063 = vld [vmem:[%s4 + $0x38] sm:$0xff]
    %v1064 = vld [vmem:[%s6] sm:$0x3]
    %v1066 = vperm.slane %v1064, 0
    %v1067 = vperm.slane %v1064, 1
    %v1078 = vunpack.c.l.b16 %v1056
    %v1079 = vunpack.c.h.b16 %v1056
    %v1080 = vunpack.c.l.b16 %v1057
    %v1081 = vunpack.c.h.b16 %v1057
    %v1082 = vunpack.c.l.b16 %v1058
    %v1083 = vunpack.c.h.b16 %v1058
    %v1084 = vunpack.c.l.b16 %v1059
    %v1085 = vunpack.c.h.b16 %v1059
    %v1086 = vunpack.c.l.b16 %v1060
    %v1087 = vunpack.c.h.b16 %v1060
    %v1088 = vunpack.c.l.b16 %v1061
    %v1089 = vunpack.c.h.b16 %v1061
    %v1090 = vunpack.c.l.b16 %v1062
    %v1091 = vunpack.c.h.b16 %v1062
    %v1092 = vunpack.c.l.b16 %v1063
    %v1093 = vunpack.c.h.b16 %v1063
    %v1094 = vpack.c.b16 %v1080, %v1078
    %v1095 = vpack.c.b16 %v1081, %v1079
    %v1096 = vpack.c.b16 %v1084, %v1082
    %v1097 = vpack.c.b16 %v1085, %v1083
    %v1098 = vpack.c.b16 %v1088, %v1086
    %v1099 = vpack.c.b16 %v1089, %v1087
    %v1100 = vpack.c.b16 %v1092, %v1090
    %v1101 = vpack.c.b16 %v1093, %v1091
    %v1111 = vsel %vm255, %v1052, 0
    %v1114 = vsel %vm255, %v1053, 0
    %v1117 = vsel %vm255, %v1054, 0
    %v1120 = vsel %vm255, %v1055, 0
    %1122 = vmatpush.bf16.msra.mxu0 0
    %1123 = vmatpush.bf16.msra.mxu0 0
    %1124 = vmatpush.bf16.msra.mxu0 0
    %1125 = vmatpush.bf16.msra.mxu0 0
    %1126 = vmatpush.bf16.msra.mxu0 %v1100
    %1127 = vmatpush.bf16.msra.mxu0 %v1098
    %1128 = vmatpush.bf16.msra.mxu0 %v1096
    %1129 = vmatpush.bf16.msra.mxu0 %v1094
    %1130 = vmatmul.bf16.gmra.mxu0 %v1111
    %v1131 = vpop.f32.mrf.mxu0
    %v1132 = vadd.f32 %v1066, %v1131
    %v1133 = vpop.f32.mrf.mxu0
    %v1134 = vadd.f32 %v1066, %v1133
    %1135 = vmatmul.bf16.gmra.mxu0 %v1114
    %v1136 = vpop.f32.mrf.mxu0
    %v1137 = vadd.f32 %v1066, %v1136
    %v1138 = vpop.f32.mrf.mxu0
    %v1139 = vadd.f32 %v1066, %v1138
    %1140 = vmatmul.bf16.gmra.mxu0 %v1117
    %v1141 = vpop.f32.mrf.mxu0
    %v1142 = vadd.f32 %v1066, %v1141
    %v1143 = vpop.f32.mrf.mxu0
    %v1144 = vadd.f32 %v1066, %v1143
    %1145 = vmatmul.bf16.gmra.mxu0 %v1120
    %v1146 = vpop.f32.mrf.mxu0
    %v1147 = vadd.f32 %v1066, %v1146
    %v1148 = vpop.f32.mrf.mxu0
    %v1149 = vadd.f32 %v1066, %v1148
    %1150 = vdwg.mxu0
    %1151 = vmatpush.bf16.msra.mxu0 0
    %1152 = vmatpush.bf16.msra.mxu0 0
    %1153 = vmatpush.bf16.msra.mxu0 0
    %1154 = vmatpush.bf16.msra.mxu0 0
    %1155 = vmatpush.bf16.msra.mxu0 %v1101
    %1156 = vmatpush.bf16.msra.mxu0 %v1099
    %1157 = vmatpush.bf16.msra.mxu0 %v1097
    %1158 = vmatpush.bf16.msra.mxu0 %v1095
    %1159 = vmatmul.bf16.gmra.mxu0 %v1111
    %v1160 = vpop.f32.mrf.mxu0
    %v1161 = vadd.f32 %v1067, %v1160
    %v1162 = vpop.f32.mrf.mxu0
    %v1163 = vadd.f32 %v1067, %v1162
    %1164 = vmatmul.bf16.gmra.mxu0 %v1114
    %v1165 = vpop.f32.mrf.mxu0
    %v1166 = vadd.f32 %v1067, %v1165
    %v1167 = vpop.f32.mrf.mxu0
    %v1168 = vadd.f32 %v1067, %v1167
    %1169 = vmatmul.bf16.gmra.mxu0 %v1117
    %v1170 = vpop.f32.mrf.mxu0
    %v1171 = vadd.f32 %v1067, %v1170
    %v1172 = vpop.f32.mrf.mxu0
    %v1173 = vadd.f32 %v1067, %v1172
    %1174 = vmatmul.bf16.gmra.mxu0 %v1120
    %v1175 = vpop.f32.mrf.mxu0
    %v1176 = vadd.f32 %v1067, %v1175
    %v1177 = vpop.f32.mrf.mxu0
    %v1178 = vadd.f32 %v1067, %v1177
    %1179 = vdwg.mxu0
    %1180 = vst [vmem:[#allocation2] sm:$0xff] %v1132
    %1181 = vst [vmem:[#allocation2 + $0x8] sm:$0xff] %v1161
    %1182 = vst [vmem:[#allocation2 + $0x10] sm:$0xff] %v1134
    %1183 = vst [vmem:[#allocation2 + $0x18] sm:$0xff] %v1163
    %1184 = vst [vmem:[#allocation2 + $0x20] sm:$0xff] %v1137
    %1185 = vst [vmem:[#allocation2 + $0x28] sm:$0xff] %v1166
    %1186 = vst [vmem:[#allocation2 + $0x30] sm:$0xff] %v1139
    %1187 = vst [vmem:[#allocation2 + $0x38] sm:$0xff] %v1168
    %1188 = vst [vmem:[#allocation2 + $0x40] sm:$0xff] %v1142
    %1189 = vst [vmem:[#allocation2 + $0x48] sm:$0xff] %v1171
    %1190 = vst [vmem:[#allocation2 + $0x50] sm:$0xff] %v1144
    %1191 = vst [vmem:[#allocation2 + $0x58] sm:$0xff] %v1173
    %1192 = vst [vmem:[#allocation2 + $0x60] sm:$0xff] %v1147
    %1193 = vst [vmem:[#allocation2 + $0x68] sm:$0xff] %v1176
    %1194 = vst [vmem:[#allocation2 + $0x70] sm:$0xff] %v1149
    %1195 = vst [vmem:[#allocation2 + $0x78] sm:$0xff] %v1178
    %v1196 = vld [vmem:[#allocation5] sm:$0xff]
    %v1197 = vld [vmem:[#allocation5 + $0x8] sm:$0xff]
    %v1198 = vld [vmem:[#allocation5 + $0x10] sm:$0xff]
    %v1199 = vld [vmem:[#allocation5 + $0x18] sm:$0xff]
    %v1200 = vld [vmem:[#allocation5 + $0x20] sm:$0xff]
    %v1201 = vld [vmem:[#allocation5 + $0x28] sm:$0xff]
    %v1202 = vld [vmem:[#allocation5 + $0x30] sm:$0xff]
    %v1203 = vld [vmem:[#allocation5 + $0x38] sm:$0xff]
    %v1204 = vld [vmem:[%s205] sm:$0xff]
    %v1205 = vld [vmem:[%s205 + $0x8] sm:$0xff]
    %v1206 = vld [vmem:[%s210] sm:$0xff]
    %v1207 = vld [vmem:[%s210 + $0x8] sm:$0xff]
    %v1208 = vsel %vm78, %v1204, %v1206
    %v1209 = vsel %vm79, %v1205, %v1207
    %v1218 = vunpack.c.l.b16 %v1196
    %v1219 = vunpack.c.h.b16 %v1196
    %v1220 = vunpack.c.l.b16 %v1197
    %v1221 = vunpack.c.h.b16 %v1197
    %v1222 = vunpack.c.l.b16 %v1198
    %v1223 = vunpack.c.h.b16 %v1198
    %v1224 = vunpack.c.l.b16 %v1199
    %v1225 = vunpack.c.h.b16 %v1199
    %v1226 = vunpack.c.l.b16 %v1200
    %v1227 = vunpack.c.h.b16 %v1200
    %v1228 = vunpack.c.l.b16 %v1201
    %v1229 = vunpack.c.h.b16 %v1201
    %v1230 = vunpack.c.l.b16 %v1202
    %v1231 = vunpack.c.h.b16 %v1202
    %v1232 = vunpack.c.l.b16 %v1203
    %v1233 = vunpack.c.h.b16 %v1203
    %v1234 = vpack.c.b16 %v1220, %v1218
    %v1235 = vpack.c.b16 %v1221, %v1219
    %v1236 = vpack.c.b16 %v1224, %v1222
    %v1237 = vpack.c.b16 %v1225, %v1223
    %v1238 = vpack.c.b16 %v1228, %v1226
    %v1239 = vpack.c.b16 %v1229, %v1227
    %v1240 = vpack.c.b16 %v1232, %v1230
    %v1241 = vpack.c.b16 %v1233, %v1231
    %1250 = vmatpush.bf16.msra.mxu0 0
    %1251 = vmatpush.bf16.msra.mxu0 0
    %1252 = vmatpush.bf16.msra.mxu0 0
    %1253 = vmatpush.bf16.msra.mxu0 0
    %1254 = vmatpush.bf16.msra.mxu0 %v1240
    %1255 = vmatpush.bf16.msra.mxu0 %v1238
    %1256 = vmatpush.bf16.msra.mxu0 %v1236
    %1257 = vmatpush.bf16.msra.mxu0 %v1234
    %1258 = vmatmul.bf16.gmra.mxu0 %v257
    %v1259 = vpop.f32.mrf.mxu0
    %v1260 = vadd.f32 0.0, %v1259
    %v1261 = vpop.f32.mrf.mxu0
    %1262 = vdwg.mxu0
    %1263 = vmatpush.bf16.msra.mxu0 0
    %1264 = vmatpush.bf16.msra.mxu0 0
    %1265 = vmatpush.bf16.msra.mxu0 0
    %1266 = vmatpush.bf16.msra.mxu0 0
    %1267 = vmatpush.bf16.msra.mxu0 %v1241
    %1268 = vmatpush.bf16.msra.mxu0 %v1239
    %1269 = vmatpush.bf16.msra.mxu0 %v1237
    %1270 = vmatpush.bf16.msra.mxu0 %v1235
    %1271 = vmatmul.bf16.gmra.mxu0 %v257
    %v1272 = vpop.f32.mrf.mxu0
    %v1273 = vadd.f32 0.0, %v1272
    %v1274 = vpop.f32.mrf.mxu0
    %1275 = vdwg.mxu0
    %v1276 = vadd.f32 %v1208, %v1260
    %v1277 = vadd.f32 %v1209, %v1273
    %v1278 = vxor.u32 %v1276, 2147483648
    %v1279 = vxor.u32 %v1277, 2147483648
    %v1280 = vmul.f32 %v1278, 1.442695
    %v1281 = vpow.pop %v1280
    %v1282 = vmul.f32 %v1279, 1.442695
    %v1283 = vpow.pop %v1282
    %v1284 = vadd.f32 %v1281, 1.0
    %v1285 = vadd.f32 %v1283, 1.0
    %v1286 = vrcp.pop %v1284
    %v1287 = vmul.f32 %v1284, %v1286
    %v1288 = vsub.f32 1.0, %v1287
    %v1289 = vmul.f32 %v1286, %v1288
    %v1290 = vadd.f32 %v1286, %v1289
    %vm1291 = vweird.f32 %v1284
    %vm1292 = vweird.f32 %v1286
    %vm1293 = vmor %vm1291, %vm1292
    %v1294 = vsel %vm1293, %v1286, %v1290
    %v1295 = vand.u32 2147483647, %v1284
    %vm1296 = vcmp.eq.f32.partialorder %v1295, 8.507059e+37
    %v1297 = vand.u32 %v1284, 2147483648
    %v1298 = vor.u32 1.1754944e-38, %v1297
    %v1299 = vsel %vm1296, %v1298, %v1294
    %v1300 = vmul.f32 1.0, %v1299
    %v1301 = vrcp.pop %v1285
    %v1302 = vmul.f32 %v1285, %v1301
    %v1303 = vsub.f32 1.0, %v1302
    %v1304 = vmul.f32 %v1301, %v1303
    %v1305 = vadd.f32 %v1301, %v1304
    %vm1306 = vweird.f32 %v1285
    %vm1307 = vweird.f32 %v1301
    %vm1308 = vmor %vm1306, %vm1307
    %v1309 = vsel %vm1308, %v1301, %v1305
    %v1310 = vand.u32 2147483647, %v1285
    %vm1311 = vcmp.eq.f32.partialorder %v1310, 8.507059e+37
    %v1312 = vand.u32 %v1285, 2147483648
    %v1313 = vor.u32 1.1754944e-38, %v1312
    %v1314 = vsel %vm1311, %v1313, %v1309
    %v1315 = vmul.f32 1.0, %v1314
    %v1316 = vtanh.pop %v1277
    %v1317 = vmul.f32 %v1300, 0.0
    %1319 = vrot.lane.b32.xlu0 %v1316, 64
    %v1320 = vpop.permute.xlu0 %1319
    %v1322 = vmul.f32 %v1300, %v1320
    %1324 = vrot.lane.b32.xlu0 %v1322, 64
    %v1325 = vpop.permute.xlu0 %1324
    %v1327 = vadd.f32 %v1317, %v1325
    %v1328 = vtanh.pop %v1327
    %1330 = vrot.lane.b32.xlu0 %v1328, 64
    %v1331 = vpop.permute.xlu0 %1330
    %v1333 = vmul.f32 %v1315, %v1331
    %1334 = vst.msk [vmem:[#allocation3] sm:$0xff] %vm343, %v1333
    %1335 = vst.msk [vmem:[%s345] sm:$0xff] %vm346, %v1333
    %v1336 = vld [vmem:[%s350] sm:$0xff]
    %v1337 = vld [vmem:[%s350 + $0x8] sm:$0xff]
    %v1338 = vld [vmem:[%s355] sm:$0xff]
    %v1339 = vld [vmem:[%s355 + $0x8] sm:$0xff]
    %v1340 = vsel %vm78, %v1336, %v1338
    %v1341 = vsel %vm79, %v1337, %v1339
    %v1342 = vpack.c.bf16 %v1333, %v1333
    %v1344 = vsel %vm255, %v1342, 0
    %1346 = vmatpush.bf16.msra.mxu0 0
    %1347 = vmatpush.bf16.msra.mxu0 0
    %1348 = vmatpush.bf16.msra.mxu0 0
    %1349 = vmatpush.bf16.msra.mxu0 0
    %1350 = vmatpush.bf16.msra.mxu0 %v1240
    %1351 = vmatpush.bf16.msra.mxu0 %v1238
    %1352 = vmatpush.bf16.msra.mxu0 %v1236
    %1353 = vmatpush.bf16.msra.mxu0 %v1234
    %1354 = vmatmul.bf16.gmra.mxu0 %v1344
    %v1355 = vpop.f32.mrf.mxu0
    %v1356 = vadd.f32 0.0, %v1355
    %v1357 = vpop.f32.mrf.mxu0
    %1358 = vdwg.mxu0
    %1359 = vmatpush.bf16.msra.mxu0 0
    %1360 = vmatpush.bf16.msra.mxu0 0
    %1361 = vmatpush.bf16.msra.mxu0 0
    %1362 = vmatpush.bf16.msra.mxu0 0
    %1363 = vmatpush.bf16.msra.mxu0 %v1241
    %1364 = vmatpush.bf16.msra.mxu0 %v1239
    %1365 = vmatpush.bf16.msra.mxu0 %v1237
    %1366 = vmatpush.bf16.msra.mxu0 %v1235
    %1367 = vmatmul.bf16.gmra.mxu0 %v1344
    %v1368 = vpop.f32.mrf.mxu0
    %v1369 = vadd.f32 0.0, %v1368
    %v1370 = vpop.f32.mrf.mxu0
    %1371 = vdwg.mxu0
    %v1372 = vadd.f32 %v1340, %v1356
    %v1373 = vadd.f32 %v1341, %v1369
    %v1374 = vxor.u32 %v1372, 2147483648
    %v1375 = vxor.u32 %v1373, 2147483648
    %v1376 = vmul.f32 %v1374, 1.442695
    %v1377 = vpow.pop %v1376
    %v1378 = vmul.f32 %v1375, 1.442695
    %v1379 = vpow.pop %v1378
    %v1380 = vadd.f32 %v1377, 1.0
    %v1381 = vadd.f32 %v1379, 1.0
    %v1382 = vrcp.pop %v1380
    %v1383 = vmul.f32 %v1380, %v1382
    %v1384 = vsub.f32 1.0, %v1383
    %v1385 = vmul.f32 %v1382, %v1384
    %v1386 = vadd.f32 %v1382, %v1385
    %vm1387 = vweird.f32 %v1380
    %vm1388 = vweird.f32 %v1382
    %vm1389 = vmor %vm1387, %vm1388
    %v1390 = vsel %vm1389, %v1382, %v1386
    %v1391 = vand.u32 2147483647, %v1380
    %vm1392 = vcmp.eq.f32.partialorder %v1391, 8.507059e+37
    %v1393 = vand.u32 %v1380, 2147483648
    %v1394 = vor.u32 1.1754944e-38, %v1393
    %v1395 = vsel %vm1392, %v1394, %v1390
    %v1396 = vmul.f32 1.0, %v1395
    %v1397 = vrcp.pop %v1381
    %v1398 = vmul.f32 %v1381, %v1397
    %v1399 = vsub.f32 1.0, %v1398
    %v1400 = vmul.f32 %v1397, %v1399
    %v1401 = vadd.f32 %v1397, %v1400
    %vm1402 = vweird.f32 %v1381
    %vm1403 = vweird.f32 %v1397
    %vm1404 = vmor %vm1402, %vm1403
    %v1405 = vsel %vm1404, %v1397, %v1401
    %v1406 = vand.u32 2147483647, %v1381
    %vm1407 = vcmp.eq.f32.partialorder %v1406, 8.507059e+37
    %v1408 = vand.u32 %v1381, 2147483648
    %v1409 = vor.u32 1.1754944e-38, %v1408
    %v1410 = vsel %vm1407, %v1409, %v1405
    %v1411 = vmul.f32 1.0, %v1410
    %v1412 = vtanh.pop %v1373
    %v1413 = vmul.f32 %v1396, %v1327
    %1415 = vrot.lane.b32.xlu0 %v1412, 64
    %v1416 = vpop.permute.xlu0 %1415
    %v1418 = vmul.f32 %v1396, %v1416
    %1420 = vrot.lane.b32.xlu0 %v1418, 64
    %v1421 = vpop.permute.xlu0 %1420
    %v1423 = vadd.f32 %v1413, %v1421
    %v1424 = vtanh.pop %v1423
    %1426 = vrot.lane.b32.xlu0 %v1424, 64
    %v1427 = vpop.permute.xlu0 %1426
    %v1429 = vmul.f32 %v1411, %v1427
    %1430 = vst.msk [vmem:[%s448] sm:$0xff] %vm343, %v1429
    %1431 = vst.msk [vmem:[%s450] sm:$0xff] %vm346, %v1429
    %v1432 = vld [vmem:[%s454] sm:$0xff]
    %v1433 = vld [vmem:[%s454 + $0x8] sm:$0xff]
    %v1434 = vld [vmem:[%s459] sm:$0xff]
    %v1435 = vld [vmem:[%s459 + $0x8] sm:$0xff]
    %v1436 = vsel %vm78, %v1432, %v1434
    %v1437 = vsel %vm79, %v1433, %v1435
    %v1438 = vpack.c.bf16 %v1429, %v1429
    %v1440 = vsel %vm255, %v1438, 0
    %1442 = vmatpush.bf16.msra.mxu0 0
    %1443 = vmatpush.bf16.msra.mxu0 0
    %1444 = vmatpush.bf16.msra.mxu0 0
    %1445 = vmatpush.bf16.msra.mxu0 0
    %1446 = vmatpush.bf16.msra.mxu0 %v1240
    %1447 = vmatpush.bf16.msra.mxu0 %v1238
    %1448 = vmatpush.bf16.msra.mxu0 %v1236
    %1449 = vmatpush.bf16.msra.mxu0 %v1234
    %1450 = vmatmul.bf16.gmra.mxu0 %v1440
    %v1451 = vpop.f32.mrf.mxu0
    %v1452 = vadd.f32 0.0, %v1451
    %v1453 = vpop.f32.mrf.mxu0
    %1454 = vdwg.mxu0
    %1455 = vmatpush.bf16.msra.mxu0 0
    %1456 = vmatpush.bf16.msra.mxu0 0
    %1457 = vmatpush.bf16.msra.mxu0 0
    %1458 = vmatpush.bf16.msra.mxu0 0
    %1459 = vmatpush.bf16.msra.mxu0 %v1241
    %1460 = vmatpush.bf16.msra.mxu0 %v1239
    %1461 = vmatpush.bf16.msra.mxu0 %v1237
    %1462 = vmatpush.bf16.msra.mxu0 %v1235
    %1463 = vmatmul.bf16.gmra.mxu0 %v1440
    %v1464 = vpop.f32.mrf.mxu0
    %v1465 = vadd.f32 0.0, %v1464
    %v1466 = vpop.f32.mrf.mxu0
    %1467 = vdwg.mxu0
    %v1468 = vadd.f32 %v1436, %v1452
    %v1469 = vadd.f32 %v1437, %v1465
    %v1470 = vxor.u32 %v1468, 2147483648
    %v1471 = vxor.u32 %v1469, 2147483648
    %v1472 = vmul.f32 %v1470, 1.442695
    %v1473 = vpow.pop %v1472
    %v1474 = vmul.f32 %v1471, 1.442695
    %v1475 = vpow.pop %v1474
    %v1476 = vadd.f32 %v1473, 1.0
    %v1477 = vadd.f32 %v1475, 1.0
    %v1478 = vrcp.pop %v1476
    %v1479 = vmul.f32 %v1476, %v1478
    %v1480 = vsub.f32 1.0, %v1479
    %v1481 = vmul.f32 %v1478, %v1480
    %v1482 = vadd.f32 %v1478, %v1481
    %vm1483 = vweird.f32 %v1476
    %vm1484 = vweird.f32 %v1478
    %vm1485 = vmor %vm1483, %vm1484
    %v1486 = vsel %vm1485, %v1478, %v1482
    %v1487 = vand.u32 2147483647, %v1476
    %vm1488 = vcmp.eq.f32.partialorder %v1487, 8.507059e+37
    %v1489 = vand.u32 %v1476, 2147483648
    %v1490 = vor.u32 1.1754944e-38, %v1489
    %v1491 = vsel %vm1488, %v1490, %v1486
    %v1492 = vmul.f32 1.0, %v1491
    %v1493 = vrcp.pop %v1477
    %v1494 = vmul.f32 %v1477, %v1493
    %v1495 = vsub.f32 1.0, %v1494
    %v1496 = vmul.f32 %v1493, %v1495
    %v1497 = vadd.f32 %v1493, %v1496
    %vm1498 = vweird.f32 %v1477
    %vm1499 = vweird.f32 %v1493
    %vm1500 = vmor %vm1498, %vm1499
    %v1501 = vsel %vm1500, %v1493, %v1497
    %v1502 = vand.u32 2147483647, %v1477
    %vm1503 = vcmp.eq.f32.partialorder %v1502, 8.507059e+37
    %v1504 = vand.u32 %v1477, 2147483648
    %v1505 = vor.u32 1.1754944e-38, %v1504
    %v1506 = vsel %vm1503, %v1505, %v1501
    %v1507 = vmul.f32 1.0, %v1506
    %v1508 = vtanh.pop %v1469
    %v1509 = vmul.f32 %v1492, %v1423
    %1511 = vrot.lane.b32.xlu0 %v1508, 64
    %v1512 = vpop.permute.xlu0 %1511
    %v1514 = vmul.f32 %v1492, %v1512
    %1516 = vrot.lane.b32.xlu0 %v1514, 64
    %v1517 = vpop.permute.xlu0 %1516
    %v1519 = vadd.f32 %v1509, %v1517
    %v1520 = vtanh.pop %v1519
    %1522 = vrot.lane.b32.xlu0 %v1520, 64
    %v1523 = vpop.permute.xlu0 %1522
    %v1525 = vmul.f32 %v1507, %v1523
    %1526 = vst.msk [vmem:[%s552] sm:$0xff] %vm343, %v1525
    %1527 = vst.msk [vmem:[%s554] sm:$0xff] %vm346, %v1525
    %v1528 = vld [vmem:[%s558] sm:$0xff]
    %v1529 = vld [vmem:[%s558 + $0x8] sm:$0xff]
    %v1530 = vld [vmem:[%s563] sm:$0xff]
    %v1531 = vld [vmem:[%s563 + $0x8] sm:$0xff]
    %v1532 = vsel %vm78, %v1528, %v1530
    %v1533 = vsel %vm79, %v1529, %v1531
    %v1534 = vpack.c.bf16 %v1525, %v1525
    %v1536 = vsel %vm255, %v1534, 0
    %1538 = vmatpush.bf16.msra.mxu0 0
    %1539 = vmatpush.bf16.msra.mxu0 0
    %1540 = vmatpush.bf16.msra.mxu0 0
    %1541 = vmatpush.bf16.msra.mxu0 0
    %1542 = vmatpush.bf16.msra.mxu0 %v1240
    %1543 = vmatpush.bf16.msra.mxu0 %v1238
    %1544 = vmatpush.bf16.msra.mxu0 %v1236
    %1545 = vmatpush.bf16.msra.mxu0 %v1234
    %1546 = vmatmul.bf16.gmra.mxu0 %v1536
    %v1547 = vpop.f32.mrf.mxu0
    %v1548 = vadd.f32 0.0, %v1547
    %v1549 = vpop.f32.mrf.mxu0
    %1550 = vdwg.mxu0
    %1551 = vmatpush.bf16.msra.mxu0 0
    %1552 = vmatpush.bf16.msra.mxu0 0
    %1553 = vmatpush.bf16.msra.mxu0 0
    %1554 = vmatpush.bf16.msra.mxu0 0
    %1555 = vmatpush.bf16.msra.mxu0 %v1241
    %1556 = vmatpush.bf16.msra.mxu0 %v1239
    %1557 = vmatpush.bf16.msra.mxu0 %v1237
    %1558 = vmatpush.bf16.msra.mxu0 %v1235
    %1559 = vmatmul.bf16.gmra.mxu0 %v1536
    %v1560 = vpop.f32.mrf.mxu0
    %v1561 = vadd.f32 0.0, %v1560
    %v1562 = vpop.f32.mrf.mxu0
    %1563 = vdwg.mxu0
    %v1564 = vadd.f32 %v1532, %v1548
    %v1565 = vadd.f32 %v1533, %v1561
    %v1566 = vxor.u32 %v1564, 2147483648
    %v1567 = vxor.u32 %v1565, 2147483648
    %v1568 = vmul.f32 %v1566, 1.442695
    %v1569 = vpow.pop %v1568
    %v1570 = vmul.f32 %v1567, 1.442695
    %v1571 = vpow.pop %v1570
    %v1572 = vadd.f32 %v1569, 1.0
    %v1573 = vadd.f32 %v1571, 1.0
    %v1574 = vrcp.pop %v1572
    %v1575 = vmul.f32 %v1572, %v1574
    %v1576 = vsub.f32 1.0, %v1575
    %v1577 = vmul.f32 %v1574, %v1576
    %v1578 = vadd.f32 %v1574, %v1577
    %vm1579 = vweird.f32 %v1572
    %vm1580 = vweird.f32 %v1574
    %vm1581 = vmor %vm1579, %vm1580
    %v1582 = vsel %vm1581, %v1574, %v1578
    %v1583 = vand.u32 2147483647, %v1572
    %vm1584 = vcmp.eq.f32.partialorder %v1583, 8.507059e+37
    %v1585 = vand.u32 %v1572, 2147483648
    %v1586 = vor.u32 1.1754944e-38, %v1585
    %v1587 = vsel %vm1584, %v1586, %v1582
    %v1588 = vmul.f32 1.0, %v1587
    %v1589 = vrcp.pop %v1573
    %v1590 = vmul.f32 %v1573, %v1589
    %v1591 = vsub.f32 1.0, %v1590
    %v1592 = vmul.f32 %v1589, %v1591
    %v1593 = vadd.f32 %v1589, %v1592
    %vm1594 = vweird.f32 %v1573
    %vm1595 = vweird.f32 %v1589
    %vm1596 = vmor %vm1594, %vm1595
    %v1597 = vsel %vm1596, %v1589, %v1593
    %v1598 = vand.u32 2147483647, %v1573
    %vm1599 = vcmp.eq.f32.partialorder %v1598, 8.507059e+37
    %v1600 = vand.u32 %v1573, 2147483648
    %v1601 = vor.u32 1.1754944e-38, %v1600
    %v1602 = vsel %vm1599, %v1601, %v1597
    %v1603 = vmul.f32 1.0, %v1602
    %v1604 = vtanh.pop %v1565
    %v1605 = vmul.f32 %v1588, %v1519
    %1607 = vrot.lane.b32.xlu0 %v1604, 64
    %v1608 = vpop.permute.xlu0 %1607
    %v1610 = vmul.f32 %v1588, %v1608
    %1612 = vrot.lane.b32.xlu0 %v1610, 64
    %v1613 = vpop.permute.xlu0 %1612
    %v1615 = vadd.f32 %v1605, %v1613
    %v1616 = vtanh.pop %v1615
    %1618 = vrot.lane.b32.xlu0 %v1616, 64
    %v1619 = vpop.permute.xlu0 %1618
    %v1621 = vmul.f32 %v1603, %v1619
    %1622 = vst.msk [vmem:[%s656] sm:$0xff] %vm343, %v1621
    %1623 = vst.msk [vmem:[%s658] sm:$0xff] %vm346, %v1621
    %v1624 = vld [vmem:[%s563] sm:$0xff]
    %v1625 = vld [vmem:[%s563 + $0x8] sm:$0xff]
    %v1626 = vld [vmem:[%s558] sm:$0xff]
    %v1627 = vld [vmem:[%s558 + $0x8] sm:$0xff]
    %v1628 = vsel %vm78, %v1624, %v1626
    %v1629 = vsel %vm79, %v1625, %v1627
    %v1630 = vpack.c.bf16 %v1621, %v1621
    %v1632 = vsel %vm255, %v1630, 0
    %1634 = vmatpush.bf16.msra.mxu0 0
    %1635 = vmatpush.bf16.msra.mxu0 0
    %1636 = vmatpush.bf16.msra.mxu0 0
    %1637 = vmatpush.bf16.msra.mxu0 0
    %1638 = vmatpush.bf16.msra.mxu0 %v1240
    %1639 = vmatpush.bf16.msra.mxu0 %v1238
    %1640 = vmatpush.bf16.msra.mxu0 %v1236
    %1641 = vmatpush.bf16.msra.mxu0 %v1234
    %1642 = vmatmul.bf16.gmra.mxu0 %v1632
    %v1643 = vpop.f32.mrf.mxu0
    %v1644 = vadd.f32 0.0, %v1643
    %v1645 = vpop.f32.mrf.mxu0
    %1646 = vdwg.mxu0
    %1647 = vmatpush.bf16.msra.mxu0 0
    %1648 = vmatpush.bf16.msra.mxu0 0
    %1649 = vmatpush.bf16.msra.mxu0 0
    %1650 = vmatpush.bf16.msra.mxu0 0
    %1651 = vmatpush.bf16.msra.mxu0 %v1241
    %1652 = vmatpush.bf16.msra.mxu0 %v1239
    %1653 = vmatpush.bf16.msra.mxu0 %v1237
    %1654 = vmatpush.bf16.msra.mxu0 %v1235
    %1655 = vmatmul.bf16.gmra.mxu0 %v1632
    %v1656 = vpop.f32.mrf.mxu0
    %v1657 = vadd.f32 0.0, %v1656
    %v1658 = vpop.f32.mrf.mxu0
    %1659 = vdwg.mxu0
    %v1660 = vadd.f32 %v1628, %v1644
    %v1661 = vadd.f32 %v1629, %v1657
    %v1662 = vxor.u32 %v1660, 2147483648
    %v1663 = vxor.u32 %v1661, 2147483648
    %v1664 = vmul.f32 %v1662, 1.442695
    %v1665 = vpow.pop %v1664
    %v1666 = vmul.f32 %v1663, 1.442695
    %v1667 = vpow.pop %v1666
    %v1668 = vadd.f32 %v1665, 1.0
    %v1669 = vadd.f32 %v1667, 1.0
    %v1670 = vrcp.pop %v1668
    %v1671 = vmul.f32 %v1668, %v1670
    %v1672 = vsub.f32 1.0, %v1671
    %v1673 = vmul.f32 %v1670, %v1672
    %v1674 = vadd.f32 %v1670, %v1673
    %vm1675 = vweird.f32 %v1668
    %vm1676 = vweird.f32 %v1670
    %vm1677 = vmor %vm1675, %vm1676
    %v1678 = vsel %vm1677, %v1670, %v1674
    %v1679 = vand.u32 2147483647, %v1668
    %vm1680 = vcmp.eq.f32.partialorder %v1679, 8.507059e+37
    %v1681 = vand.u32 %v1668, 2147483648
    %v1682 = vor.u32 1.1754944e-38, %v1681
    %v1683 = vsel %vm1680, %v1682, %v1678
    %v1684 = vmul.f32 1.0, %v1683
    %v1685 = vrcp.pop %v1669
    %v1686 = vmul.f32 %v1669, %v1685
    %v1687 = vsub.f32 1.0, %v1686
    %v1688 = vmul.f32 %v1685, %v1687
    %v1689 = vadd.f32 %v1685, %v1688
    %vm1690 = vweird.f32 %v1669
    %vm1691 = vweird.f32 %v1685
    %vm1692 = vmor %vm1690, %vm1691
    %v1693 = vsel %vm1692, %v1685, %v1689
    %v1694 = vand.u32 2147483647, %v1669
    %vm1695 = vcmp.eq.f32.partialorder %v1694, 8.507059e+37
    %v1696 = vand.u32 %v1669, 2147483648
    %v1697 = vor.u32 1.1754944e-38, %v1696
    %v1698 = vsel %vm1695, %v1697, %v1693
    %v1699 = vmul.f32 1.0, %v1698
    %v1700 = vtanh.pop %v1661
    %v1701 = vmul.f32 %v1684, %v1615
    %1703 = vrot.lane.b32.xlu0 %v1700, 64
    %v1704 = vpop.permute.xlu0 %1703
    %v1706 = vmul.f32 %v1684, %v1704
    %1708 = vrot.lane.b32.xlu0 %v1706, 64
    %v1709 = vpop.permute.xlu0 %1708
    %v1711 = vadd.f32 %v1701, %v1709
    %v1712 = vtanh.pop %v1711
    %1714 = vrot.lane.b32.xlu0 %v1712, 64
    %v1715 = vpop.permute.xlu0 %1714
    %v1717 = vmul.f32 %v1699, %v1715
    %1718 = vst.msk [vmem:[%s658] sm:$0xff] %vm343, %v1717
    %1719 = vst.msk [vmem:[%s656] sm:$0xff] %vm346, %v1717
    %v1720 = vld [vmem:[%s459] sm:$0xff]
    %v1721 = vld [vmem:[%s459 + $0x8] sm:$0xff]
    %v1722 = vld [vmem:[%s454] sm:$0xff]
    %v1723 = vld [vmem:[%s454 + $0x8] sm:$0xff]
    %v1724 = vsel %vm78, %v1720, %v1722
    %v1725 = vsel %vm79, %v1721, %v1723
    %v1726 = vpack.c.bf16 %v1717, %v1717
    %v1728 = vsel %vm255, %v1726, 0
    %1730 = vmatpush.bf16.msra.mxu0 0
    %1731 = vmatpush.bf16.msra.mxu0 0
    %1732 = vmatpush.bf16.msra.mxu0 0
    %1733 = vmatpush.bf16.msra.mxu0 0
    %1734 = vmatpush.bf16.msra.mxu0 %v1240
    %1735 = vmatpush.bf16.msra.mxu0 %v1238
    %1736 = vmatpush.bf16.msra.mxu0 %v1236
    %1737 = vmatpush.bf16.msra.mxu0 %v1234
    %1738 = vmatmul.bf16.gmra.mxu0 %v1728
    %v1739 = vpop.f32.mrf.mxu0
    %v1740 = vadd.f32 0.0, %v1739
    %v1741 = vpop.f32.mrf.mxu0
    %1742 = vdwg.mxu0
    %1743 = vmatpush.bf16.msra.mxu0 0
    %1744 = vmatpush.bf16.msra.mxu0 0
    %1745 = vmatpush.bf16.msra.mxu0 0
    %1746 = vmatpush.bf16.msra.mxu0 0
    %1747 = vmatpush.bf16.msra.mxu0 %v1241
    %1748 = vmatpush.bf16.msra.mxu0 %v1239
    %1749 = vmatpush.bf16.msra.mxu0 %v1237
    %1750 = vmatpush.bf16.msra.mxu0 %v1235
    %1751 = vmatmul.bf16.gmra.mxu0 %v1728
    %v1752 = vpop.f32.mrf.mxu0
    %v1753 = vadd.f32 0.0, %v1752
    %v1754 = vpop.f32.mrf.mxu0
    %1755 = vdwg.mxu0
    %v1756 = vadd.f32 %v1724, %v1740
    %v1757 = vadd.f32 %v1725, %v1753
    %v1758 = vxor.u32 %v1756, 2147483648
    %v1759 = vxor.u32 %v1757, 2147483648
    %v1760 = vmul.f32 %v1758, 1.442695
    %v1761 = vpow.pop %v1760
    %v1762 = vmul.f32 %v1759, 1.442695
    %v1763 = vpow.pop %v1762
    %v1764 = vadd.f32 %v1761, 1.0
    %v1765 = vadd.f32 %v1763, 1.0
    %v1766 = vrcp.pop %v1764
    %v1767 = vmul.f32 %v1764, %v1766
    %v1768 = vsub.f32 1.0, %v1767
    %v1769 = vmul.f32 %v1766, %v1768
    %v1770 = vadd.f32 %v1766, %v1769
    %vm1771 = vweird.f32 %v1764
    %vm1772 = vweird.f32 %v1766
    %vm1773 = vmor %vm1771, %vm1772
    %v1774 = vsel %vm1773, %v1766, %v1770
    %v1775 = vand.u32 2147483647, %v1764
    %vm1776 = vcmp.eq.f32.partialorder %v1775, 8.507059e+37
    %v1777 = vand.u32 %v1764, 2147483648
    %v1778 = vor.u32 1.1754944e-38, %v1777
    %v1779 = vsel %vm1776, %v1778, %v1774
    %v1780 = vmul.f32 1.0, %v1779
    %v1781 = vrcp.pop %v1765
    %v1782 = vmul.f32 %v1765, %v1781
    %v1783 = vsub.f32 1.0, %v1782
    %v1784 = vmul.f32 %v1781, %v1783
    %v1785 = vadd.f32 %v1781, %v1784
    %vm1786 = vweird.f32 %v1765
    %vm1787 = vweird.f32 %v1781
    %vm1788 = vmor %vm1786, %vm1787
    %v1789 = vsel %vm1788, %v1781, %v1785
    %v1790 = vand.u32 2147483647, %v1765
    %vm1791 = vcmp.eq.f32.partialorder %v1790, 8.507059e+37
    %v1792 = vand.u32 %v1765, 2147483648
    %v1793 = vor.u32 1.1754944e-38, %v1792
    %v1794 = vsel %vm1791, %v1793, %v1789
    %v1795 = vmul.f32 1.0, %v1794
    %v1796 = vtanh.pop %v1757
    %v1797 = vmul.f32 %v1780, %v1711
    %1799 = vrot.lane.b32.xlu0 %v1796, 64
    %v1800 = vpop.permute.xlu0 %1799
    %v1802 = vmul.f32 %v1780, %v1800
    %1804 = vrot.lane.b32.xlu0 %v1802, 64
    %v1805 = vpop.permute.xlu0 %1804
    %v1807 = vadd.f32 %v1797, %v1805
    %v1808 = vtanh.pop %v1807
    %1810 = vrot.lane.b32.xlu0 %v1808, 64
    %v1811 = vpop.permute.xlu0 %1810
    %v1813 = vmul.f32 %v1795, %v1811
    %1814 = vst.msk [vmem:[%s554] sm:$0xff] %vm343, %v1813
    %1815 = vst.msk [vmem:[%s552] sm:$0xff] %vm346, %v1813
    %v1816 = vld [vmem:[%s355] sm:$0xff]
    %v1817 = vld [vmem:[%s355 + $0x8] sm:$0xff]
    %v1818 = vld [vmem:[%s350] sm:$0xff]
    %v1819 = vld [vmem:[%s350 + $0x8] sm:$0xff]
    %v1820 = vsel %vm78, %v1816, %v1818
    %v1821 = vsel %vm79, %v1817, %v1819
    %v1822 = vpack.c.bf16 %v1813, %v1813
    %v1824 = vsel %vm255, %v1822, 0
    %1826 = vmatpush.bf16.msra.mxu0 0
    %1827 = vmatpush.bf16.msra.mxu0 0
    %1828 = vmatpush.bf16.msra.mxu0 0
    %1829 = vmatpush.bf16.msra.mxu0 0
    %1830 = vmatpush.bf16.msra.mxu0 %v1240
    %1831 = vmatpush.bf16.msra.mxu0 %v1238
    %1832 = vmatpush.bf16.msra.mxu0 %v1236
    %1833 = vmatpush.bf16.msra.mxu0 %v1234
    %1834 = vmatmul.bf16.gmra.mxu0 %v1824
    %v1835 = vpop.f32.mrf.mxu0
    %v1836 = vadd.f32 0.0, %v1835
    %v1837 = vpop.f32.mrf.mxu0
    %1838 = vdwg.mxu0
    %1839 = vmatpush.bf16.msra.mxu0 0
    %1840 = vmatpush.bf16.msra.mxu0 0
    %1841 = vmatpush.bf16.msra.mxu0 0
    %1842 = vmatpush.bf16.msra.mxu0 0
    %1843 = vmatpush.bf16.msra.mxu0 %v1241
    %1844 = vmatpush.bf16.msra.mxu0 %v1239
    %1845 = vmatpush.bf16.msra.mxu0 %v1237
    %1846 = vmatpush.bf16.msra.mxu0 %v1235
    %1847 = vmatmul.bf16.gmra.mxu0 %v1824
    %v1848 = vpop.f32.mrf.mxu0
    %v1849 = vadd.f32 0.0, %v1848
    %v1850 = vpop.f32.mrf.mxu0
    %1851 = vdwg.mxu0
    %v1852 = vadd.f32 %v1820, %v1836
    %v1853 = vadd.f32 %v1821, %v1849
    %v1854 = vxor.u32 %v1852, 2147483648
    %v1855 = vxor.u32 %v1853, 2147483648
    %v1856 = vmul.f32 %v1854, 1.442695
    %v1857 = vpow.pop %v1856
    %v1858 = vmul.f32 %v1855, 1.442695
    %v1859 = vpow.pop %v1858
    %v1860 = vadd.f32 %v1857, 1.0
    %v1861 = vadd.f32 %v1859, 1.0
    %v1862 = vrcp.pop %v1860
    %v1863 = vmul.f32 %v1860, %v1862
    %v1864 = vsub.f32 1.0, %v1863
    %v1865 = vmul.f32 %v1862, %v1864
    %v1866 = vadd.f32 %v1862, %v1865
    %vm1867 = vweird.f32 %v1860
    %vm1868 = vweird.f32 %v1862
    %vm1869 = vmor %vm1867, %vm1868
    %v1870 = vsel %vm1869, %v1862, %v1866
    %v1871 = vand.u32 2147483647, %v1860
    %vm1872 = vcmp.eq.f32.partialorder %v1871, 8.507059e+37
    %v1873 = vand.u32 %v1860, 2147483648
    %v1874 = vor.u32 1.1754944e-38, %v1873
    %v1875 = vsel %vm1872, %v1874, %v1870
    %v1876 = vmul.f32 1.0, %v1875
    %v1877 = vrcp.pop %v1861
    %v1878 = vmul.f32 %v1861, %v1877
    %v1879 = vsub.f32 1.0, %v1878
    %v1880 = vmul.f32 %v1877, %v1879
    %v1881 = vadd.f32 %v1877, %v1880
    %vm1882 = vweird.f32 %v1861
    %vm1883 = vweird.f32 %v1877
    %vm1884 = vmor %vm1882, %vm1883
    %v1885 = vsel %vm1884, %v1877, %v1881
    %v1886 = vand.u32 2147483647, %v1861
    %vm1887 = vcmp.eq.f32.partialorder %v1886, 8.507059e+37
    %v1888 = vand.u32 %v1861, 2147483648
    %v1889 = vor.u32 1.1754944e-38, %v1888
    %v1890 = vsel %vm1887, %v1889, %v1885
    %v1891 = vmul.f32 1.0, %v1890
    %v1892 = vtanh.pop %v1853
    %v1893 = vmul.f32 %v1876, %v1807
    %1895 = vrot.lane.b32.xlu0 %v1892, 64
    %v1896 = vpop.permute.xlu0 %1895
    %v1898 = vmul.f32 %v1876, %v1896
    %1900 = vrot.lane.b32.xlu0 %v1898, 64
    %v1901 = vpop.permute.xlu0 %1900
    %v1903 = vadd.f32 %v1893, %v1901
    %v1904 = vtanh.pop %v1903
    %1906 = vrot.lane.b32.xlu0 %v1904, 64
    %v1907 = vpop.permute.xlu0 %1906
    %v1909 = vmul.f32 %v1891, %v1907
    %1910 = vst.msk [vmem:[%s450] sm:$0xff] %vm343, %v1909
    %1911 = vst.msk [vmem:[%s448] sm:$0xff] %vm346, %v1909
    %v1912 = vld [vmem:[%s210] sm:$0xff]
    %v1913 = vld [vmem:[%s210 + $0x8] sm:$0xff]
    %v1914 = vld [vmem:[%s205] sm:$0xff]
    %v1915 = vld [vmem:[%s205 + $0x8] sm:$0xff]
    %v1916 = vsel %vm78, %v1912, %v1914
    %v1917 = vsel %vm79, %v1913, %v1915
    %v1918 = vpack.c.bf16 %v1909, %v1909
    %v1920 = vsel %vm255, %v1918, 0
    %1922 = vmatpush.bf16.msra.mxu0 0
    %1923 = vmatpush.bf16.msra.mxu0 0
    %1924 = vmatpush.bf16.msra.mxu0 0
    %1925 = vmatpush.bf16.msra.mxu0 0
    %1926 = vmatpush.bf16.msra.mxu0 %v1240
    %1927 = vmatpush.bf16.msra.mxu0 %v1238
    %1928 = vmatpush.bf16.msra.mxu0 %v1236
    %1929 = vmatpush.bf16.msra.mxu0 %v1234
    %1930 = vmatmul.bf16.gmra.mxu0 %v1920
    %v1931 = vpop.f32.mrf.mxu0
    %v1932 = vadd.f32 0.0, %v1931
    %v1933 = vpop.f32.mrf.mxu0
    %1934 = vdwg.mxu0
    %1935 = vmatpush.bf16.msra.mxu0 0
    %1936 = vmatpush.bf16.msra.mxu0 0
    %1937 = vmatpush.bf16.msra.mxu0 0
    %1938 = vmatpush.bf16.msra.mxu0 0
    %1939 = vmatpush.bf16.msra.mxu0 %v1241
    %1940 = vmatpush.bf16.msra.mxu0 %v1239
    %1941 = vmatpush.bf16.msra.mxu0 %v1237
    %1942 = vmatpush.bf16.msra.mxu0 %v1235
    %1943 = vmatmul.bf16.gmra.mxu0 %v1920
    %v1944 = vpop.f32.mrf.mxu0
    %v1945 = vadd.f32 0.0, %v1944
    %v1946 = vpop.f32.mrf.mxu0
    %1947 = vdwg.mxu0
    %v1948 = vadd.f32 %v1916, %v1932
    %v1949 = vadd.f32 %v1917, %v1945
    %v1950 = vxor.u32 %v1948, 2147483648
    %v1951 = vxor.u32 %v1949, 2147483648
    %v1952 = vmul.f32 %v1950, 1.442695
    %v1953 = vpow.pop %v1952
    %v1954 = vmul.f32 %v1951, 1.442695
    %v1955 = vpow.pop %v1954
    %v1956 = vadd.f32 %v1953, 1.0
    %v1957 = vadd.f32 %v1955, 1.0
    %v1958 = vrcp.pop %v1956
    %v1959 = vmul.f32 %v1956, %v1958
    %v1960 = vsub.f32 1.0, %v1959
    %v1961 = vmul.f32 %v1958, %v1960
    %v1962 = vadd.f32 %v1958, %v1961
    %vm1963 = vweird.f32 %v1956
    %vm1964 = vweird.f32 %v1958
    %vm1965 = vmor %vm1963, %vm1964
    %v1966 = vsel %vm1965, %v1958, %v1962
    %v1967 = vand.u32 2147483647, %v1956
    %vm1968 = vcmp.eq.f32.partialorder %v1967, 8.507059e+37
    %v1969 = vand.u32 %v1956, 2147483648
    %v1970 = vor.u32 1.1754944e-38, %v1969
    %v1971 = vsel %vm1968, %v1970, %v1966
    %v1972 = vmul.f32 1.0, %v1971
    %v1973 = vrcp.pop %v1957
    %v1974 = vmul.f32 %v1957, %v1973
    %v1975 = vsub.f32 1.0, %v1974
    %v1976 = vmul.f32 %v1973, %v1975
    %v1977 = vadd.f32 %v1973, %v1976
    %vm1978 = vweird.f32 %v1957
    %vm1979 = vweird.f32 %v1973
    %vm1980 = vmor %vm1978, %vm1979
    %v1981 = vsel %vm1980, %v1973, %v1977
    %v1982 = vand.u32 2147483647, %v1957
    %vm1983 = vcmp.eq.f32.partialorder %v1982, 8.507059e+37
    %v1984 = vand.u32 %v1957, 2147483648
    %v1985 = vor.u32 1.1754944e-38, %v1984
    %v1986 = vsel %vm1983, %v1985, %v1981
    %v1987 = vmul.f32 1.0, %v1986
    %v1988 = vtanh.pop %v1949
    %v1989 = vmul.f32 %v1972, %v1903
    %1991 = vrot.lane.b32.xlu0 %v1988, 64
    %v1992 = vpop.permute.xlu0 %1991
    %v1994 = vmul.f32 %v1972, %v1992
    %1996 = vrot.lane.b32.xlu0 %v1994, 64
    %v1997 = vpop.permute.xlu0 %1996
    %v1999 = vadd.f32 %v1989, %v1997
    %v2000 = vtanh.pop %v1999
    %2002 = vrot.lane.b32.xlu0 %v2000, 64
    %v2003 = vpop.permute.xlu0 %2002
    %v2005 = vmul.f32 %v1987, %v2003
    %2006 = vst.msk [vmem:[%s345] sm:$0xff] %vm343, %v2005
    %2007 = vst.msk [vmem:[#allocation3] sm:$0xff] %vm346, %v2005
    %v2008 = vld [vmem:[#allocation3] sm:$0xff]
    %v2009 = vld [vmem:[#allocation3 + $0x8] sm:$0xff]
    %v2010 = vld [vmem:[#allocation3 + $0x10] sm:$0xff]
    %v2011 = vld [vmem:[#allocation3 + $0x18] sm:$0xff]
    %v2012 = vld [vmem:[#allocation3 + $0x20] sm:$0xff]
    %v2013 = vld [vmem:[#allocation3 + $0x28] sm:$0xff]
    %v2014 = vld [vmem:[#allocation3 + $0x30] sm:$0xff]
    %v2015 = vld [vmem:[#allocation3 + $0x38] sm:$0xff]
    %v2016 = vmax.f32 %v2008, 0.0
    %v2017 = vmax.f32 %v2009, 0.0
    %v2018 = vmax.f32 %v2010, 0.0
    %v2019 = vmax.f32 %v2011, 0.0
    %v2020 = vmax.f32 %v2012, 0.0
    %v2021 = vmax.f32 %v2013, 0.0
    %v2022 = vmax.f32 %v2014, 0.0
    %v2023 = vmax.f32 %v2015, 0.0
    %v2024 = vld [vmem:[%s7] sm:$0x1]
    %v2026 = vperm.slane %v2024, 0
    %v2028 = vmul.f32 %v2016, %v2026
    %v2029 = vmul.f32 %v2017, %v2026
    %v2030 = vmul.f32 %v2018, %v2026
    %v2031 = vmul.f32 %v2019, %v2026
    %v2032 = vmul.f32 %v2020, %v2026
    %v2033 = vmul.f32 %v2021, %v2026
    %v2034 = vmul.f32 %v2022, %v2026
    %v2035 = vmul.f32 %v2023, %v2026
    %v2036 = vsel %vm255, %v2028, 0.0
    %2037 = vadd.xlane.f32.xlu0 %v2036
    %v2038 = vpop.xlane.xlu0 %2037
    %v2039 = vsel %vm255, %v2029, 0.0
    %2040 = vadd.xlane.f32.xlu0 %v2039
    %v2041 = vpop.xlane.xlu0 %2040
    %v2042 = vsel %vm255, %v2030, 0.0
    %2043 = vadd.xlane.f32.xlu0 %v2042
    %v2044 = vpop.xlane.xlu0 %2043
    %v2045 = vsel %vm255, %v2031, 0.0
    %2046 = vadd.xlane.f32.xlu0 %v2045
    %v2047 = vpop.xlane.xlu0 %2046
    %v2048 = vsel %vm255, %v2032, 0.0
    %2049 = vadd.xlane.f32.xlu0 %v2048
    %v2050 = vpop.xlane.xlu0 %2049
    %v2051 = vsel %vm255, %v2033, 0.0
    %2052 = vadd.xlane.f32.xlu0 %v2051
    %v2053 = vpop.xlane.xlu0 %2052
    %v2054 = vsel %vm255, %v2034, 0.0
    %2055 = vadd.xlane.f32.xlu0 %v2054
    %v2056 = vpop.xlane.xlu0 %2055
    %v2057 = vsel %vm255, %v2035, 0.0
    %2058 = vadd.xlane.f32.xlu0 %v2057
    %v2059 = vpop.xlane.xlu0 %2058
    %v2060 = vld [vmem:[#allocation4] sm:$0x1]
    %v2062 = vperm.slane %v2060, 0
    %v2064 = vadd.f32 %v2038, %v2062
    %v2065 = vadd.f32 %v2041, %v2062
    %v2066 = vadd.f32 %v2044, %v2062
    %v2067 = vadd.f32 %v2047, %v2062
    %v2068 = vadd.f32 %v2050, %v2062
    %v2069 = vadd.f32 %v2053, %v2062
    %v2070 = vadd.f32 %v2056, %v2062
    %v2071 = vadd.f32 %v2059, %v2062
    %vm2072 = vcmask 7168
    %2073 = vst.msk [vmem:[%s9] sm:$0xff] %vm2072, %v2064
    %2074 = vst.msk [vmem:[%s9 + $0x8] sm:$0xff] %vm2072, %v2065
    %2075 = vst.msk [vmem:[%s9 + $0x10] sm:$0xff] %vm2072, %v2066
    %2076 = vst.msk [vmem:[%s9 + $0x18] sm:$0xff] %vm2072, %v2067
    %2077 = vst.msk [vmem:[%s9 + $0x20] sm:$0xff] %vm2072, %v2068
    %2078 = vst.msk [vmem:[%s9 + $0x28] sm:$0xff] %vm2072, %v2069
    %2079 = vst.msk [vmem:[%s9 + $0x30] sm:$0xff] %vm2072, %v2070
    %2080 = vst.msk [vmem:[%s9 + $0x38] sm:$0xff] %vm2072, %v2071
    // Predicated region
    $region42: #{map_lai_forward.1} parent=1 // pred_check
      _
    $region43: #{map_lai_forward.1} parent=1 // pred_check_branch
      %2082 = sbr.rel (0) target = $region45
    $region44: #{map_lai_forward.1} parent=1 // pred_region
      _
    $region45: #{map_lai_forward.1} parent=1 // pred_fallthru
      _
    // Predicated region
    $region46: #{map_lai_forward.1} parent=1 // pred_check
      _
    $region47: #{map_lai_forward.1} parent=1 // pred_check_branch
      %2084 = sbr.rel (0) target = $region49
    $region48: #{map_lai_forward.1} parent=1 // pred_region
      _
    $region49: #{map_lai_forward.1} parent=1 // pred_fallthru
      _
    %2085 = vsyncpa [#allocation6], 1

</llo_original>
